<compile_context>
chip_gen: v7x
topology: tpu7x:2x2x1
jax: 0.10.0
libtpu: 0.0.40
codegen_flags: <defaults>
</compile_context>

<pallas_src>
import math

import jax
import jax.numpy as jnp
from jax.experimental import pallas as pl
from jax.experimental.pallas import tpu as pltpu

# Model hyper-parameters (small, consistent with the module's defaults scaled down).
D_MODEL = 32
D_K = 8
D_V = 8
H = 4
D_FF = 64
N_LAYERS = 2
EPS = 1e-5          # PyTorch nn.LayerNorm default
NEG_BIAS = -1e30    # finite "minus infinity" for masking (avoids NaN for all-masked rows)


def fused_dual_path_kernel(
    x_ref, mask_ref, extra_ref,
    wqkv_ref, bqkv_ref, wo_ref, w1_ref, b1_ref, w2_ref, vec_ref,
    out_ref, ctx_sc,
):
    # x_ref: (B*S, D); mask_ref: (B, 1, S); extra_ref/out_ref: (N, B*S, D)
    # wqkv_ref: (N, D, 3*H*d_k); wo_ref: (N, H*d_v, D); w1/w2: (N, D, d_ff)/(N, d_ff, D)
    # vec_ref: (N, 6, D) rows = [b_o, b2, ln1_gamma, ln1_beta, ln2_gamma, ln2_beta]
    # ctx_sc (scratch): (B, S, H*d_v)
    BS, D = x_ref.shape
    n_layers = wqkv_ref.shape[0]
    B, _, S = mask_ref.shape
    h, d_k, d_v = H, D_K, D_V
    hk = h * d_k

    # Whole batch as one (B*S, D) slab; stays VMEM-resident across all layers.
    x = x_ref[...]

    # Additive key-padding bias, fully broadcast ONCE, hoisted above layer/head loops.
    mask_bias = jnp.broadcast_to(mask_ref[...] * NEG_BIAS, (B, S, S))
    scale = 1.0 / math.sqrt(d_k)

    for i in range(n_layers):                       # static, fully unrolled layer loop
        # ---- fused QKV projection: ONE 96-wide matmul + ONE bias add per layer ----
        qkv = jnp.dot(x, wqkv_ref[i], preferred_element_type=jnp.float32) + bqkv_ref[i]
        qkv3 = qkv.reshape(B, S, 3 * hk)            # tile-boundary leading-dim split

        # ---- per-head attention; contexts written lane-sliced into VMEM scratch ----
        for hh in range(h):                         # static head loop (h is small)
            q = qkv3[:, :, hh * d_k:(hh + 1) * d_k]
            k = qkv3[:, :, hk + hh * d_k: hk + (hh + 1) * d_k]
            v = qkv3[:, :, 2 * hk + hh * d_v: 2 * hk + (hh + 1) * d_v]
            s = jnp.einsum("bqd,bkd->bqk", q, k,
                           preferred_element_type=jnp.float32) * scale + mask_bias
            s_max = jnp.max(s, axis=-1, keepdims=True)
            p = jnp.exp(s - s_max)
            p = p / jnp.sum(p, axis=-1, keepdims=True)     # exact divide (parity w/ PyTorch)
            ctx_sc[:, :, hh * d_v:(hh + 1) * d_v] = jnp.einsum(
                "bqk,bkd->bqd", p, v, preferred_element_type=jnp.float32)

        vecs = vec_ref[i]                            # (6, D) small per-layer vectors
        # ---- single output projection over all heads (MXU does the head reduction) ----
        att = jnp.dot(ctx_sc[...].reshape(BS, h * d_v), wo_ref[i],
                      preferred_element_type=jnp.float32) + vecs[0:1]

        # dropout -> identity (inference); residual + LayerNorm 1
        r1 = x + att
        mu1 = jnp.mean(r1, axis=-1, keepdims=True)
        var1 = jnp.mean((r1 - mu1) ** 2, axis=-1, keepdims=True)
        y1 = (r1 - mu1) * jax.lax.rsqrt(var1 + EPS) * vecs[2:3] + vecs[3:4]

        # ---- position-wise feed-forward + residual + LayerNorm 2 ----
        h1 = jnp.maximum(
            jnp.dot(y1, w1_ref[i], preferred_element_type=jnp.float32) + b1_ref[i], 0.0)
        f = jnp.dot(h1, w2_ref[i], preferred_element_type=jnp.float32) + vecs[1:2]
        r2 = y1 + f
        mu2 = jnp.mean(r2, axis=-1, keepdims=True)
        var2 = jnp.mean((r2 - mu2) ** 2, axis=-1, keepdims=True)
        y2 = (r2 - mu2) * jax.lax.rsqrt(var2 + EPS) * vecs[4:5] + vecs[5:6]

        # per-layer dual-path add: out = layer(out) + extra_feat[:, i]
        x = y2 + extra_ref[i]
        out_ref[i] = x                               # output already stacked over layers


def dual_path_encoder(x, extra_feat, mask, params):
    """DualPathEncoder.forward. x:(B,S,D), extra_feat:(B,N,S,D), mask:(B,1,S) -> (B,N,S,D)."""
    B, S, D = x.shape
    N = extra_feat.shape[1]

    # Wrapper-side layout plumbing (free in XLA): flatten batch*seq, stack layers first.
    x2 = x.reshape(B * S, D)
    extra2 = jnp.swapaxes(extra_feat, 0, 1).reshape(N, B * S, D)

    n_inputs = 3 + len(params)
    vmem_spec = lambda: pl.BlockSpec(memory_space=pltpu.MemorySpace.VMEM)

    # Gridless: the whole working set (< ~200 KiB) lives in VMEM for all layers.
    # TODO(synk): on v7x (2 TCs) a parallel grid over B could shard batches across cores;
    # kept gridless here since on v5e/v6e that grid is just a serial loop adding overhead.
    out = pl.pallas_call(
        fused_dual_path_kernel,
        out_shape=jax.ShapeDtypeStruct((N, B * S, D), jnp.float32),
        in_specs=[vmem_spec() for _ in range(n_inputs)],
        out_specs=vmem_spec(),
        scratch_shapes=[pltpu.VMEM((B, S, H * D_V), jnp.float32)],
    )(x2, mask, extra2, *params)
    return jnp.swapaxes(out.reshape(N, B, S, D), 0, 1)      # (B, N, S, D)


def init_params(key, n_layers, d_model, d_k, d_v, h, d_ff):
    """Deterministic nn.Linear-style init, packed for the fused kernel.

    W_qkv: (N, d_model, 3*h*d_k) with columns ordered (q|k|v, head, d_k) — the same
    ordering PyTorch's per-head view of fc_q/fc_k/fc_v produces. W_o: (N, h*d_v, d_model)
    with rows ordered (head, d_v). Small vectors packed into (N, 6, d_model).
    """
    def linear(k, fan_in, fan_out):
        kw, kb = jax.random.split(k)
        bound = 1.0 / math.sqrt(fan_in)
        w = jax.random.uniform(kw, (fan_in, fan_out), jnp.float32, -bound, bound)
        b = jax.random.uniform(kb, (fan_out,), jnp.float32, -bound, bound)
        return w, b

    WQKV, BQKV, WO, W1, B1, W2, VECS = [], [], [], [], [], [], []
    for _ in range(n_layers):
        key, k0, k1, k2, k3, k4, k5 = jax.random.split(key, 7)
        wq, bq = linear(k0, d_model, h * d_k)
        wk, bk = linear(k1, d_model, h * d_k)
        wv, bv = linear(k2, d_model, h * d_v)
        wo, bo = linear(k3, h * d_v, d_model)
        w1, b1 = linear(k4, d_model, d_ff)
        w2, b2 = linear(k5, d_ff, d_model)

        WQKV.append(jnp.concatenate([wq, wk, wv], axis=1))           # (d_model, 3*h*d_k)
        BQKV.append(jnp.concatenate([bq, bk, bv]).reshape(1, -1))    # (1, 3*h*d_k)
        WO.append(wo)                                                # (h*d_v, d_model)
        W1.append(w1)
        B1.append(b1.reshape(1, d_ff))
        W2.append(w2)
        ln1_g = jnp.ones((d_model,), jnp.float32)
        ln1_b = jnp.zeros((d_model,), jnp.float32)
        ln2_g = jnp.ones((d_model,), jnp.float32)
        ln2_b = jnp.zeros((d_model,), jnp.float32)
        VECS.append(jnp.stack([bo, b2, ln1_g, ln1_b, ln2_g, ln2_b], axis=0))  # (6, d_model)

    stack = lambda xs: jnp.stack(xs, axis=0)
    return (stack(WQKV), stack(BQKV), stack(WO),
            stack(W1), stack(B1), stack(W2), stack(VECS))


if __name__ == "__main__":
    key = jax.random.PRNGKey(0)
    k_in, k_extra, k_params = jax.random.split(key, 3)

    B, S = 2, 8
    x = jax.random.normal(k_in, (B, S, D_MODEL), jnp.float32)
    extra_feat = jax.random.normal(k_extra, (B, N_LAYERS, S, D_MODEL), jnp.float32)

    # attention mask: 1.0 => masked (pad). Mask the last two positions of batch 1.
    mask = jnp.zeros((B, 1, S), jnp.float32)
    mask = mask.at[1, 0, -2:].set(1.0)

    params = init_params(k_params, N_LAYERS, D_MODEL, D_K, D_V, H, D_FF)

    # TODO(synk): dropout is treated as identity (eval mode); attention_weights path
    # (multiplicative reweighting before masking) is not implemented since forward is
    # exercised with attention_weights=None.
    out = dual_path_encoder(x, extra_feat, mask, params)
    out = jax.block_until_ready(out)
    assert out.shape == (B, N_LAYERS, S, D_MODEL)
    assert bool(jnp.all(jnp.isfinite(out)))
    print("KERNEL_OK")
</pallas_src>

<mosaic_0001>
module attributes {stable_mosaic.version = 11 : i64} {
  func.func @fused_dual_path_kernel(%arg0: memref<16x32xf32, #tpu.memory_space<vmem>>, %arg1: memref<2x1x8xf32, #tpu.memory_space<vmem>>, %arg2: memref<2x16x32xf32, #tpu.memory_space<vmem>>, %arg3: memref<2x32x96xf32, #tpu.memory_space<vmem>>, %arg4: memref<2x1x96xf32, #tpu.memory_space<vmem>>, %arg5: memref<2x32x32xf32, #tpu.memory_space<vmem>>, %arg6: memref<2x32x64xf32, #tpu.memory_space<vmem>>, %arg7: memref<2x1x64xf32, #tpu.memory_space<vmem>>, %arg8: memref<2x64x32xf32, #tpu.memory_space<vmem>>, %arg9: memref<2x6x32xf32, #tpu.memory_space<vmem>>, %arg10: memref<2x16x32xf32, #tpu.memory_space<vmem>>, %arg11: memref<2x8x32xf32, #tpu.memory_space<vmem>>) attributes {dimension_semantics = [], scalar_prefetch = 0 : i64, scratch_operands = 1 : i64, tpu.core_type = #tpu.core_type<tc>} {
    %c0 = arith.constant 0 : index
    %c0_0 = arith.constant 0 : index
    %0 = vector.load %arg0[%c0, %c0_0] : memref<16x32xf32, #tpu.memory_space<vmem>>, vector<16x32xf32>
    %c0_1 = arith.constant 0 : index
    %c0_2 = arith.constant 0 : index
    %c0_3 = arith.constant 0 : index
    %1 = vector.load %arg1[%c0_1, %c0_2, %c0_3] : memref<2x1x8xf32, #tpu.memory_space<vmem>>, vector<2x1x8xf32>
    %cst = arith.constant -1.000000e+30 : f32
    %2 = vector.broadcast %cst : f32 to vector<2x1x8xf32>
    %3 = arith.mulf %1, %2 : vector<2x1x8xf32>
    %4 = vector.shape_cast %3 : vector<2x1x8xf32> to vector<2x1x8xf32>
    %5 = vector.broadcast %4 : vector<2x1x8xf32> to vector<2x8x8xf32>
    %c0_4 = arith.constant 0 : index
    %c0_5 = arith.constant 0 : index
    %c0_6 = arith.constant 0 : index
    %6 = vector.load %arg3[%c0_4, %c0_5, %c0_6] : memref<2x32x96xf32, #tpu.memory_space<vmem>>, vector<1x32x96xf32>
    %7 = vector.shape_cast %6 : vector<1x32x96xf32> to vector<32x96xf32>
    %cst_7 = arith.constant dense<0.000000e+00> : vector<16x96xf32>
    %8 = tpu.matmul %0, %7, %cst_7 {dimension_numbers = #tpu.dot_dimension_numbers<[1], [0], [0], [1], [0, 0, 1, 1], [], []>} : vector<16x32xf32>, vector<32x96xf32>, vector<16x96xf32> -> vector<16x96xf32>
    %c0_8 = arith.constant 0 : index
    %c0_9 = arith.constant 0 : index
    %c0_10 = arith.constant 0 : index
    %9 = vector.load %arg4[%c0_8, %c0_9, %c0_10] : memref<2x1x96xf32, #tpu.memory_space<vmem>>, vector<1x1x96xf32>
    %10 = vector.shape_cast %9 : vector<1x1x96xf32> to vector<1x96xf32>
    %11 = vector.broadcast %10 : vector<1x96xf32> to vector<16x96xf32>
    %12 = arith.addf %8, %11 : vector<16x96xf32>
    %13 = vector.shape_cast %12 : vector<16x96xf32> to vector<2x8x96xf32>
    %14 = vector.extract_strided_slice %13 {offsets = [0, 0, 0], sizes = [2, 8, 8], strides = [1, 1, 1]} : vector<2x8x96xf32> to vector<2x8x8xf32>
    %15 = vector.extract_strided_slice %13 {offsets = [0, 0, 32], sizes = [2, 8, 8], strides = [1, 1, 1]} : vector<2x8x96xf32> to vector<2x8x8xf32>
    %16 = vector.extract_strided_slice %13 {offsets = [0, 0, 64], sizes = [2, 8, 8], strides = [1, 1, 1]} : vector<2x8x96xf32> to vector<2x8x8xf32>
    "tpu.trace_start"() <{level = 10 : i32, message = "bqd,bkd->bqk"}> : () -> ()
    %cst_11 = arith.constant dense<0.000000e+00> : vector<2x8x8xf32>
    %17 = tpu.matmul %14, %15, %cst_11 {dimension_numbers = #tpu.dot_dimension_numbers<[2], [2], [1], [1], [0, 0, 0, 1, 1, 1], [0], [0]>} : vector<2x8x8xf32>, vector<2x8x8xf32>, vector<2x8x8xf32> -> vector<2x8x8xf32>
    "tpu.trace_stop"() : () -> ()
    %cst_12 = arith.constant 0.353553385 : f32
    %18 = vector.broadcast %cst_12 : f32 to vector<2x8x8xf32>
    %19 = arith.mulf %17, %18 : vector<2x8x8xf32>
    %20 = arith.addf %19, %5 : vector<2x8x8xf32>
    %cst_13 = arith.constant dense<0xFF800000> : vector<2x8xf32>
    %21 = vector.multi_reduction <maximumf>, %20, %cst_13 [2] : vector<2x8x8xf32> to vector<2x8xf32>
    %22 = vector.shape_cast %21 : vector<2x8xf32> to vector<2x8x1xf32>
    %23 = vector.broadcast %22 : vector<2x8x1xf32> to vector<2x8x8xf32>
    %24 = arith.subf %20, %23 : vector<2x8x8xf32>
    %25 = math.exp %24 : vector<2x8x8xf32>
    %cst_14 = arith.constant dense<0.000000e+00> : vector<2x8xf32>
    %26 = vector.multi_reduction <add>, %25, %cst_14 [2] : vector<2x8x8xf32> to vector<2x8xf32>
    %27 = vector.shape_cast %26 : vector<2x8xf32> to vector<2x8x1xf32>
    %28 = vector.broadcast %27 : vector<2x8x1xf32> to vector<2x8x8xf32>
    %29 = arith.divf %25, %28 : vector<2x8x8xf32>
    "tpu.trace_start"() <{level = 10 : i32, message = "bqk,bkd->bqd"}> : () -> ()
    %cst_15 = arith.constant dense<0.000000e+00> : vector<2x8x8xf32>
    %30 = tpu.matmul %29, %16, %cst_15 {dimension_numbers = #tpu.dot_dimension_numbers<[2], [1], [1], [2], [0, 0, 0, 1, 1, 2], [0], [0]>} : vector<2x8x8xf32>, vector<2x8x8xf32>, vector<2x8x8xf32> -> vector<2x8x8xf32>
    "tpu.trace_stop"() : () -> ()
    %c0_16 = arith.constant 0 : index
    %c0_17 = arith.constant 0 : index
    %c0_18 = arith.constant 0 : index
    %31 = vector.load %arg11[%c0_16, %c0_17, %c0_18] : memref<2x8x32xf32, #tpu.memory_space<vmem>>, vector<2x8x8xf32>
    tpu.vector_store %arg11[%c0_16, %c0_17, %c0_18], %30 {strides = array<i32>} : memref<2x8x32xf32, #tpu.memory_space<vmem>>, vector<2x8x8xf32>,
    %32 = vector.extract_strided_slice %13 {offsets = [0, 0, 8], sizes = [2, 8, 8], strides = [1, 1, 1]} : vector<2x8x96xf32> to vector<2x8x8xf32>
    %33 = vector.extract_strided_slice %13 {offsets = [0, 0, 40], sizes = [2, 8, 8], strides = [1, 1, 1]} : vector<2x8x96xf32> to vector<2x8x8xf32>
    %34 = vector.extract_strided_slice %13 {offsets = [0, 0, 72], sizes = [2, 8, 8], strides = [1, 1, 1]} : vector<2x8x96xf32> to vector<2x8x8xf32>
    "tpu.trace_start"() <{level = 10 : i32, message = "bqd,bkd->bqk"}> : () -> ()
    %cst_19 = arith.constant dense<0.000000e+00> : vector<2x8x8xf32>
    %35 = tpu.matmul %32, %33, %cst_19 {dimension_numbers = #tpu.dot_dimension_numbers<[2], [2], [1], [1], [0, 0, 0, 1, 1, 1], [0], [0]>} : vector<2x8x8xf32>, vector<2x8x8xf32>, vector<2x8x8xf32> -> vector<2x8x8xf32>
    "tpu.trace_stop"() : () -> ()
    %cst_20 = arith.constant 0.353553385 : f32
    %36 = vector.broadcast %cst_20 : f32 to vector<2x8x8xf32>
    %37 = arith.mulf %35, %36 : vector<2x8x8xf32>
    %38 = arith.addf %37, %5 : vector<2x8x8xf32>
    %cst_21 = arith.constant dense<0xFF800000> : vector<2x8xf32>
    %39 = vector.multi_reduction <maximumf>, %38, %cst_21 [2] : vector<2x8x8xf32> to vector<2x8xf32>
    %40 = vector.shape_cast %39 : vector<2x8xf32> to vector<2x8x1xf32>
    %41 = vector.broadcast %40 : vector<2x8x1xf32> to vector<2x8x8xf32>
    %42 = arith.subf %38, %41 : vector<2x8x8xf32>
    %43 = math.exp %42 : vector<2x8x8xf32>
    %cst_22 = arith.constant dense<0.000000e+00> : vector<2x8xf32>
    %44 = vector.multi_reduction <add>, %43, %cst_22 [2] : vector<2x8x8xf32> to vector<2x8xf32>
    %45 = vector.shape_cast %44 : vector<2x8xf32> to vector<2x8x1xf32>
    %46 = vector.broadcast %45 : vector<2x8x1xf32> to vector<2x8x8xf32>
    %47 = arith.divf %43, %46 : vector<2x8x8xf32>
    "tpu.trace_start"() <{level = 10 : i32, message = "bqk,bkd->bqd"}> : () -> ()
    %cst_23 = arith.constant dense<0.000000e+00> : vector<2x8x8xf32>
    %48 = tpu.matmul %47, %34, %cst_23 {dimension_numbers = #tpu.dot_dimension_numbers<[2], [1], [1], [2], [0, 0, 0, 1, 1, 2], [0], [0]>} : vector<2x8x8xf32>, vector<2x8x8xf32>, vector<2x8x8xf32> -> vector<2x8x8xf32>
    "tpu.trace_stop"() : () -> ()
    %c0_24 = arith.constant 0 : index
    %c0_25 = arith.constant 0 : index
    %c8 = arith.constant 8 : index
    %49 = vector.load %arg11[%c0_24, %c0_25, %c8] : memref<2x8x32xf32, #tpu.memory_space<vmem>>, vector<2x8x8xf32>
    tpu.vector_store %arg11[%c0_24, %c0_25, %c8], %48 {strides = array<i32>} : memref<2x8x32xf32, #tpu.memory_space<vmem>>, vector<2x8x8xf32>,
    %50 = vector.extract_strided_slice %13 {offsets = [0, 0, 16], sizes = [2, 8, 8], strides = [1, 1, 1]} : vector<2x8x96xf32> to vector<2x8x8xf32>
    %51 = vector.extract_strided_slice %13 {offsets = [0, 0, 48], sizes = [2, 8, 8], strides = [1, 1, 1]} : vector<2x8x96xf32> to vector<2x8x8xf32>
    %52 = vector.extract_strided_slice %13 {offsets = [0, 0, 80], sizes = [2, 8, 8], strides = [1, 1, 1]} : vector<2x8x96xf32> to vector<2x8x8xf32>
    "tpu.trace_start"() <{level = 10 : i32, message = "bqd,bkd->bqk"}> : () -> ()
    %cst_26 = arith.constant dense<0.000000e+00> : vector<2x8x8xf32>
    %53 = tpu.matmul %50, %51, %cst_26 {dimension_numbers = #tpu.dot_dimension_numbers<[2], [2], [1], [1], [0, 0, 0, 1, 1, 1], [0], [0]>} : vector<2x8x8xf32>, vector<2x8x8xf32>, vector<2x8x8xf32> -> vector<2x8x8xf32>
    "tpu.trace_stop"() : () -> ()
    %cst_27 = arith.constant 0.353553385 : f32
    %54 = vector.broadcast %cst_27 : f32 to vector<2x8x8xf32>
    %55 = arith.mulf %53, %54 : vector<2x8x8xf32>
    %56 = arith.addf %55, %5 : vector<2x8x8xf32>
    %cst_28 = arith.constant dense<0xFF800000> : vector<2x8xf32>
    %57 = vector.multi_reduction <maximumf>, %56, %cst_28 [2] : vector<2x8x8xf32> to vector<2x8xf32>
    %58 = vector.shape_cast %57 : vector<2x8xf32> to vector<2x8x1xf32>
    %59 = vector.broadcast %58 : vector<2x8x1xf32> to vector<2x8x8xf32>
    %60 = arith.subf %56, %59 : vector<2x8x8xf32>
    %61 = math.exp %60 : vector<2x8x8xf32>
    %cst_29 = arith.constant dense<0.000000e+00> : vector<2x8xf32>
    %62 = vector.multi_reduction <add>, %61, %cst_29 [2] : vector<2x8x8xf32> to vector<2x8xf32>
    %63 = vector.shape_cast %62 : vector<2x8xf32> to vector<2x8x1xf32>
    %64 = vector.broadcast %63 : vector<2x8x1xf32> to vector<2x8x8xf32>
    %65 = arith.divf %61, %64 : vector<2x8x8xf32>
    "tpu.trace_start"() <{level = 10 : i32, message = "bqk,bkd->bqd"}> : () -> ()
    %cst_30 = arith.constant dense<0.000000e+00> : vector<2x8x8xf32>
    %66 = tpu.matmul %65, %52, %cst_30 {dimension_numbers = #tpu.dot_dimension_numbers<[2], [1], [1], [2], [0, 0, 0, 1, 1, 2], [0], [0]>} : vector<2x8x8xf32>, vector<2x8x8xf32>, vector<2x8x8xf32> -> vector<2x8x8xf32>
    "tpu.trace_stop"() : () -> ()
    %c0_31 = arith.constant 0 : index
    %c0_32 = arith.constant 0 : index
    %c16 = arith.constant 16 : index
    %67 = vector.load %arg11[%c0_31, %c0_32, %c16] : memref<2x8x32xf32, #tpu.memory_space<vmem>>, vector<2x8x8xf32>
    tpu.vector_store %arg11[%c0_31, %c0_32, %c16], %66 {strides = array<i32>} : memref<2x8x32xf32, #tpu.memory_space<vmem>>, vector<2x8x8xf32>,
    %68 = vector.extract_strided_slice %13 {offsets = [0, 0, 24], sizes = [2, 8, 8], strides = [1, 1, 1]} : vector<2x8x96xf32> to vector<2x8x8xf32>
    %69 = vector.extract_strided_slice %13 {offsets = [0, 0, 56], sizes = [2, 8, 8], strides = [1, 1, 1]} : vector<2x8x96xf32> to vector<2x8x8xf32>
    %70 = vector.extract_strided_slice %13 {offsets = [0, 0, 88], sizes = [2, 8, 8], strides = [1, 1, 1]} : vector<2x8x96xf32> to vector<2x8x8xf32>
    "tpu.trace_start"() <{level = 10 : i32, message = "bqd,bkd->bqk"}> : () -> ()
    %cst_33 = arith.constant dense<0.000000e+00> : vector<2x8x8xf32>
    %71 = tpu.matmul %68, %69, %cst_33 {dimension_numbers = #tpu.dot_dimension_numbers<[2], [2], [1], [1], [0, 0, 0, 1, 1, 1], [0], [0]>} : vector<2x8x8xf32>, vector<2x8x8xf32>, vector<2x8x8xf32> -> vector<2x8x8xf32>
    "tpu.trace_stop"() : () -> ()
    %cst_34 = arith.constant 0.353553385 : f32
    %72 = vector.broadcast %cst_34 : f32 to vector<2x8x8xf32>
    %73 = arith.mulf %71, %72 : vector<2x8x8xf32>
    %74 = arith.addf %73, %5 : vector<2x8x8xf32>
    %cst_35 = arith.constant dense<0xFF800000> : vector<2x8xf32>
    %75 = vector.multi_reduction <maximumf>, %74, %cst_35 [2] : vector<2x8x8xf32> to vector<2x8xf32>
    %76 = vector.shape_cast %75 : vector<2x8xf32> to vector<2x8x1xf32>
    %77 = vector.broadcast %76 : vector<2x8x1xf32> to vector<2x8x8xf32>
    %78 = arith.subf %74, %77 : vector<2x8x8xf32>
    %79 = math.exp %78 : vector<2x8x8xf32>
    %cst_36 = arith.constant dense<0.000000e+00> : vector<2x8xf32>
    %80 = vector.multi_reduction <add>, %79, %cst_36 [2] : vector<2x8x8xf32> to vector<2x8xf32>
    %81 = vector.shape_cast %80 : vector<2x8xf32> to vector<2x8x1xf32>
    %82 = vector.broadcast %81 : vector<2x8x1xf32> to vector<2x8x8xf32>
    %83 = arith.divf %79, %82 : vector<2x8x8xf32>
    "tpu.trace_start"() <{level = 10 : i32, message = "bqk,bkd->bqd"}> : () -> ()
    %cst_37 = arith.constant dense<0.000000e+00> : vector<2x8x8xf32>
    %84 = tpu.matmul %83, %70, %cst_37 {dimension_numbers = #tpu.dot_dimension_numbers<[2], [1], [1], [2], [0, 0, 0, 1, 1, 2], [0], [0]>} : vector<2x8x8xf32>, vector<2x8x8xf32>, vector<2x8x8xf32> -> vector<2x8x8xf32>
    "tpu.trace_stop"() : () -> ()
    %c0_38 = arith.constant 0 : index
    %c0_39 = arith.constant 0 : index
    %c24 = arith.constant 24 : index
    %85 = vector.load %arg11[%c0_38, %c0_39, %c24] : memref<2x8x32xf32, #tpu.memory_space<vmem>>, vector<2x8x8xf32>
    tpu.vector_store %arg11[%c0_38, %c0_39, %c24], %84 {strides = array<i32>} : memref<2x8x32xf32, #tpu.memory_space<vmem>>, vector<2x8x8xf32>,
    %c0_40 = arith.constant 0 : index
    %c0_41 = arith.constant 0 : index
    %c0_42 = arith.constant 0 : index
    %86 = vector.load %arg9[%c0_40, %c0_41, %c0_42] : memref<2x6x32xf32, #tpu.memory_space<vmem>>, vector<1x6x32xf32>
    %87 = vector.shape_cast %86 : vector<1x6x32xf32> to vector<6x32xf32>
    %c0_43 = arith.constant 0 : index
    %c0_44 = arith.constant 0 : index
    %c0_45 = arith.constant 0 : index
    %88 = vector.load %arg11[%c0_43, %c0_44, %c0_45] : memref<2x8x32xf32, #tpu.memory_space<vmem>>, vector<2x8x32xf32>
    %89 = vector.shape_cast %88 : vector<2x8x32xf32> to vector<16x32xf32>
    %c0_46 = arith.constant 0 : index
    %c0_47 = arith.constant 0 : index
    %c0_48 = arith.constant 0 : index
    %90 = vector.load %arg5[%c0_46, %c0_47, %c0_48] : memref<2x32x32xf32, #tpu.memory_space<vmem>>, vector<1x32x32xf32>
    %91 = vector.shape_cast %90 : vector<1x32x32xf32> to vector<32x32xf32>
    %cst_49 = arith.constant dense<0.000000e+00> : vector<16x32xf32>
    %92 = tpu.matmul %89, %91, %cst_49 {dimension_numbers = #tpu.dot_dimension_numbers<[1], [0], [0], [1], [0, 0, 1, 1], [], []>} : vector<16x32xf32>, vector<32x32xf32>, vector<16x32xf32> -> vector<16x32xf32>
    %93 = vector.extract_strided_slice %87 {offsets = [0, 0], sizes = [1, 32], strides = [1, 1]} : vector<6x32xf32> to vector<1x32xf32>
    %94 = vector.broadcast %93 : vector<1x32xf32> to vector<16x32xf32>
    %95 = arith.addf %92, %94 : vector<16x32xf32>
    %96 = arith.addf %0, %95 : vector<16x32xf32>
    %cst_50 = arith.constant dense<0.000000e+00> : vector<16xf32>
    %97 = vector.multi_reduction <add>, %96, %cst_50 [1] : vector<16x32xf32> to vector<16xf32>
    %98 = vector.shape_cast %97 : vector<16xf32> to vector<16x1xf32>
    %cst_51 = arith.constant 3.200000e+01 : f32
    %99 = vector.broadcast %cst_51 : f32 to vector<16x1xf32>
    %100 = arith.divf %98, %99 : vector<16x1xf32>
    %101 = vector.broadcast %100 : vector<16x1xf32> to vector<16x32xf32>
    %102 = arith.subf %96, %101 : vector<16x32xf32>
    %103 = arith.mulf %102, %102 : vector<16x32xf32>
    %cst_52 = arith.constant dense<0.000000e+00> : vector<16xf32>
    %104 = vector.multi_reduction <add>, %103, %cst_52 [1] : vector<16x32xf32> to vector<16xf32>
    %105 = vector.shape_cast %104 : vector<16xf32> to vector<16x1xf32>
    %cst_53 = arith.constant 3.200000e+01 : f32
    %106 = vector.broadcast %cst_53 : f32 to vector<16x1xf32>
    %107 = arith.divf %105, %106 : vector<16x1xf32>
    %108 = vector.broadcast %100 : vector<16x1xf32> to vector<16x32xf32>
    %109 = arith.subf %96, %108 : vector<16x32xf32>
    %cst_54 = arith.constant 9.99999974E-6 : f32
    %110 = vector.broadcast %cst_54 : f32 to vector<16x1xf32>
    %111 = arith.addf %107, %110 : vector<16x1xf32>
    %112 = math.rsqrt %111 : vector<16x1xf32>
    %113 = vector.broadcast %112 : vector<16x1xf32> to vector<16x32xf32>
    %114 = arith.mulf %109, %113 : vector<16x32xf32>
    %115 = vector.extract_strided_slice %87 {offsets = [2, 0], sizes = [1, 32], strides = [1, 1]} : vector<6x32xf32> to vector<1x32xf32>
    %116 = vector.broadcast %115 : vector<1x32xf32> to vector<16x32xf32>
    %117 = arith.mulf %114, %116 : vector<16x32xf32>
    %118 = vector.extract_strided_slice %87 {offsets = [3, 0], sizes = [1, 32], strides = [1, 1]} : vector<6x32xf32> to vector<1x32xf32>
    %119 = vector.broadcast %118 : vector<1x32xf32> to vector<16x32xf32>
    %120 = arith.addf %117, %119 : vector<16x32xf32>
    %c0_55 = arith.constant 0 : index
    %c0_56 = arith.constant 0 : index
    %c0_57 = arith.constant 0 : index
    %121 = vector.load %arg6[%c0_55, %c0_56, %c0_57] : memref<2x32x64xf32, #tpu.memory_space<vmem>>, vector<1x32x64xf32>
    %122 = vector.shape_cast %121 : vector<1x32x64xf32> to vector<32x64xf32>
    %cst_58 = arith.constant dense<0.000000e+00> : vector<16x64xf32>
    %123 = tpu.matmul %120, %122, %cst_58 {dimension_numbers = #tpu.dot_dimension_numbers<[1], [0], [0], [1], [0, 0, 1, 1], [], []>} : vector<16x32xf32>, vector<32x64xf32>, vector<16x64xf32> -> vector<16x64xf32>
    %c0_59 = arith.constant 0 : index
    %c0_60 = arith.constant 0 : index
    %c0_61 = arith.constant 0 : index
    %124 = vector.load %arg7[%c0_59, %c0_60, %c0_61] : memref<2x1x64xf32, #tpu.memory_space<vmem>>, vector<1x1x64xf32>
    %125 = vector.shape_cast %124 : vector<1x1x64xf32> to vector<1x64xf32>
    %126 = vector.broadcast %125 : vector<1x64xf32> to vector<16x64xf32>
    %127 = arith.addf %123, %126 : vector<16x64xf32>
    %cst_62 = arith.constant 0.000000e+00 : f32
    %128 = vector.broadcast %cst_62 : f32 to vector<16x64xf32>
    %129 = arith.maximumf %127, %128 : vector<16x64xf32>
    %c0_63 = arith.constant 0 : index
    %c0_64 = arith.constant 0 : index
    %c0_65 = arith.constant 0 : index
    %130 = vector.load %arg8[%c0_63, %c0_64, %c0_65] : memref<2x64x32xf32, #tpu.memory_space<vmem>>, vector<1x64x32xf32>
    %131 = vector.shape_cast %130 : vector<1x64x32xf32> to vector<64x32xf32>
    %cst_66 = arith.constant dense<0.000000e+00> : vector<16x32xf32>
    %132 = tpu.matmul %129, %131, %cst_66 {dimension_numbers = #tpu.dot_dimension_numbers<[1], [0], [0], [1], [0, 0, 1, 1], [], []>} : vector<16x64xf32>, vector<64x32xf32>, vector<16x32xf32> -> vector<16x32xf32>
    %133 = vector.extract_strided_slice %87 {offsets = [1, 0], sizes = [1, 32], strides = [1, 1]} : vector<6x32xf32> to vector<1x32xf32>
    %134 = vector.broadcast %133 : vector<1x32xf32> to vector<16x32xf32>
    %135 = arith.addf %132, %134 : vector<16x32xf32>
    %136 = arith.addf %120, %135 : vector<16x32xf32>
    %cst_67 = arith.constant dense<0.000000e+00> : vector<16xf32>
    %137 = vector.multi_reduction <add>, %136, %cst_67 [1] : vector<16x32xf32> to vector<16xf32>
    %138 = vector.shape_cast %137 : vector<16xf32> to vector<16x1xf32>
    %cst_68 = arith.constant 3.200000e+01 : f32
    %139 = vector.broadcast %cst_68 : f32 to vector<16x1xf32>
    %140 = arith.divf %138, %139 : vector<16x1xf32>
    %141 = vector.broadcast %140 : vector<16x1xf32> to vector<16x32xf32>
    %142 = arith.subf %136, %141 : vector<16x32xf32>
    %143 = arith.mulf %142, %142 : vector<16x32xf32>
    %cst_69 = arith.constant dense<0.000000e+00> : vector<16xf32>
    %144 = vector.multi_reduction <add>, %143, %cst_69 [1] : vector<16x32xf32> to vector<16xf32>
    %145 = vector.shape_cast %144 : vector<16xf32> to vector<16x1xf32>
    %cst_70 = arith.constant 3.200000e+01 : f32
    %146 = vector.broadcast %cst_70 : f32 to vector<16x1xf32>
    %147 = arith.divf %145, %146 : vector<16x1xf32>
    %148 = vector.broadcast %140 : vector<16x1xf32> to vector<16x32xf32>
    %149 = arith.subf %136, %148 : vector<16x32xf32>
    %cst_71 = arith.constant 9.99999974E-6 : f32
    %150 = vector.broadcast %cst_71 : f32 to vector<16x1xf32>
    %151 = arith.addf %147, %150 : vector<16x1xf32>
    %152 = math.rsqrt %151 : vector<16x1xf32>
    %153 = vector.broadcast %152 : vector<16x1xf32> to vector<16x32xf32>
    %154 = arith.mulf %149, %153 : vector<16x32xf32>
    %155 = vector.extract_strided_slice %87 {offsets = [4, 0], sizes = [1, 32], strides = [1, 1]} : vector<6x32xf32> to vector<1x32xf32>
    %156 = vector.broadcast %155 : vector<1x32xf32> to vector<16x32xf32>
    %157 = arith.mulf %154, %156 : vector<16x32xf32>
    %158 = vector.extract_strided_slice %87 {offsets = [5, 0], sizes = [1, 32], strides = [1, 1]} : vector<6x32xf32> to vector<1x32xf32>
    %159 = vector.broadcast %158 : vector<1x32xf32> to vector<16x32xf32>
    %160 = arith.addf %157, %159 : vector<16x32xf32>
    %c0_72 = arith.constant 0 : index
    %c0_73 = arith.constant 0 : index
    %c0_74 = arith.constant 0 : index
    %161 = vector.load %arg2[%c0_72, %c0_73, %c0_74] : memref<2x16x32xf32, #tpu.memory_space<vmem>>, vector<1x16x32xf32>
    %162 = vector.shape_cast %161 : vector<1x16x32xf32> to vector<16x32xf32>
    %163 = arith.addf %160, %162 : vector<16x32xf32>
    %c0_75 = arith.constant 0 : index
    %c0_76 = arith.constant 0 : index
    %c0_77 = arith.constant 0 : index
    %164 = vector.load %arg10[%c0_75, %c0_76, %c0_77] : memref<2x16x32xf32, #tpu.memory_space<vmem>>, vector<1x16x32xf32>
    %165 = vector.shape_cast %164 : vector<1x16x32xf32> to vector<16x32xf32>
    %166 = vector.shape_cast %163 : vector<16x32xf32> to vector<1x16x32xf32>
    tpu.vector_store %arg10[%c0_75, %c0_76, %c0_77], %166 {strides = array<i32>} : memref<2x16x32xf32, #tpu.memory_space<vmem>>, vector<1x16x32xf32>,
    %c1 = arith.constant 1 : index
    %c0_78 = arith.constant 0 : index
    %c0_79 = arith.constant 0 : index
    %167 = vector.load %arg3[%c1, %c0_78, %c0_79] : memref<2x32x96xf32, #tpu.memory_space<vmem>>, vector<1x32x96xf32>
    %168 = vector.shape_cast %167 : vector<1x32x96xf32> to vector<32x96xf32>
    %cst_80 = arith.constant dense<0.000000e+00> : vector<16x96xf32>
    %169 = tpu.matmul %163, %168, %cst_80 {dimension_numbers = #tpu.dot_dimension_numbers<[1], [0], [0], [1], [0, 0, 1, 1], [], []>} : vector<16x32xf32>, vector<32x96xf32>, vector<16x96xf32> -> vector<16x96xf32>
    %c1_81 = arith.constant 1 : index
    %c0_82 = arith.constant 0 : index
    %c0_83 = arith.constant 0 : index
    %170 = vector.load %arg4[%c1_81, %c0_82, %c0_83] : memref<2x1x96xf32, #tpu.memory_space<vmem>>, vector<1x1x96xf32>
    %171 = vector.shape_cast %170 : vector<1x1x96xf32> to vector<1x96xf32>
    %172 = vector.broadcast %171 : vector<1x96xf32> to vector<16x96xf32>
    %173 = arith.addf %169, %172 : vector<16x96xf32>
    %174 = vector.shape_cast %173 : vector<16x96xf32> to vector<2x8x96xf32>
    %175 = vector.extract_strided_slice %174 {offsets = [0, 0, 0], sizes = [2, 8, 8], strides = [1, 1, 1]} : vector<2x8x96xf32> to vector<2x8x8xf32>
    %176 = vector.extract_strided_slice %174 {offsets = [0, 0, 32], sizes = [2, 8, 8], strides = [1, 1, 1]} : vector<2x8x96xf32> to vector<2x8x8xf32>
    %177 = vector.extract_strided_slice %174 {offsets = [0, 0, 64], sizes = [2, 8, 8], strides = [1, 1, 1]} : vector<2x8x96xf32> to vector<2x8x8xf32>
    "tpu.trace_start"() <{level = 10 : i32, message = "bqd,bkd->bqk"}> : () -> ()
    %cst_84 = arith.constant dense<0.000000e+00> : vector<2x8x8xf32>
    %178 = tpu.matmul %175, %176, %cst_84 {dimension_numbers = #tpu.dot_dimension_numbers<[2], [2], [1], [1], [0, 0, 0, 1, 1, 1], [0], [0]>} : vector<2x8x8xf32>, vector<2x8x8xf32>, vector<2x8x8xf32> -> vector<2x8x8xf32>
    "tpu.trace_stop"() : () -> ()
    %cst_85 = arith.constant 0.353553385 : f32
    %179 = vector.broadcast %cst_85 : f32 to vector<2x8x8xf32>
    %180 = arith.mulf %178, %179 : vector<2x8x8xf32>
    %181 = arith.addf %180, %5 : vector<2x8x8xf32>
    %cst_86 = arith.constant dense<0xFF800000> : vector<2x8xf32>
    %182 = vector.multi_reduction <maximumf>, %181, %cst_86 [2] : vector<2x8x8xf32> to vector<2x8xf32>
    %183 = vector.shape_cast %182 : vector<2x8xf32> to vector<2x8x1xf32>
    %184 = vector.broadcast %183 : vector<2x8x1xf32> to vector<2x8x8xf32>
    %185 = arith.subf %181, %184 : vector<2x8x8xf32>
    %186 = math.exp %185 : vector<2x8x8xf32>
    %cst_87 = arith.constant dense<0.000000e+00> : vector<2x8xf32>
    %187 = vector.multi_reduction <add>, %186, %cst_87 [2] : vector<2x8x8xf32> to vector<2x8xf32>
    %188 = vector.shape_cast %187 : vector<2x8xf32> to vector<2x8x1xf32>
    %189 = vector.broadcast %188 : vector<2x8x1xf32> to vector<2x8x8xf32>
    %190 = arith.divf %186, %189 : vector<2x8x8xf32>
    "tpu.trace_start"() <{level = 10 : i32, message = "bqk,bkd->bqd"}> : () -> ()
    %cst_88 = arith.constant dense<0.000000e+00> : vector<2x8x8xf32>
    %191 = tpu.matmul %190, %177, %cst_88 {dimension_numbers = #tpu.dot_dimension_numbers<[2], [1], [1], [2], [0, 0, 0, 1, 1, 2], [0], [0]>} : vector<2x8x8xf32>, vector<2x8x8xf32>, vector<2x8x8xf32> -> vector<2x8x8xf32>
    "tpu.trace_stop"() : () -> ()
    %c0_89 = arith.constant 0 : index
    %c0_90 = arith.constant 0 : index
    %c0_91 = arith.constant 0 : index
    %192 = vector.load %arg11[%c0_89, %c0_90, %c0_91] : memref<2x8x32xf32, #tpu.memory_space<vmem>>, vector<2x8x8xf32>
    tpu.vector_store %arg11[%c0_89, %c0_90, %c0_91], %191 {strides = array<i32>} : memref<2x8x32xf32, #tpu.memory_space<vmem>>, vector<2x8x8xf32>,
    %193 = vector.extract_strided_slice %174 {offsets = [0, 0, 8], sizes = [2, 8, 8], strides = [1, 1, 1]} : vector<2x8x96xf32> to vector<2x8x8xf32>
    %194 = vector.extract_strided_slice %174 {offsets = [0, 0, 40], sizes = [2, 8, 8], strides = [1, 1, 1]} : vector<2x8x96xf32> to vector<2x8x8xf32>
    %195 = vector.extract_strided_slice %174 {offsets = [0, 0, 72], sizes = [2, 8, 8], strides = [1, 1, 1]} : vector<2x8x96xf32> to vector<2x8x8xf32>
    "tpu.trace_start"() <{level = 10 : i32, message = "bqd,bkd->bqk"}> : () -> ()
    %cst_92 = arith.constant dense<0.000000e+00> : vector<2x8x8xf32>
    %196 = tpu.matmul %193, %194, %cst_92 {dimension_numbers = #tpu.dot_dimension_numbers<[2], [2], [1], [1], [0, 0, 0, 1, 1, 1], [0], [0]>} : vector<2x8x8xf32>, vector<2x8x8xf32>, vector<2x8x8xf32> -> vector<2x8x8xf32>
    "tpu.trace_stop"() : () -> ()
    %cst_93 = arith.constant 0.353553385 : f32
    %197 = vector.broadcast %cst_93 : f32 to vector<2x8x8xf32>
    %198 = arith.mulf %196, %197 : vector<2x8x8xf32>
    %199 = arith.addf %198, %5 : vector<2x8x8xf32>
    %cst_94 = arith.constant dense<0xFF800000> : vector<2x8xf32>
    %200 = vector.multi_reduction <maximumf>, %199, %cst_94 [2] : vector<2x8x8xf32> to vector<2x8xf32>
    %201 = vector.shape_cast %200 : vector<2x8xf32> to vector<2x8x1xf32>
    %202 = vector.broadcast %201 : vector<2x8x1xf32> to vector<2x8x8xf32>
    %203 = arith.subf %199, %202 : vector<2x8x8xf32>
    %204 = math.exp %203 : vector<2x8x8xf32>
    %cst_95 = arith.constant dense<0.000000e+00> : vector<2x8xf32>
    %205 = vector.multi_reduction <add>, %204, %cst_95 [2] : vector<2x8x8xf32> to vector<2x8xf32>
    %206 = vector.shape_cast %205 : vector<2x8xf32> to vector<2x8x1xf32>
    %207 = vector.broadcast %206 : vector<2x8x1xf32> to vector<2x8x8xf32>
    %208 = arith.divf %204, %207 : vector<2x8x8xf32>
    "tpu.trace_start"() <{level = 10 : i32, message = "bqk,bkd->bqd"}> : () -> ()
    %cst_96 = arith.constant dense<0.000000e+00> : vector<2x8x8xf32>
    %209 = tpu.matmul %208, %195, %cst_96 {dimension_numbers = #tpu.dot_dimension_numbers<[2], [1], [1], [2], [0, 0, 0, 1, 1, 2], [0], [0]>} : vector<2x8x8xf32>, vector<2x8x8xf32>, vector<2x8x8xf32> -> vector<2x8x8xf32>
    "tpu.trace_stop"() : () -> ()
    %c0_97 = arith.constant 0 : index
    %c0_98 = arith.constant 0 : index
    %c8_99 = arith.constant 8 : index
    %210 = vector.load %arg11[%c0_97, %c0_98, %c8_99] : memref<2x8x32xf32, #tpu.memory_space<vmem>>, vector<2x8x8xf32>
    tpu.vector_store %arg11[%c0_97, %c0_98, %c8_99], %209 {strides = array<i32>} : memref<2x8x32xf32, #tpu.memory_space<vmem>>, vector<2x8x8xf32>,
    %211 = vector.extract_strided_slice %174 {offsets = [0, 0, 16], sizes = [2, 8, 8], strides = [1, 1, 1]} : vector<2x8x96xf32> to vector<2x8x8xf32>
    %212 = vector.extract_strided_slice %174 {offsets = [0, 0, 48], sizes = [2, 8, 8], strides = [1, 1, 1]} : vector<2x8x96xf32> to vector<2x8x8xf32>
    %213 = vector.extract_strided_slice %174 {offsets = [0, 0, 80], sizes = [2, 8, 8], strides = [1, 1, 1]} : vector<2x8x96xf32> to vector<2x8x8xf32>
    "tpu.trace_start"() <{level = 10 : i32, message = "bqd,bkd->bqk"}> : () -> ()
    %cst_100 = arith.constant dense<0.000000e+00> : vector<2x8x8xf32>
    %214 = tpu.matmul %211, %212, %cst_100 {dimension_numbers = #tpu.dot_dimension_numbers<[2], [2], [1], [1], [0, 0, 0, 1, 1, 1], [0], [0]>} : vector<2x8x8xf32>, vector<2x8x8xf32>, vector<2x8x8xf32> -> vector<2x8x8xf32>
    "tpu.trace_stop"() : () -> ()
    %cst_101 = arith.constant 0.353553385 : f32
    %215 = vector.broadcast %cst_101 : f32 to vector<2x8x8xf32>
    %216 = arith.mulf %214, %215 : vector<2x8x8xf32>
    %217 = arith.addf %216, %5 : vector<2x8x8xf32>
    %cst_102 = arith.constant dense<0xFF800000> : vector<2x8xf32>
    %218 = vector.multi_reduction <maximumf>, %217, %cst_102 [2] : vector<2x8x8xf32> to vector<2x8xf32>
    %219 = vector.shape_cast %218 : vector<2x8xf32> to vector<2x8x1xf32>
    %220 = vector.broadcast %219 : vector<2x8x1xf32> to vector<2x8x8xf32>
    %221 = arith.subf %217, %220 : vector<2x8x8xf32>
    %222 = math.exp %221 : vector<2x8x8xf32>
    %cst_103 = arith.constant dense<0.000000e+00> : vector<2x8xf32>
    %223 = vector.multi_reduction <add>, %222, %cst_103 [2] : vector<2x8x8xf32> to vector<2x8xf32>
    %224 = vector.shape_cast %223 : vector<2x8xf32> to vector<2x8x1xf32>
    %225 = vector.broadcast %224 : vector<2x8x1xf32> to vector<2x8x8xf32>
    %226 = arith.divf %222, %225 : vector<2x8x8xf32>
    "tpu.trace_start"() <{level = 10 : i32, message = "bqk,bkd->bqd"}> : () -> ()
    %cst_104 = arith.constant dense<0.000000e+00> : vector<2x8x8xf32>
    %227 = tpu.matmul %226, %213, %cst_104 {dimension_numbers = #tpu.dot_dimension_numbers<[2], [1], [1], [2], [0, 0, 0, 1, 1, 2], [0], [0]>} : vector<2x8x8xf32>, vector<2x8x8xf32>, vector<2x8x8xf32> -> vector<2x8x8xf32>
    "tpu.trace_stop"() : () -> ()
    %c0_105 = arith.constant 0 : index
    %c0_106 = arith.constant 0 : index
    %c16_107 = arith.constant 16 : index
    %228 = vector.load %arg11[%c0_105, %c0_106, %c16_107] : memref<2x8x32xf32, #tpu.memory_space<vmem>>, vector<2x8x8xf32>
    tpu.vector_store %arg11[%c0_105, %c0_106, %c16_107], %227 {strides = array<i32>} : memref<2x8x32xf32, #tpu.memory_space<vmem>>, vector<2x8x8xf32>,
    %229 = vector.extract_strided_slice %174 {offsets = [0, 0, 24], sizes = [2, 8, 8], strides = [1, 1, 1]} : vector<2x8x96xf32> to vector<2x8x8xf32>
    %230 = vector.extract_strided_slice %174 {offsets = [0, 0, 56], sizes = [2, 8, 8], strides = [1, 1, 1]} : vector<2x8x96xf32> to vector<2x8x8xf32>
    %231 = vector.extract_strided_slice %174 {offsets = [0, 0, 88], sizes = [2, 8, 8], strides = [1, 1, 1]} : vector<2x8x96xf32> to vector<2x8x8xf32>
    "tpu.trace_start"() <{level = 10 : i32, message = "bqd,bkd->bqk"}> : () -> ()
    %cst_108 = arith.constant dense<0.000000e+00> : vector<2x8x8xf32>
    %232 = tpu.matmul %229, %230, %cst_108 {dimension_numbers = #tpu.dot_dimension_numbers<[2], [2], [1], [1], [0, 0, 0, 1, 1, 1], [0], [0]>} : vector<2x8x8xf32>, vector<2x8x8xf32>, vector<2x8x8xf32> -> vector<2x8x8xf32>
    "tpu.trace_stop"() : () -> ()
    %cst_109 = arith.constant 0.353553385 : f32
    %233 = vector.broadcast %cst_109 : f32 to vector<2x8x8xf32>
    %234 = arith.mulf %232, %233 : vector<2x8x8xf32>
    %235 = arith.addf %234, %5 : vector<2x8x8xf32>
    %cst_110 = arith.constant dense<0xFF800000> : vector<2x8xf32>
    %236 = vector.multi_reduction <maximumf>, %235, %cst_110 [2] : vector<2x8x8xf32> to vector<2x8xf32>
    %237 = vector.shape_cast %236 : vector<2x8xf32> to vector<2x8x1xf32>
    %238 = vector.broadcast %237 : vector<2x8x1xf32> to vector<2x8x8xf32>
    %239 = arith.subf %235, %238 : vector<2x8x8xf32>
    %240 = math.exp %239 : vector<2x8x8xf32>
    %cst_111 = arith.constant dense<0.000000e+00> : vector<2x8xf32>
    %241 = vector.multi_reduction <add>, %240, %cst_111 [2] : vector<2x8x8xf32> to vector<2x8xf32>
    %242 = vector.shape_cast %241 : vector<2x8xf32> to vector<2x8x1xf32>
    %243 = vector.broadcast %242 : vector<2x8x1xf32> to vector<2x8x8xf32>
    %244 = arith.divf %240, %243 : vector<2x8x8xf32>
    "tpu.trace_start"() <{level = 10 : i32, message = "bqk,bkd->bqd"}> : () -> ()
    %cst_112 = arith.constant dense<0.000000e+00> : vector<2x8x8xf32>
    %245 = tpu.matmul %244, %231, %cst_112 {dimension_numbers = #tpu.dot_dimension_numbers<[2], [1], [1], [2], [0, 0, 0, 1, 1, 2], [0], [0]>} : vector<2x8x8xf32>, vector<2x8x8xf32>, vector<2x8x8xf32> -> vector<2x8x8xf32>
    "tpu.trace_stop"() : () -> ()
    %c0_113 = arith.constant 0 : index
    %c0_114 = arith.constant 0 : index
    %c24_115 = arith.constant 24 : index
    %246 = vector.load %arg11[%c0_113, %c0_114, %c24_115] : memref<2x8x32xf32, #tpu.memory_space<vmem>>, vector<2x8x8xf32>
    tpu.vector_store %arg11[%c0_113, %c0_114, %c24_115], %245 {strides = array<i32>} : memref<2x8x32xf32, #tpu.memory_space<vmem>>, vector<2x8x8xf32>,
    %c1_116 = arith.constant 1 : index
    %c0_117 = arith.constant 0 : index
    %c0_118 = arith.constant 0 : index
    %247 = vector.load %arg9[%c1_116, %c0_117, %c0_118] : memref<2x6x32xf32, #tpu.memory_space<vmem>>, vector<1x6x32xf32>
    %248 = vector.shape_cast %247 : vector<1x6x32xf32> to vector<6x32xf32>
    %c0_119 = arith.constant 0 : index
    %c0_120 = arith.constant 0 : index
    %c0_121 = arith.constant 0 : index
    %249 = vector.load %arg11[%c0_119, %c0_120, %c0_121] : memref<2x8x32xf32, #tpu.memory_space<vmem>>, vector<2x8x32xf32>
    %250 = vector.shape_cast %249 : vector<2x8x32xf32> to vector<16x32xf32>
    %c1_122 = arith.constant 1 : index
    %c0_123 = arith.constant 0 : index
    %c0_124 = arith.constant 0 : index
    %251 = vector.load %arg5[%c1_122, %c0_123, %c0_124] : memref<2x32x32xf32, #tpu.memory_space<vmem>>, vector<1x32x32xf32>
    %252 = vector.shape_cast %251 : vector<1x32x32xf32> to vector<32x32xf32>
    %cst_125 = arith.constant dense<0.000000e+00> : vector<16x32xf32>
    %253 = tpu.matmul %250, %252, %cst_125 {dimension_numbers = #tpu.dot_dimension_numbers<[1], [0], [0], [1], [0, 0, 1, 1], [], []>} : vector<16x32xf32>, vector<32x32xf32>, vector<16x32xf32> -> vector<16x32xf32>
    %254 = vector.extract_strided_slice %248 {offsets = [0, 0], sizes = [1, 32], strides = [1, 1]} : vector<6x32xf32> to vector<1x32xf32>
    %255 = vector.broadcast %254 : vector<1x32xf32> to vector<16x32xf32>
    %256 = arith.addf %253, %255 : vector<16x32xf32>
    %257 = arith.addf %163, %256 : vector<16x32xf32>
    %cst_126 = arith.constant dense<0.000000e+00> : vector<16xf32>
    %258 = vector.multi_reduction <add>, %257, %cst_126 [1] : vector<16x32xf32> to vector<16xf32>
    %259 = vector.shape_cast %258 : vector<16xf32> to vector<16x1xf32>
    %cst_127 = arith.constant 3.200000e+01 : f32
    %260 = vector.broadcast %cst_127 : f32 to vector<16x1xf32>
    %261 = arith.divf %259, %260 : vector<16x1xf32>
    %262 = vector.broadcast %261 : vector<16x1xf32> to vector<16x32xf32>
    %263 = arith.subf %257, %262 : vector<16x32xf32>
    %264 = arith.mulf %263, %263 : vector<16x32xf32>
    %cst_128 = arith.constant dense<0.000000e+00> : vector<16xf32>
    %265 = vector.multi_reduction <add>, %264, %cst_128 [1] : vector<16x32xf32> to vector<16xf32>
    %266 = vector.shape_cast %265 : vector<16xf32> to vector<16x1xf32>
    %cst_129 = arith.constant 3.200000e+01 : f32
    %267 = vector.broadcast %cst_129 : f32 to vector<16x1xf32>
    %268 = arith.divf %266, %267 : vector<16x1xf32>
    %269 = vector.broadcast %261 : vector<16x1xf32> to vector<16x32xf32>
    %270 = arith.subf %257, %269 : vector<16x32xf32>
    %cst_130 = arith.constant 9.99999974E-6 : f32
    %271 = vector.broadcast %cst_130 : f32 to vector<16x1xf32>
    %272 = arith.addf %268, %271 : vector<16x1xf32>
    %273 = math.rsqrt %272 : vector<16x1xf32>
    %274 = vector.broadcast %273 : vector<16x1xf32> to vector<16x32xf32>
    %275 = arith.mulf %270, %274 : vector<16x32xf32>
    %276 = vector.extract_strided_slice %248 {offsets = [2, 0], sizes = [1, 32], strides = [1, 1]} : vector<6x32xf32> to vector<1x32xf32>
    %277 = vector.broadcast %276 : vector<1x32xf32> to vector<16x32xf32>
    %278 = arith.mulf %275, %277 : vector<16x32xf32>
    %279 = vector.extract_strided_slice %248 {offsets = [3, 0], sizes = [1, 32], strides = [1, 1]} : vector<6x32xf32> to vector<1x32xf32>
    %280 = vector.broadcast %279 : vector<1x32xf32> to vector<16x32xf32>
    %281 = arith.addf %278, %280 : vector<16x32xf32>
    %c1_131 = arith.constant 1 : index
    %c0_132 = arith.constant 0 : index
    %c0_133 = arith.constant 0 : index
    %282 = vector.load %arg6[%c1_131, %c0_132, %c0_133] : memref<2x32x64xf32, #tpu.memory_space<vmem>>, vector<1x32x64xf32>
    %283 = vector.shape_cast %282 : vector<1x32x64xf32> to vector<32x64xf32>
    %cst_134 = arith.constant dense<0.000000e+00> : vector<16x64xf32>
    %284 = tpu.matmul %281, %283, %cst_134 {dimension_numbers = #tpu.dot_dimension_numbers<[1], [0], [0], [1], [0, 0, 1, 1], [], []>} : vector<16x32xf32>, vector<32x64xf32>, vector<16x64xf32> -> vector<16x64xf32>
    %c1_135 = arith.constant 1 : index
    %c0_136 = arith.constant 0 : index
    %c0_137 = arith.constant 0 : index
    %285 = vector.load %arg7[%c1_135, %c0_136, %c0_137] : memref<2x1x64xf32, #tpu.memory_space<vmem>>, vector<1x1x64xf32>
    %286 = vector.shape_cast %285 : vector<1x1x64xf32> to vector<1x64xf32>
    %287 = vector.broadcast %286 : vector<1x64xf32> to vector<16x64xf32>
    %288 = arith.addf %284, %287 : vector<16x64xf32>
    %cst_138 = arith.constant 0.000000e+00 : f32
    %289 = vector.broadcast %cst_138 : f32 to vector<16x64xf32>
    %290 = arith.maximumf %288, %289 : vector<16x64xf32>
    %c1_139 = arith.constant 1 : index
    %c0_140 = arith.constant 0 : index
    %c0_141 = arith.constant 0 : index
    %291 = vector.load %arg8[%c1_139, %c0_140, %c0_141] : memref<2x64x32xf32, #tpu.memory_space<vmem>>, vector<1x64x32xf32>
    %292 = vector.shape_cast %291 : vector<1x64x32xf32> to vector<64x32xf32>
    %cst_142 = arith.constant dense<0.000000e+00> : vector<16x32xf32>
    %293 = tpu.matmul %290, %292, %cst_142 {dimension_numbers = #tpu.dot_dimension_numbers<[1], [0], [0], [1], [0, 0, 1, 1], [], []>} : vector<16x64xf32>, vector<64x32xf32>, vector<16x32xf32> -> vector<16x32xf32>
    %294 = vector.extract_strided_slice %248 {offsets = [1, 0], sizes = [1, 32], strides = [1, 1]} : vector<6x32xf32> to vector<1x32xf32>
    %295 = vector.broadcast %294 : vector<1x32xf32> to vector<16x32xf32>
    %296 = arith.addf %293, %295 : vector<16x32xf32>
    %297 = arith.addf %281, %296 : vector<16x32xf32>
    %cst_143 = arith.constant dense<0.000000e+00> : vector<16xf32>
    %298 = vector.multi_reduction <add>, %297, %cst_143 [1] : vector<16x32xf32> to vector<16xf32>
    %299 = vector.shape_cast %298 : vector<16xf32> to vector<16x1xf32>
    %cst_144 = arith.constant 3.200000e+01 : f32
    %300 = vector.broadcast %cst_144 : f32 to vector<16x1xf32>
    %301 = arith.divf %299, %300 : vector<16x1xf32>
    %302 = vector.broadcast %301 : vector<16x1xf32> to vector<16x32xf32>
    %303 = arith.subf %297, %302 : vector<16x32xf32>
    %304 = arith.mulf %303, %303 : vector<16x32xf32>
    %cst_145 = arith.constant dense<0.000000e+00> : vector<16xf32>
    %305 = vector.multi_reduction <add>, %304, %cst_145 [1] : vector<16x32xf32> to vector<16xf32>
    %306 = vector.shape_cast %305 : vector<16xf32> to vector<16x1xf32>
    %cst_146 = arith.constant 3.200000e+01 : f32
    %307 = vector.broadcast %cst_146 : f32 to vector<16x1xf32>
    %308 = arith.divf %306, %307 : vector<16x1xf32>
    %309 = vector.broadcast %301 : vector<16x1xf32> to vector<16x32xf32>
    %310 = arith.subf %297, %309 : vector<16x32xf32>
    %cst_147 = arith.constant 9.99999974E-6 : f32
    %311 = vector.broadcast %cst_147 : f32 to vector<16x1xf32>
    %312 = arith.addf %308, %311 : vector<16x1xf32>
    %313 = math.rsqrt %312 : vector<16x1xf32>
    %314 = vector.broadcast %313 : vector<16x1xf32> to vector<16x32xf32>
    %315 = arith.mulf %310, %314 : vector<16x32xf32>
    %316 = vector.extract_strided_slice %248 {offsets = [4, 0], sizes = [1, 32], strides = [1, 1]} : vector<6x32xf32> to vector<1x32xf32>
    %317 = vector.broadcast %316 : vector<1x32xf32> to vector<16x32xf32>
    %318 = arith.mulf %315, %317 : vector<16x32xf32>
    %319 = vector.extract_strided_slice %248 {offsets = [5, 0], sizes = [1, 32], strides = [1, 1]} : vector<6x32xf32> to vector<1x32xf32>
    %320 = vector.broadcast %319 : vector<1x32xf32> to vector<16x32xf32>
    %321 = arith.addf %318, %320 : vector<16x32xf32>
    %c1_148 = arith.constant 1 : index
    %c0_149 = arith.constant 0 : index
    %c0_150 = arith.constant 0 : index
    %322 = vector.load %arg2[%c1_148, %c0_149, %c0_150] : memref<2x16x32xf32, #tpu.memory_space<vmem>>, vector<1x16x32xf32>
    %323 = vector.shape_cast %322 : vector<1x16x32xf32> to vector<16x32xf32>
    %324 = arith.addf %321, %323 : vector<16x32xf32>
    %c1_151 = arith.constant 1 : index
    %c0_152 = arith.constant 0 : index
    %c0_153 = arith.constant 0 : index
    %325 = vector.load %arg10[%c1_151, %c0_152, %c0_153] : memref<2x16x32xf32, #tpu.memory_space<vmem>>, vector<1x16x32xf32>
    %326 = vector.shape_cast %325 : vector<1x16x32xf32> to vector<16x32xf32>
    %327 = vector.shape_cast %324 : vector<16x32xf32> to vector<1x16x32xf32>
    tpu.vector_store %arg10[%c1_151, %c0_152, %c0_153], %327 {strides = array<i32>} : memref<2x16x32xf32, #tpu.memory_space<vmem>>, vector<1x16x32xf32>,
    return
  }
}

</mosaic_0001>

<llo_original>
// kernel: tpu_custom_call.1
$region0: #{tpu_custom_call.1}
  #allocation0 [shape = 'u32[]', space=smem, size = 0x4, offset = 0x4, fixed_abs, tag = 'smem constant byte address 0x4 - core index']
  #allocation1 [shape = 'u32[144,128]{1,0:T(1,128)}', space=vmem, size = 0x12000, scoped, tag = 'internal scratch']
  #allocation2 [shape = 'f32[2,8,32]{2,1,0:T(8,128)}', space=vmem, size = 0x2000, scoped, tag = 'scratch operand']
  %s0 = inlined_call_operand.hbm [shape: f32[16,32], index: 0, kind: input, shape index: {}]
  %s1 = inlined_call_operand.vmem [shape: f32[2,1,8], index: 1, kind: input, shape index: {}]
  %s2 = inlined_call_operand.vmem [shape: f32[2,16,32], index: 2, kind: input, shape index: {}]
  %s3 = inlined_call_operand.vmem [shape: f32[2,32,96], index: 3, kind: input, shape index: {}]
  %s4 = inlined_call_operand.vmem [shape: f32[2,1,96], index: 4, kind: input, shape index: {}]
  %s5 = inlined_call_operand.vmem [shape: f32[2,32,32], index: 5, kind: input, shape index: {}]
  %s6 = inlined_call_operand.vmem [shape: f32[2,32,64], index: 6, kind: input, shape index: {}]
  %s7 = inlined_call_operand.vmem [shape: f32[2,1,64], index: 7, kind: input, shape index: {}]
  %s8 = inlined_call_operand.vmem [shape: f32[2,64,32], index: 8, kind: input, shape index: {}]
  %s9 = inlined_call_operand.vmem [shape: f32[2,6,32], index: 9, kind: input, shape index: {}]
  %s10 = inlined_call_operand.hbm [shape: f32[2,16,32], index: 10, kind: output, shape index: {}]
  %s11 = sld [smem:[#allocation0]]
  $region54: #{tpu_custom_call.1} parent=0
    _
  %s13 = ssub.s32 1, %s11
  %s14 = scalar_select 0, %s13, %s11
  $region1: #{tpu_custom_call.1} parent=0
    #allocation3 [shape = 'u8[8192]{0}', space=vmem, size = 0x2000, scoped, tag = 'input window, operand 0, single buffered']
    #allocation4 [shape = 's32[1]{0}', space=sflag, size = 0x4, scoped, tag = 'scoped memory for tpu_custom_call.1']
    #allocation5 [shape = 's32[1]{0}', space=sflag, size = 0x4, scoped, tag = 'scoped memory for tpu_custom_call.1']
    #allocation6 [shape = 'u8[16384]{0}', space=vmem, size = 0x4000, scoped, tag = 'output window, operand 0, single buffered']
    %15 = vsyncpa [#allocation4], 0
    %16 = vsyncpa [#allocation5], 0
    // Predicated region
    $region2: #{tpu_custom_call.1} parent=1 // pred_check
      _
    $region3: #{tpu_custom_call.1} parent=1 // pred_check_branch
      %18 = sbr.rel (0) target = $region5
    $region4: #{tpu_custom_call.1} parent=1 // pred_region
      %s20 = ssub.s32 256, 256
      %21 = vsyncadd [#allocation4], %s20
      %s22 = sshll.u32 [#allocation3], 4
      %s23 = int_to_ptr.vmem [resolvable:$true] %s22
      %28 = dma.hbm_to_vmem [thread:$0]  %s0, 256, %s23, [#allocation4], 128, 128, 8
    $region5: #{tpu_custom_call.1} parent=1 // pred_fallthru
      _
    // Predicated region
    $region6: #{tpu_custom_call.1} parent=1 // pred_check
      _
    $region7: #{tpu_custom_call.1} parent=1 // pred_check_branch
      %30 = sbr.rel (0) target = $region9
    $region8: #{tpu_custom_call.1} parent=1 // pred_region
      _
    $region9: #{tpu_custom_call.1} parent=1 // pred_fallthru
      _
    // Predicated region
    $region10: #{tpu_custom_call.1} parent=1 // pred_check
      _
    $region11: #{tpu_custom_call.1} parent=1 // pred_check_branch
      %32 = sbr.rel (0) target = $region13
    $region12: #{tpu_custom_call.1} parent=1 // pred_region
      _
    $region13: #{tpu_custom_call.1} parent=1 // pred_fallthru
      _
    // Predicated region
    $region14: #{tpu_custom_call.1} parent=1 // pred_check
      _
    $region15: #{tpu_custom_call.1} parent=1 // pred_check_branch
      %34 = sbr.rel (0) target = $region17
    $region16: #{tpu_custom_call.1} parent=1 // pred_region
      _
    $region17: #{tpu_custom_call.1} parent=1 // pred_fallthru
      _
    // Predicated region
    $region18: #{tpu_custom_call.1} parent=1 // pred_check
      _
    $region19: #{tpu_custom_call.1} parent=1 // pred_check_branch
      %36 = sbr.rel (0) target = $region21
    $region20: #{tpu_custom_call.1} parent=1 // pred_region
      _
    $region21: #{tpu_custom_call.1} parent=1 // pred_fallthru
      _
    // Predicated region
    $region22: #{tpu_custom_call.1} parent=1 // pred_check
      _
    $region23: #{tpu_custom_call.1} parent=1 // pred_check_branch
      %38 = sbr.rel (0) target = $region25
    $region24: #{tpu_custom_call.1} parent=1 // pred_region
      _
    $region25: #{tpu_custom_call.1} parent=1 // pred_fallthru
      _
    // Predicated region
    $region26: #{tpu_custom_call.1} parent=1 // pred_check
      _
    $region27: #{tpu_custom_call.1} parent=1 // pred_check_branch
      %40 = sbr.rel (0) target = $region29
    $region28: #{tpu_custom_call.1} parent=1 // pred_region
      _
    $region29: #{tpu_custom_call.1} parent=1 // pred_fallthru
      _
    // Predicated region
    $region30: #{tpu_custom_call.1} parent=1 // pred_check
      _
    $region31: #{tpu_custom_call.1} parent=1 // pred_check_branch
      %42 = sbr.rel (0) target = $region33
    $region32: #{tpu_custom_call.1} parent=1 // pred_region
      _
    $region33: #{tpu_custom_call.1} parent=1 // pred_fallthru
      _
    // Predicated region
    $region34: #{tpu_custom_call.1} parent=1 // pred_check
      _
    $region35: #{tpu_custom_call.1} parent=1 // pred_check_branch
      %44 = sbr.rel (0) target = $region37
    $region36: #{tpu_custom_call.1} parent=1 // pred_region
      _
    $region37: #{tpu_custom_call.1} parent=1 // pred_fallthru
      _
    // Predicated region
    $region38: #{tpu_custom_call.1} parent=1 // pred_check
      _
    $region39: #{tpu_custom_call.1} parent=1 // pred_check_branch
      %46 = sbr.rel (0) target = $region41
    $region40: #{tpu_custom_call.1} parent=1 // pred_region
      _
    $region41: #{tpu_custom_call.1} parent=1 // pred_fallthru
      _
    // Predicated region
    $region42: #{tpu_custom_call.1} parent=1 // pred_check
      _
    $region43: #{tpu_custom_call.1} parent=1 // pred_check_branch
      %48 = sbr.rel (0) target = $region45
    $region44: #{tpu_custom_call.1} parent=1 // pred_region
      %49 = dma.done [#allocation4], 256
    $region45: #{tpu_custom_call.1} parent=1 // pred_fallthru
      _
    %v50 = vld [vmem:[#allocation3] sm:$0xff]
    %v51 = vld [vmem:[#allocation3 + $0x8] sm:$0xff]
    %v52 = vld [vmem:[%s1] sm:$0x1]
    %v53 = vld [vmem:[%s1 + $0x1] sm:$0x1]
    %v54 = vmul.f32 %v52, -1e+30
    %v55 = vmul.f32 %v53, -1e+30
    %v58 = vlaneseq
    %v59 = vshrl.u32 %v58, 7
    %v60 = vsub.s32 0, %v59
    %v61 = vrot.slane %v54, %v60
    %v62 = vlaneseq
    %v63 = vshrl.u32 %v62, 7
    %v64 = vsub.s32 0, %v63
    %v65 = vrot.slane %v55, %v64
    %v68 = vld [vmem:[%s3] sm:$0xff]
    %v69 = vld [vmem:[%s3 + $0x8] sm:$0xff]
    %v70 = vld [vmem:[%s3 + $0x10] sm:$0xff]
    %v71 = vld [vmem:[%s3 + $0x18] sm:$0xff]
    %v72 = vld [vmem:[%s4] sm:$0x1]
    %v74 = vlaneseq
    %v75 = vshrl.u32 %v74, 7
    %v76 = vsub.s32 0, %v75
    %v77 = vrot.slane %v72, %v76
    %vm79 = vcmask 261120
    %v81 = vsel %vm79, %v50, 0
    %v84 = vsel %vm79, %v51, 0
    %86 = vmatprep.subr.mxu0 0.0
    %87 = vmatpush1.msra.mxu0 %v68
    %88 = vmatprep.subr.mxu0 0.0
    %89 = vmatpush1.msra.mxu0 %v69
    %90 = vmatprep.subr.mxu0 0.0
    %91 = vmatpush1.msra.mxu0 %v70
    %92 = vmatprep.subr.mxu0 0.0
    %93 = vmatpush1.msra.mxu0 %v71
    %94 = vmatprep.subr.mxu0 0.0
    %95 = vmatpush1.msra.mxu0 0.0
    %96 = vmatprep.subr.mxu0 0.0
    %97 = vmatpush1.msra.mxu0 0.0
    %98 = vmatprep.subr.mxu0 0.0
    %99 = vmatpush1.msra.mxu0 0.0
    %100 = vmatprep.subr.mxu0 0.0
    %101 = vmatpush1.msra.mxu0 0.0
    %102 = vmatprep.subr.mxu0 0.0
    %103 = vmatpush1.msra.mxu0 0.0
    %104 = vmatprep.subr.mxu0 0.0
    %105 = vmatpush1.msra.mxu0 0.0
    %106 = vmatprep.subr.mxu0 0.0
    %107 = vmatpush1.msra.mxu0 0.0
    %108 = vmatprep.subr.mxu0 0.0
    %109 = vmatpush1.msra.mxu0 0.0
    %110 = vmatprep.subr.mxu0 0.0
    %111 = vmatpush1.msra.mxu0 0.0
    %112 = vmatprep.subr.mxu0 0.0
    %113 = vmatpush1.msra.mxu0 0.0
    %114 = vmatprep.subr.mxu0 0.0
    %115 = vmatpush1.msra.mxu0 0.0
    %116 = vmatprep.subr.mxu0 0.0
    %117 = vmatpush1.msra.mxu0 0.0
    %118 = vmatprep.subr.mxu0 0.0
    %119 = vmatpush1.msra.mxu0 0.0
    %120 = vmatprep.subr.mxu0 0.0
    %121 = vmatpush1.msra.mxu0 0.0
    %122 = vmatprep.subr.mxu0 0.0
    %123 = vmatpush1.msra.mxu0 0.0
    %124 = vmatprep.subr.mxu0 0.0
    %125 = vmatpush1.msra.mxu0 0.0
    %126 = vmatprep.subr.mxu0 0.0
    %127 = vmatpush1.msra.mxu0 0.0
    %128 = vmatprep.subr.mxu0 0.0
    %129 = vmatpush1.msra.mxu0 0.0
    %130 = vmatprep.subr.mxu0 0.0
    %131 = vmatpush1.msra.mxu0 0.0
    %132 = vmatprep.subr.mxu0 0.0
    %133 = vmatpush1.msra.mxu0 0.0
    %134 = vmatprep.subr.mxu0 0.0
    %135 = vmatpush1.msra.mxu0 0.0
    %136 = vmatprep.subr.mxu0 0.0
    %137 = vmatpush1.msra.mxu0 0.0
    %138 = vmatprep.subr.mxu0 0.0
    %139 = vmatpush1.msra.mxu0 0.0
    %140 = vmatprep.subr.mxu0 0.0
    %141 = vmatpush1.msra.mxu0 0.0
    %142 = vmatprep.subr.mxu0 0.0
    %143 = vmatpush1.msra.mxu0 0.0
    %144 = vmatprep.subr.mxu0 0.0
    %145 = vmatpush1.msra.mxu0 0.0
    %146 = vmatprep.subr.mxu0 0.0
    %147 = vmatpush1.msra.mxu0 0.0
    %148 = vmatprep.subr.mxu0 0.0
    %149 = vmatpush1.msra.mxu0 0.0
    %150 = vmatprep.mubr.f32.mxu0 0.0
    %151 = vmatmul.mubr.f32.gmra.mrb[0].mxu0 %v81
    %v152 = vpop.f32.mrb[0].mxu0
    %v153 = vadd.f32 %v77, %v152
    %v154 = vpop.f32.mrb[0].mxu0
    %155 = vmatprep.mubr.f32.mxu0 0.0
    %156 = vmatmul.mubr.f32.gmra.mrb[0].mxu0 %v84
    %v157 = vpop.f32.mrb[0].mxu0
    %v158 = vadd.f32 %v77, %v157
    %v159 = vpop.f32.mrb[0].mxu0
    %160 = vdwg.mxu0
    %162 = vrot.lane.b32.xlu0 %v153, 96
    %v163 = vpop.permute.xlu0 %162
    %vm164 = vcmask 64512
    %v165 = vsel %vm164, %v153, 0
    %v167 = vsel %vm164, %v163, 0
    %169 = vmatprep.subr.mxu0 0.0
    %170 = vmatpush1.xpose.msra.mxu0 %v167
    %171 = vmatprep.subr.mxu0 0.0
    %172 = vmatpush1.xpose.msra.mxu0 0.0
    %173 = vmatprep.subr.mxu0 0.0
    %174 = vmatpush1.xpose.msra.mxu0 0.0
    %175 = vmatprep.subr.mxu0 0.0
    %176 = vmatpush1.xpose.msra.mxu0 0.0
    %177 = vmatprep.subr.mxu0 0.0
    %178 = vmatpush1.xpose.msra.mxu0 0.0
    %179 = vmatprep.subr.mxu0 0.0
    %180 = vmatpush1.xpose.msra.mxu0 0.0
    %181 = vmatprep.subr.mxu0 0.0
    %182 = vmatpush1.xpose.msra.mxu0 0.0
    %183 = vmatprep.subr.mxu0 0.0
    %184 = vmatpush1.xpose.msra.mxu0 0.0
    %185 = vmatprep.subr.mxu0 0.0
    %186 = vmatpush1.xpose.msra.mxu0 0.0
    %187 = vmatprep.subr.mxu0 0.0
    %188 = vmatpush1.xpose.msra.mxu0 0.0
    %189 = vmatprep.subr.mxu0 0.0
    %190 = vmatpush1.xpose.msra.mxu0 0.0
    %191 = vmatprep.subr.mxu0 0.0
    %192 = vmatpush1.xpose.msra.mxu0 0.0
    %193 = vmatprep.subr.mxu0 0.0
    %194 = vmatpush1.xpose.msra.mxu0 0.0
    %195 = vmatprep.subr.mxu0 0.0
    %196 = vmatpush1.xpose.msra.mxu0 0.0
    %197 = vmatprep.subr.mxu0 0.0
    %198 = vmatpush1.xpose.msra.mxu0 0.0
    %199 = vmatprep.subr.mxu0 0.0
    %200 = vmatpush1.xpose.msra.mxu0 0.0
    %201 = vmatprep.subr.mxu0 0.0
    %202 = vmatpush1.xpose.msra.mxu0 0.0
    %203 = vmatprep.subr.mxu0 0.0
    %204 = vmatpush1.xpose.msra.mxu0 0.0
    %205 = vmatprep.subr.mxu0 0.0
    %206 = vmatpush1.xpose.msra.mxu0 0.0
    %207 = vmatprep.subr.mxu0 0.0
    %208 = vmatpush1.xpose.msra.mxu0 0.0
    %209 = vmatprep.subr.mxu0 0.0
    %210 = vmatpush1.xpose.msra.mxu0 0.0
    %211 = vmatprep.subr.mxu0 0.0
    %212 = vmatpush1.xpose.msra.mxu0 0.0
    %213 = vmatprep.subr.mxu0 0.0
    %214 = vmatpush1.xpose.msra.mxu0 0.0
    %215 = vmatprep.subr.mxu0 0.0
    %216 = vmatpush1.xpose.msra.mxu0 0.0
    %217 = vmatprep.subr.mxu0 0.0
    %218 = vmatpush1.xpose.msra.mxu0 0.0
    %219 = vmatprep.subr.mxu0 0.0
    %220 = vmatpush1.xpose.msra.mxu0 0.0
    %221 = vmatprep.subr.mxu0 0.0
    %222 = vmatpush1.xpose.msra.mxu0 0.0
    %223 = vmatprep.subr.mxu0 0.0
    %224 = vmatpush1.xpose.msra.mxu0 0.0
    %225 = vmatprep.subr.mxu0 0.0
    %226 = vmatpush1.xpose.msra.mxu0 0.0
    %227 = vmatprep.subr.mxu0 0.0
    %228 = vmatpush1.xpose.msra.mxu0 0.0
    %229 = vmatprep.subr.mxu0 0.0
    %230 = vmatpush1.xpose.msra.mxu0 0.0
    %231 = vmatprep.subr.mxu0 0.0
    %232 = vmatpush1.xpose.msra.mxu0 0.0
    %233 = vmatprep.mubr.f32.mxu0 0.0
    %234 = vmatmul.mubr.f32.gmra.mrb[0].mxu0 %v165
    %v235 = vpop.f32.mrb[0].mxu0
    %v236 = vadd.f32 0.0, %v235
    %v237 = vpop.f32.mrb[0].mxu0
    %238 = vdwg.mxu0
    %240 = vrot.lane.b32.xlu0 %v158, 96
    %v241 = vpop.permute.xlu0 %240
    %v242 = vsel %vm164, %v158, 0
    %v244 = vsel %vm164, %v241, 0
    %246 = vmatprep.subr.mxu0 0.0
    %247 = vmatpush1.xpose.msra.mxu0 %v244
    %248 = vmatprep.subr.mxu0 0.0
    %249 = vmatpush1.xpose.msra.mxu0 0.0
    %250 = vmatprep.subr.mxu0 0.0
    %251 = vmatpush1.xpose.msra.mxu0 0.0
    %252 = vmatprep.subr.mxu0 0.0
    %253 = vmatpush1.xpose.msra.mxu0 0.0
    %254 = vmatprep.subr.mxu0 0.0
    %255 = vmatpush1.xpose.msra.mxu0 0.0
    %256 = vmatprep.subr.mxu0 0.0
    %257 = vmatpush1.xpose.msra.mxu0 0.0
    %258 = vmatprep.subr.mxu0 0.0
    %259 = vmatpush1.xpose.msra.mxu0 0.0
    %260 = vmatprep.subr.mxu0 0.0
    %261 = vmatpush1.xpose.msra.mxu0 0.0
    %262 = vmatprep.subr.mxu0 0.0
    %263 = vmatpush1.xpose.msra.mxu0 0.0
    %264 = vmatprep.subr.mxu0 0.0
    %265 = vmatpush1.xpose.msra.mxu0 0.0
    %266 = vmatprep.subr.mxu0 0.0
    %267 = vmatpush1.xpose.msra.mxu0 0.0
    %268 = vmatprep.subr.mxu0 0.0
    %269 = vmatpush1.xpose.msra.mxu0 0.0
    %270 = vmatprep.subr.mxu0 0.0
    %271 = vmatpush1.xpose.msra.mxu0 0.0
    %272 = vmatprep.subr.mxu0 0.0
    %273 = vmatpush1.xpose.msra.mxu0 0.0
    %274 = vmatprep.subr.mxu0 0.0
    %275 = vmatpush1.xpose.msra.mxu0 0.0
    %276 = vmatprep.subr.mxu0 0.0
    %277 = vmatpush1.xpose.msra.mxu0 0.0
    %278 = vmatprep.subr.mxu0 0.0
    %279 = vmatpush1.xpose.msra.mxu0 0.0
    %280 = vmatprep.subr.mxu0 0.0
    %281 = vmatpush1.xpose.msra.mxu0 0.0
    %282 = vmatprep.subr.mxu0 0.0
    %283 = vmatpush1.xpose.msra.mxu0 0.0
    %284 = vmatprep.subr.mxu0 0.0
    %285 = vmatpush1.xpose.msra.mxu0 0.0
    %286 = vmatprep.subr.mxu0 0.0
    %287 = vmatpush1.xpose.msra.mxu0 0.0
    %288 = vmatprep.subr.mxu0 0.0
    %289 = vmatpush1.xpose.msra.mxu0 0.0
    %290 = vmatprep.subr.mxu0 0.0
    %291 = vmatpush1.xpose.msra.mxu0 0.0
    %292 = vmatprep.subr.mxu0 0.0
    %293 = vmatpush1.xpose.msra.mxu0 0.0
    %294 = vmatprep.subr.mxu0 0.0
    %295 = vmatpush1.xpose.msra.mxu0 0.0
    %296 = vmatprep.subr.mxu0 0.0
    %297 = vmatpush1.xpose.msra.mxu0 0.0
    %298 = vmatprep.subr.mxu0 0.0
    %299 = vmatpush1.xpose.msra.mxu0 0.0
    %300 = vmatprep.subr.mxu0 0.0
    %301 = vmatpush1.xpose.msra.mxu0 0.0
    %302 = vmatprep.subr.mxu0 0.0
    %303 = vmatpush1.xpose.msra.mxu0 0.0
    %304 = vmatprep.subr.mxu0 0.0
    %305 = vmatpush1.xpose.msra.mxu0 0.0
    %306 = vmatprep.subr.mxu0 0.0
    %307 = vmatpush1.xpose.msra.mxu0 0.0
    %308 = vmatprep.subr.mxu0 0.0
    %309 = vmatpush1.xpose.msra.mxu0 0.0
    %310 = vmatprep.mubr.f32.mxu0 0.0
    %311 = vmatmul.mubr.f32.gmra.mrb[0].mxu0 %v242
    %v312 = vpop.f32.mrb[0].mxu0
    %v313 = vadd.f32 0.0, %v312
    %v314 = vpop.f32.mrb[0].mxu0
    %315 = vdwg.mxu0
    %v316 = vmul.f32 %v236, 0.35355338
    %v317 = vmul.f32 %v313, 0.35355338
    %v318 = vadd.f32 %v316, %v61
    %v319 = vadd.f32 %v317, %v65
    %v320 = vsel %vm164, %v318, -inf
    %321 = vmax.xlane.f32.xlu0 %v320
    %v322 = vpop.xlane.xlu0 %321
    %v323 = vsel %vm164, %v319, -inf
    %324 = vmax.xlane.f32.xlu0 %v323
    %v325 = vpop.xlane.xlu0 %324
    %v326 = vsub.f32 %v318, %v322
    %v327 = vsub.f32 %v319, %v325
    %v328 = vmul.f32 %v326, 1.442695
    %v329 = vpow.pop %v328
    %v330 = vmul.f32 %v327, 1.442695
    %v331 = vpow.pop %v330
    %v332 = vsel %vm164, %v329, 0.0
    %333 = vadd.xlane.f32.xlu0 %v332
    %v334 = vpop.xlane.xlu0 %333
    %v335 = vsel %vm164, %v331, 0.0
    %336 = vadd.xlane.f32.xlu0 %v335
    %v337 = vpop.xlane.xlu0 %336
    %v338 = vrcp.pop %v334
    %v339 = vmul.f32 %v329, %v338
    %v340 = vrcp.pop %v337
    %v341 = vmul.f32 %v331, %v340
    %342 = vrot.lane.b32.xlu0 %v153, 64
    %v343 = vpop.permute.xlu0 %342
    %v346 = vsel %vm164, %v339, 0
    %348 = vmatprep.subr.mxu0 0.0
    %349 = vmatpush1.msra.mxu0 %v343
    %350 = vmatprep.subr.mxu0 0.0
    %351 = vmatpush1.msra.mxu0 0.0
    %352 = vmatprep.subr.mxu0 0.0
    %353 = vmatpush1.msra.mxu0 0.0
    %354 = vmatprep.subr.mxu0 0.0
    %355 = vmatpush1.msra.mxu0 0.0
    %356 = vmatprep.subr.mxu0 0.0
    %357 = vmatpush1.msra.mxu0 0.0
    %358 = vmatprep.subr.mxu0 0.0
    %359 = vmatpush1.msra.mxu0 0.0
    %360 = vmatprep.subr.mxu0 0.0
    %361 = vmatpush1.msra.mxu0 0.0
    %362 = vmatprep.subr.mxu0 0.0
    %363 = vmatpush1.msra.mxu0 0.0
    %364 = vmatprep.subr.mxu0 0.0
    %365 = vmatpush1.msra.mxu0 0.0
    %366 = vmatprep.subr.mxu0 0.0
    %367 = vmatpush1.msra.mxu0 0.0
    %368 = vmatprep.subr.mxu0 0.0
    %369 = vmatpush1.msra.mxu0 0.0
    %370 = vmatprep.subr.mxu0 0.0
    %371 = vmatpush1.msra.mxu0 0.0
    %372 = vmatprep.subr.mxu0 0.0
    %373 = vmatpush1.msra.mxu0 0.0
    %374 = vmatprep.subr.mxu0 0.0
    %375 = vmatpush1.msra.mxu0 0.0
    %376 = vmatprep.subr.mxu0 0.0
    %377 = vmatpush1.msra.mxu0 0.0
    %378 = vmatprep.subr.mxu0 0.0
    %379 = vmatpush1.msra.mxu0 0.0
    %380 = vmatprep.subr.mxu0 0.0
    %381 = vmatpush1.msra.mxu0 0.0
    %382 = vmatprep.subr.mxu0 0.0
    %383 = vmatpush1.msra.mxu0 0.0
    %384 = vmatprep.subr.mxu0 0.0
    %385 = vmatpush1.msra.mxu0 0.0
    %386 = vmatprep.subr.mxu0 0.0
    %387 = vmatpush1.msra.mxu0 0.0
    %388 = vmatprep.subr.mxu0 0.0
    %389 = vmatpush1.msra.mxu0 0.0
    %390 = vmatprep.subr.mxu0 0.0
    %391 = vmatpush1.msra.mxu0 0.0
    %392 = vmatprep.subr.mxu0 0.0
    %393 = vmatpush1.msra.mxu0 0.0
    %394 = vmatprep.subr.mxu0 0.0
    %395 = vmatpush1.msra.mxu0 0.0
    %396 = vmatprep.subr.mxu0 0.0
    %397 = vmatpush1.msra.mxu0 0.0
    %398 = vmatprep.subr.mxu0 0.0
    %399 = vmatpush1.msra.mxu0 0.0
    %400 = vmatprep.subr.mxu0 0.0
    %401 = vmatpush1.msra.mxu0 0.0
    %402 = vmatprep.subr.mxu0 0.0
    %403 = vmatpush1.msra.mxu0 0.0
    %404 = vmatprep.subr.mxu0 0.0
    %405 = vmatpush1.msra.mxu0 0.0
    %406 = vmatprep.subr.mxu0 0.0
    %407 = vmatpush1.msra.mxu0 0.0
    %408 = vmatprep.subr.mxu0 0.0
    %409 = vmatpush1.msra.mxu0 0.0
    %410 = vmatprep.subr.mxu0 0.0
    %411 = vmatpush1.msra.mxu0 0.0
    %412 = vmatprep.mubr.f32.mxu0 0.0
    %413 = vmatmul.mubr.f32.gmra.mrb[0].mxu0 %v346
    %v414 = vpop.f32.mrb[0].mxu0
    %v415 = vadd.f32 0.0, %v414
    %v416 = vpop.f32.mrb[0].mxu0
    %417 = vdwg.mxu0
    %418 = vrot.lane.b32.xlu0 %v158, 64
    %v419 = vpop.permute.xlu0 %418
    %v422 = vsel %vm164, %v341, 0
    %424 = vmatprep.subr.mxu0 0.0
    %425 = vmatpush1.msra.mxu0 %v419
    %426 = vmatprep.subr.mxu0 0.0
    %427 = vmatpush1.msra.mxu0 0.0
    %428 = vmatprep.subr.mxu0 0.0
    %429 = vmatpush1.msra.mxu0 0.0
    %430 = vmatprep.subr.mxu0 0.0
    %431 = vmatpush1.msra.mxu0 0.0
    %432 = vmatprep.subr.mxu0 0.0
    %433 = vmatpush1.msra.mxu0 0.0
    %434 = vmatprep.subr.mxu0 0.0
    %435 = vmatpush1.msra.mxu0 0.0
    %436 = vmatprep.subr.mxu0 0.0
    %437 = vmatpush1.msra.mxu0 0.0
    %438 = vmatprep.subr.mxu0 0.0
    %439 = vmatpush1.msra.mxu0 0.0
    %440 = vmatprep.subr.mxu0 0.0
    %441 = vmatpush1.msra.mxu0 0.0
    %442 = vmatprep.subr.mxu0 0.0
    %443 = vmatpush1.msra.mxu0 0.0
    %444 = vmatprep.subr.mxu0 0.0
    %445 = vmatpush1.msra.mxu0 0.0
    %446 = vmatprep.subr.mxu0 0.0
    %447 = vmatpush1.msra.mxu0 0.0
    %448 = vmatprep.subr.mxu0 0.0
    %449 = vmatpush1.msra.mxu0 0.0
    %450 = vmatprep.subr.mxu0 0.0
    %451 = vmatpush1.msra.mxu0 0.0
    %452 = vmatprep.subr.mxu0 0.0
    %453 = vmatpush1.msra.mxu0 0.0
    %454 = vmatprep.subr.mxu0 0.0
    %455 = vmatpush1.msra.mxu0 0.0
    %456 = vmatprep.subr.mxu0 0.0
    %457 = vmatpush1.msra.mxu0 0.0
    %458 = vmatprep.subr.mxu0 0.0
    %459 = vmatpush1.msra.mxu0 0.0
    %460 = vmatprep.subr.mxu0 0.0
    %461 = vmatpush1.msra.mxu0 0.0
    %462 = vmatprep.subr.mxu0 0.0
    %463 = vmatpush1.msra.mxu0 0.0
    %464 = vmatprep.subr.mxu0 0.0
    %465 = vmatpush1.msra.mxu0 0.0
    %466 = vmatprep.subr.mxu0 0.0
    %467 = vmatpush1.msra.mxu0 0.0
    %468 = vmatprep.subr.mxu0 0.0
    %469 = vmatpush1.msra.mxu0 0.0
    %470 = vmatprep.subr.mxu0 0.0
    %471 = vmatpush1.msra.mxu0 0.0
    %472 = vmatprep.subr.mxu0 0.0
    %473 = vmatpush1.msra.mxu0 0.0
    %474 = vmatprep.subr.mxu0 0.0
    %475 = vmatpush1.msra.mxu0 0.0
    %476 = vmatprep.subr.mxu0 0.0
    %477 = vmatpush1.msra.mxu0 0.0
    %478 = vmatprep.subr.mxu0 0.0
    %479 = vmatpush1.msra.mxu0 0.0
    %480 = vmatprep.subr.mxu0 0.0
    %481 = vmatpush1.msra.mxu0 0.0
    %482 = vmatprep.subr.mxu0 0.0
    %483 = vmatpush1.msra.mxu0 0.0
    %484 = vmatprep.subr.mxu0 0.0
    %485 = vmatpush1.msra.mxu0 0.0
    %486 = vmatprep.subr.mxu0 0.0
    %487 = vmatpush1.msra.mxu0 0.0
    %488 = vmatprep.mubr.f32.mxu0 0.0
    %489 = vmatmul.mubr.f32.gmra.mrb[0].mxu0 %v422
    %v490 = vpop.f32.mrb[0].mxu0
    %v491 = vadd.f32 0.0, %v490
    %v492 = vpop.f32.mrb[0].mxu0
    %493 = vdwg.mxu0
    %494 = vst.msk [vmem:[#allocation2] sm:$0xff] %vm164, %v415
    %495 = vst.msk [vmem:[#allocation2 + $0x8] sm:$0xff] %vm164, %v491
    %496 = vrot.lane.b32.xlu0 %v153, 120
    %v497 = vpop.permute.xlu0 %496
    %498 = vrot.lane.b32.xlu0 %v153, 88
    %v499 = vpop.permute.xlu0 %498
    %v500 = vsel %vm164, %v497, 0
    %v502 = vsel %vm164, %v499, 0
    %504 = vmatprep.subr.mxu0 0.0
    %505 = vmatpush1.xpose.msra.mxu0 %v502
    %506 = vmatprep.subr.mxu0 0.0
    %507 = vmatpush1.xpose.msra.mxu0 0.0
    %508 = vmatprep.subr.mxu0 0.0
    %509 = vmatpush1.xpose.msra.mxu0 0.0
    %510 = vmatprep.subr.mxu0 0.0
    %511 = vmatpush1.xpose.msra.mxu0 0.0
    %512 = vmatprep.subr.mxu0 0.0
    %513 = vmatpush1.xpose.msra.mxu0 0.0
    %514 = vmatprep.subr.mxu0 0.0
    %515 = vmatpush1.xpose.msra.mxu0 0.0
    %516 = vmatprep.subr.mxu0 0.0
    %517 = vmatpush1.xpose.msra.mxu0 0.0
    %518 = vmatprep.subr.mxu0 0.0
    %519 = vmatpush1.xpose.msra.mxu0 0.0
    %520 = vmatprep.subr.mxu0 0.0
    %521 = vmatpush1.xpose.msra.mxu0 0.0
    %522 = vmatprep.subr.mxu0 0.0
    %523 = vmatpush1.xpose.msra.mxu0 0.0
    %524 = vmatprep.subr.mxu0 0.0
    %525 = vmatpush1.xpose.msra.mxu0 0.0
    %526 = vmatprep.subr.mxu0 0.0
    %527 = vmatpush1.xpose.msra.mxu0 0.0
    %528 = vmatprep.subr.mxu0 0.0
    %529 = vmatpush1.xpose.msra.mxu0 0.0
    %530 = vmatprep.subr.mxu0 0.0
    %531 = vmatpush1.xpose.msra.mxu0 0.0
    %532 = vmatprep.subr.mxu0 0.0
    %533 = vmatpush1.xpose.msra.mxu0 0.0
    %534 = vmatprep.subr.mxu0 0.0
    %535 = vmatpush1.xpose.msra.mxu0 0.0
    %536 = vmatprep.subr.mxu0 0.0
    %537 = vmatpush1.xpose.msra.mxu0 0.0
    %538 = vmatprep.subr.mxu0 0.0
    %539 = vmatpush1.xpose.msra.mxu0 0.0
    %540 = vmatprep.subr.mxu0 0.0
    %541 = vmatpush1.xpose.msra.mxu0 0.0
    %542 = vmatprep.subr.mxu0 0.0
    %543 = vmatpush1.xpose.msra.mxu0 0.0
    %544 = vmatprep.subr.mxu0 0.0
    %545 = vmatpush1.xpose.msra.mxu0 0.0
    %546 = vmatprep.subr.mxu0 0.0
    %547 = vmatpush1.xpose.msra.mxu0 0.0
    %548 = vmatprep.subr.mxu0 0.0
    %549 = vmatpush1.xpose.msra.mxu0 0.0
    %550 = vmatprep.subr.mxu0 0.0
    %551 = vmatpush1.xpose.msra.mxu0 0.0
    %552 = vmatprep.subr.mxu0 0.0
    %553 = vmatpush1.xpose.msra.mxu0 0.0
    %554 = vmatprep.subr.mxu0 0.0
    %555 = vmatpush1.xpose.msra.mxu0 0.0
    %556 = vmatprep.subr.mxu0 0.0
    %557 = vmatpush1.xpose.msra.mxu0 0.0
    %558 = vmatprep.subr.mxu0 0.0
    %559 = vmatpush1.xpose.msra.mxu0 0.0
    %560 = vmatprep.subr.mxu0 0.0
    %561 = vmatpush1.xpose.msra.mxu0 0.0
    %562 = vmatprep.subr.mxu0 0.0
    %563 = vmatpush1.xpose.msra.mxu0 0.0
    %564 = vmatprep.subr.mxu0 0.0
    %565 = vmatpush1.xpose.msra.mxu0 0.0
    %566 = vmatprep.subr.mxu0 0.0
    %567 = vmatpush1.xpose.msra.mxu0 0.0
    %568 = vmatprep.mubr.f32.mxu0 0.0
    %569 = vmatmul.mubr.f32.gmra.mrb[0].mxu0 %v500
    %v570 = vpop.f32.mrb[0].mxu0
    %v571 = vadd.f32 0.0, %v570
    %v572 = vpop.f32.mrb[0].mxu0
    %573 = vdwg.mxu0
    %574 = vrot.lane.b32.xlu0 %v158, 120
    %v575 = vpop.permute.xlu0 %574
    %576 = vrot.lane.b32.xlu0 %v158, 88
    %v577 = vpop.permute.xlu0 %576
    %v578 = vsel %vm164, %v575, 0
    %v580 = vsel %vm164, %v577, 0
    %582 = vmatprep.subr.mxu0 0.0
    %583 = vmatpush1.xpose.msra.mxu0 %v580
    %584 = vmatprep.subr.mxu0 0.0
    %585 = vmatpush1.xpose.msra.mxu0 0.0
    %586 = vmatprep.subr.mxu0 0.0
    %587 = vmatpush1.xpose.msra.mxu0 0.0
    %588 = vmatprep.subr.mxu0 0.0
    %589 = vmatpush1.xpose.msra.mxu0 0.0
    %590 = vmatprep.subr.mxu0 0.0
    %591 = vmatpush1.xpose.msra.mxu0 0.0
    %592 = vmatprep.subr.mxu0 0.0
    %593 = vmatpush1.xpose.msra.mxu0 0.0
    %594 = vmatprep.subr.mxu0 0.0
    %595 = vmatpush1.xpose.msra.mxu0 0.0
    %596 = vmatprep.subr.mxu0 0.0
    %597 = vmatpush1.xpose.msra.mxu0 0.0
    %598 = vmatprep.subr.mxu0 0.0
    %599 = vmatpush1.xpose.msra.mxu0 0.0
    %600 = vmatprep.subr.mxu0 0.0
    %601 = vmatpush1.xpose.msra.mxu0 0.0
    %602 = vmatprep.subr.mxu0 0.0
    %603 = vmatpush1.xpose.msra.mxu0 0.0
    %604 = vmatprep.subr.mxu0 0.0
    %605 = vmatpush1.xpose.msra.mxu0 0.0
    %606 = vmatprep.subr.mxu0 0.0
    %607 = vmatpush1.xpose.msra.mxu0 0.0
    %608 = vmatprep.subr.mxu0 0.0
    %609 = vmatpush1.xpose.msra.mxu0 0.0
    %610 = vmatprep.subr.mxu0 0.0
    %611 = vmatpush1.xpose.msra.mxu0 0.0
    %612 = vmatprep.subr.mxu0 0.0
    %613 = vmatpush1.xpose.msra.mxu0 0.0
    %614 = vmatprep.subr.mxu0 0.0
    %615 = vmatpush1.xpose.msra.mxu0 0.0
    %616 = vmatprep.subr.mxu0 0.0
    %617 = vmatpush1.xpose.msra.mxu0 0.0
    %618 = vmatprep.subr.mxu0 0.0
    %619 = vmatpush1.xpose.msra.mxu0 0.0
    %620 = vmatprep.subr.mxu0 0.0
    %621 = vmatpush1.xpose.msra.mxu0 0.0
    %622 = vmatprep.subr.mxu0 0.0
    %623 = vmatpush1.xpose.msra.mxu0 0.0
    %624 = vmatprep.subr.mxu0 0.0
    %625 = vmatpush1.xpose.msra.mxu0 0.0
    %626 = vmatprep.subr.mxu0 0.0
    %627 = vmatpush1.xpose.msra.mxu0 0.0
    %628 = vmatprep.subr.mxu0 0.0
    %629 = vmatpush1.xpose.msra.mxu0 0.0
    %630 = vmatprep.subr.mxu0 0.0
    %631 = vmatpush1.xpose.msra.mxu0 0.0
    %632 = vmatprep.subr.mxu0 0.0
    %633 = vmatpush1.xpose.msra.mxu0 0.0
    %634 = vmatprep.subr.mxu0 0.0
    %635 = vmatpush1.xpose.msra.mxu0 0.0
    %636 = vmatprep.subr.mxu0 0.0
    %637 = vmatpush1.xpose.msra.mxu0 0.0
    %638 = vmatprep.subr.mxu0 0.0
    %639 = vmatpush1.xpose.msra.mxu0 0.0
    %640 = vmatprep.subr.mxu0 0.0
    %641 = vmatpush1.xpose.msra.mxu0 0.0
    %642 = vmatprep.subr.mxu0 0.0
    %643 = vmatpush1.xpose.msra.mxu0 0.0
    %644 = vmatprep.subr.mxu0 0.0
    %645 = vmatpush1.xpose.msra.mxu0 0.0
    %646 = vmatprep.mubr.f32.mxu0 0.0
    %647 = vmatmul.mubr.f32.gmra.mrb[0].mxu0 %v578
    %v648 = vpop.f32.mrb[0].mxu0
    %v649 = vadd.f32 0.0, %v648
    %v650 = vpop.f32.mrb[0].mxu0
    %651 = vdwg.mxu0
    %v652 = vmul.f32 %v571, 0.35355338
    %v653 = vmul.f32 %v649, 0.35355338
    %v654 = vadd.f32 %v652, %v61
    %v655 = vadd.f32 %v653, %v65
    %v656 = vsel %vm164, %v654, -inf
    %657 = vmax.xlane.f32.xlu0 %v656
    %v658 = vpop.xlane.xlu0 %657
    %v659 = vsel %vm164, %v655, -inf
    %660 = vmax.xlane.f32.xlu0 %v659
    %v661 = vpop.xlane.xlu0 %660
    %v662 = vsub.f32 %v654, %v658
    %v663 = vsub.f32 %v655, %v661
    %v664 = vmul.f32 %v662, 1.442695
    %v665 = vpow.pop %v664
    %v666 = vmul.f32 %v663, 1.442695
    %v667 = vpow.pop %v666
    %v668 = vsel %vm164, %v665, 0.0
    %669 = vadd.xlane.f32.xlu0 %v668
    %v670 = vpop.xlane.xlu0 %669
    %v671 = vsel %vm164, %v667, 0.0
    %672 = vadd.xlane.f32.xlu0 %v671
    %v673 = vpop.xlane.xlu0 %672
    %v674 = vrcp.pop %v670
    %v675 = vmul.f32 %v665, %v674
    %v676 = vrcp.pop %v673
    %v677 = vmul.f32 %v667, %v676
    %678 = vrot.lane.b32.xlu0 %v153, 56
    %v679 = vpop.permute.xlu0 %678
    %v682 = vsel %vm164, %v675, 0
    %684 = vmatprep.subr.mxu0 0.0
    %685 = vmatpush1.msra.mxu0 %v679
    %686 = vmatprep.subr.mxu0 0.0
    %687 = vmatpush1.msra.mxu0 0.0
    %688 = vmatprep.subr.mxu0 0.0
    %689 = vmatpush1.msra.mxu0 0.0
    %690 = vmatprep.subr.mxu0 0.0
    %691 = vmatpush1.msra.mxu0 0.0
    %692 = vmatprep.subr.mxu0 0.0
    %693 = vmatpush1.msra.mxu0 0.0
    %694 = vmatprep.subr.mxu0 0.0
    %695 = vmatpush1.msra.mxu0 0.0
    %696 = vmatprep.subr.mxu0 0.0
    %697 = vmatpush1.msra.mxu0 0.0
    %698 = vmatprep.subr.mxu0 0.0
    %699 = vmatpush1.msra.mxu0 0.0
    %700 = vmatprep.subr.mxu0 0.0
    %701 = vmatpush1.msra.mxu0 0.0
    %702 = vmatprep.subr.mxu0 0.0
    %703 = vmatpush1.msra.mxu0 0.0
    %704 = vmatprep.subr.mxu0 0.0
    %705 = vmatpush1.msra.mxu0 0.0
    %706 = vmatprep.subr.mxu0 0.0
    %707 = vmatpush1.msra.mxu0 0.0
    %708 = vmatprep.subr.mxu0 0.0
    %709 = vmatpush1.msra.mxu0 0.0
    %710 = vmatprep.subr.mxu0 0.0
    %711 = vmatpush1.msra.mxu0 0.0
    %712 = vmatprep.subr.mxu0 0.0
    %713 = vmatpush1.msra.mxu0 0.0
    %714 = vmatprep.subr.mxu0 0.0
    %715 = vmatpush1.msra.mxu0 0.0
    %716 = vmatprep.subr.mxu0 0.0
    %717 = vmatpush1.msra.mxu0 0.0
    %718 = vmatprep.subr.mxu0 0.0
    %719 = vmatpush1.msra.mxu0 0.0
    %720 = vmatprep.subr.mxu0 0.0
    %721 = vmatpush1.msra.mxu0 0.0
    %722 = vmatprep.subr.mxu0 0.0
    %723 = vmatpush1.msra.mxu0 0.0
    %724 = vmatprep.subr.mxu0 0.0
    %725 = vmatpush1.msra.mxu0 0.0
    %726 = vmatprep.subr.mxu0 0.0
    %727 = vmatpush1.msra.mxu0 0.0
    %728 = vmatprep.subr.mxu0 0.0
    %729 = vmatpush1.msra.mxu0 0.0
    %730 = vmatprep.subr.mxu0 0.0
    %731 = vmatpush1.msra.mxu0 0.0
    %732 = vmatprep.subr.mxu0 0.0
    %733 = vmatpush1.msra.mxu0 0.0
    %734 = vmatprep.subr.mxu0 0.0
    %735 = vmatpush1.msra.mxu0 0.0
    %736 = vmatprep.subr.mxu0 0.0
    %737 = vmatpush1.msra.mxu0 0.0
    %738 = vmatprep.subr.mxu0 0.0
    %739 = vmatpush1.msra.mxu0 0.0
    %740 = vmatprep.subr.mxu0 0.0
    %741 = vmatpush1.msra.mxu0 0.0
    %742 = vmatprep.subr.mxu0 0.0
    %743 = vmatpush1.msra.mxu0 0.0
    %744 = vmatprep.subr.mxu0 0.0
    %745 = vmatpush1.msra.mxu0 0.0
    %746 = vmatprep.subr.mxu0 0.0
    %747 = vmatpush1.msra.mxu0 0.0
    %748 = vmatprep.mubr.f32.mxu0 0.0
    %749 = vmatmul.mubr.f32.gmra.mrb[0].mxu0 %v682
    %v750 = vpop.f32.mrb[0].mxu0
    %v751 = vadd.f32 0.0, %v750
    %v752 = vpop.f32.mrb[0].mxu0
    %753 = vdwg.mxu0
    %754 = vrot.lane.b32.xlu0 %v158, 56
    %v755 = vpop.permute.xlu0 %754
    %v758 = vsel %vm164, %v677, 0
    %760 = vmatprep.subr.mxu0 0.0
    %761 = vmatpush1.msra.mxu0 %v755
    %762 = vmatprep.subr.mxu0 0.0
    %763 = vmatpush1.msra.mxu0 0.0
    %764 = vmatprep.subr.mxu0 0.0
    %765 = vmatpush1.msra.mxu0 0.0
    %766 = vmatprep.subr.mxu0 0.0
    %767 = vmatpush1.msra.mxu0 0.0
    %768 = vmatprep.subr.mxu0 0.0
    %769 = vmatpush1.msra.mxu0 0.0
    %770 = vmatprep.subr.mxu0 0.0
    %771 = vmatpush1.msra.mxu0 0.0
    %772 = vmatprep.subr.mxu0 0.0
    %773 = vmatpush1.msra.mxu0 0.0
    %774 = vmatprep.subr.mxu0 0.0
    %775 = vmatpush1.msra.mxu0 0.0
    %776 = vmatprep.subr.mxu0 0.0
    %777 = vmatpush1.msra.mxu0 0.0
    %778 = vmatprep.subr.mxu0 0.0
    %779 = vmatpush1.msra.mxu0 0.0
    %780 = vmatprep.subr.mxu0 0.0
    %781 = vmatpush1.msra.mxu0 0.0
    %782 = vmatprep.subr.mxu0 0.0
    %783 = vmatpush1.msra.mxu0 0.0
    %784 = vmatprep.subr.mxu0 0.0
    %785 = vmatpush1.msra.mxu0 0.0
    %786 = vmatprep.subr.mxu0 0.0
    %787 = vmatpush1.msra.mxu0 0.0
    %788 = vmatprep.subr.mxu0 0.0
    %789 = vmatpush1.msra.mxu0 0.0
    %790 = vmatprep.subr.mxu0 0.0
    %791 = vmatpush1.msra.mxu0 0.0
    %792 = vmatprep.subr.mxu0 0.0
    %793 = vmatpush1.msra.mxu0 0.0
    %794 = vmatprep.subr.mxu0 0.0
    %795 = vmatpush1.msra.mxu0 0.0
    %796 = vmatprep.subr.mxu0 0.0
    %797 = vmatpush1.msra.mxu0 0.0
    %798 = vmatprep.subr.mxu0 0.0
    %799 = vmatpush1.msra.mxu0 0.0
    %800 = vmatprep.subr.mxu0 0.0
    %801 = vmatpush1.msra.mxu0 0.0
    %802 = vmatprep.subr.mxu0 0.0
    %803 = vmatpush1.msra.mxu0 0.0
    %804 = vmatprep.subr.mxu0 0.0
    %805 = vmatpush1.msra.mxu0 0.0
    %806 = vmatprep.subr.mxu0 0.0
    %807 = vmatpush1.msra.mxu0 0.0
    %808 = vmatprep.subr.mxu0 0.0
    %809 = vmatpush1.msra.mxu0 0.0
    %810 = vmatprep.subr.mxu0 0.0
    %811 = vmatpush1.msra.mxu0 0.0
    %812 = vmatprep.subr.mxu0 0.0
    %813 = vmatpush1.msra.mxu0 0.0
    %814 = vmatprep.subr.mxu0 0.0
    %815 = vmatpush1.msra.mxu0 0.0
    %816 = vmatprep.subr.mxu0 0.0
    %817 = vmatpush1.msra.mxu0 0.0
    %818 = vmatprep.subr.mxu0 0.0
    %819 = vmatpush1.msra.mxu0 0.0
    %820 = vmatprep.subr.mxu0 0.0
    %821 = vmatpush1.msra.mxu0 0.0
    %822 = vmatprep.subr.mxu0 0.0
    %823 = vmatpush1.msra.mxu0 0.0
    %824 = vmatprep.mubr.f32.mxu0 0.0
    %825 = vmatmul.mubr.f32.gmra.mrb[0].mxu0 %v758
    %v826 = vpop.f32.mrb[0].mxu0
    %v827 = vadd.f32 0.0, %v826
    %v828 = vpop.f32.mrb[0].mxu0
    %829 = vdwg.mxu0
    %832 = vrot.lane.b32.xlu0 %v751, 8
    %v833 = vpop.permute.xlu0 %832
    %834 = vrot.lane.b32.xlu0 %v827, 8
    %v835 = vpop.permute.xlu0 %834
    %vm838 = vcmask 130112
    %839 = vst.msk [vmem:[#allocation2] sm:$0xff] %vm838, %v833
    %840 = vst.msk [vmem:[#allocation2 + $0x8] sm:$0xff] %vm838, %v835
    %841 = vrot.lane.b32.xlu0 %v153, 112
    %v842 = vpop.permute.xlu0 %841
    %843 = vrot.lane.b32.xlu0 %v153, 80
    %v844 = vpop.permute.xlu0 %843
    %v845 = vsel %vm164, %v842, 0
    %v847 = vsel %vm164, %v844, 0
    %849 = vmatprep.subr.mxu0 0.0
    %850 = vmatpush1.xpose.msra.mxu0 %v847
    %851 = vmatprep.subr.mxu0 0.0
    %852 = vmatpush1.xpose.msra.mxu0 0.0
    %853 = vmatprep.subr.mxu0 0.0
    %854 = vmatpush1.xpose.msra.mxu0 0.0
    %855 = vmatprep.subr.mxu0 0.0
    %856 = vmatpush1.xpose.msra.mxu0 0.0
    %857 = vmatprep.subr.mxu0 0.0
    %858 = vmatpush1.xpose.msra.mxu0 0.0
    %859 = vmatprep.subr.mxu0 0.0
    %860 = vmatpush1.xpose.msra.mxu0 0.0
    %861 = vmatprep.subr.mxu0 0.0
    %862 = vmatpush1.xpose.msra.mxu0 0.0
    %863 = vmatprep.subr.mxu0 0.0
    %864 = vmatpush1.xpose.msra.mxu0 0.0
    %865 = vmatprep.subr.mxu0 0.0
    %866 = vmatpush1.xpose.msra.mxu0 0.0
    %867 = vmatprep.subr.mxu0 0.0
    %868 = vmatpush1.xpose.msra.mxu0 0.0
    %869 = vmatprep.subr.mxu0 0.0
    %870 = vmatpush1.xpose.msra.mxu0 0.0
    %871 = vmatprep.subr.mxu0 0.0
    %872 = vmatpush1.xpose.msra.mxu0 0.0
    %873 = vmatprep.subr.mxu0 0.0
    %874 = vmatpush1.xpose.msra.mxu0 0.0
    %875 = vmatprep.subr.mxu0 0.0
    %876 = vmatpush1.xpose.msra.mxu0 0.0
    %877 = vmatprep.subr.mxu0 0.0
    %878 = vmatpush1.xpose.msra.mxu0 0.0
    %879 = vmatprep.subr.mxu0 0.0
    %880 = vmatpush1.xpose.msra.mxu0 0.0
    %881 = vmatprep.subr.mxu0 0.0
    %882 = vmatpush1.xpose.msra.mxu0 0.0
    %883 = vmatprep.subr.mxu0 0.0
    %884 = vmatpush1.xpose.msra.mxu0 0.0
    %885 = vmatprep.subr.mxu0 0.0
    %886 = vmatpush1.xpose.msra.mxu0 0.0
    %887 = vmatprep.subr.mxu0 0.0
    %888 = vmatpush1.xpose.msra.mxu0 0.0
    %889 = vmatprep.subr.mxu0 0.0
    %890 = vmatpush1.xpose.msra.mxu0 0.0
    %891 = vmatprep.subr.mxu0 0.0
    %892 = vmatpush1.xpose.msra.mxu0 0.0
    %893 = vmatprep.subr.mxu0 0.0
    %894 = vmatpush1.xpose.msra.mxu0 0.0
    %895 = vmatprep.subr.mxu0 0.0
    %896 = vmatpush1.xpose.msra.mxu0 0.0
    %897 = vmatprep.subr.mxu0 0.0
    %898 = vmatpush1.xpose.msra.mxu0 0.0
    %899 = vmatprep.subr.mxu0 0.0
    %900 = vmatpush1.xpose.msra.mxu0 0.0
    %901 = vmatprep.subr.mxu0 0.0
    %902 = vmatpush1.xpose.msra.mxu0 0.0
    %903 = vmatprep.subr.mxu0 0.0
    %904 = vmatpush1.xpose.msra.mxu0 0.0
    %905 = vmatprep.subr.mxu0 0.0
    %906 = vmatpush1.xpose.msra.mxu0 0.0
    %907 = vmatprep.subr.mxu0 0.0
    %908 = vmatpush1.xpose.msra.mxu0 0.0
    %909 = vmatprep.subr.mxu0 0.0
    %910 = vmatpush1.xpose.msra.mxu0 0.0
    %911 = vmatprep.subr.mxu0 0.0
    %912 = vmatpush1.xpose.msra.mxu0 0.0
    %913 = vmatprep.mubr.f32.mxu0 0.0
    %914 = vmatmul.mubr.f32.gmra.mrb[0].mxu0 %v845
    %v915 = vpop.f32.mrb[0].mxu0
    %v916 = vadd.f32 0.0, %v915
    %v917 = vpop.f32.mrb[0].mxu0
    %918 = vdwg.mxu0
    %919 = vrot.lane.b32.xlu0 %v158, 112
    %v920 = vpop.permute.xlu0 %919
    %921 = vrot.lane.b32.xlu0 %v158, 80
    %v922 = vpop.permute.xlu0 %921
    %v923 = vsel %vm164, %v920, 0
    %v925 = vsel %vm164, %v922, 0
    %927 = vmatprep.subr.mxu0 0.0
    %928 = vmatpush1.xpose.msra.mxu0 %v925
    %929 = vmatprep.subr.mxu0 0.0
    %930 = vmatpush1.xpose.msra.mxu0 0.0
    %931 = vmatprep.subr.mxu0 0.0
    %932 = vmatpush1.xpose.msra.mxu0 0.0
    %933 = vmatprep.subr.mxu0 0.0
    %934 = vmatpush1.xpose.msra.mxu0 0.0
    %935 = vmatprep.subr.mxu0 0.0
    %936 = vmatpush1.xpose.msra.mxu0 0.0
    %937 = vmatprep.subr.mxu0 0.0
    %938 = vmatpush1.xpose.msra.mxu0 0.0
    %939 = vmatprep.subr.mxu0 0.0
    %940 = vmatpush1.xpose.msra.mxu0 0.0
    %941 = vmatprep.subr.mxu0 0.0
    %942 = vmatpush1.xpose.msra.mxu0 0.0
    %943 = vmatprep.subr.mxu0 0.0
    %944 = vmatpush1.xpose.msra.mxu0 0.0
    %945 = vmatprep.subr.mxu0 0.0
    %946 = vmatpush1.xpose.msra.mxu0 0.0
    %947 = vmatprep.subr.mxu0 0.0
    %948 = vmatpush1.xpose.msra.mxu0 0.0
    %949 = vmatprep.subr.mxu0 0.0
    %950 = vmatpush1.xpose.msra.mxu0 0.0
    %951 = vmatprep.subr.mxu0 0.0
    %952 = vmatpush1.xpose.msra.mxu0 0.0
    %953 = vmatprep.subr.mxu0 0.0
    %954 = vmatpush1.xpose.msra.mxu0 0.0
    %955 = vmatprep.subr.mxu0 0.0
    %956 = vmatpush1.xpose.msra.mxu0 0.0
    %957 = vmatprep.subr.mxu0 0.0
    %958 = vmatpush1.xpose.msra.mxu0 0.0
    %959 = vmatprep.subr.mxu0 0.0
    %960 = vmatpush1.xpose.msra.mxu0 0.0
    %961 = vmatprep.subr.mxu0 0.0
    %962 = vmatpush1.xpose.msra.mxu0 0.0
    %963 = vmatprep.subr.mxu0 0.0
    %964 = vmatpush1.xpose.msra.mxu0 0.0
    %965 = vmatprep.subr.mxu0 0.0
    %966 = vmatpush1.xpose.msra.mxu0 0.0
    %967 = vmatprep.subr.mxu0 0.0
    %968 = vmatpush1.xpose.msra.mxu0 0.0
    %969 = vmatprep.subr.mxu0 0.0
    %970 = vmatpush1.xpose.msra.mxu0 0.0
    %971 = vmatprep.subr.mxu0 0.0
    %972 = vmatpush1.xpose.msra.mxu0 0.0
    %973 = vmatprep.subr.mxu0 0.0
    %974 = vmatpush1.xpose.msra.mxu0 0.0
    %975 = vmatprep.subr.mxu0 0.0
    %976 = vmatpush1.xpose.msra.mxu0 0.0
    %977 = vmatprep.subr.mxu0 0.0
    %978 = vmatpush1.xpose.msra.mxu0 0.0
    %979 = vmatprep.subr.mxu0 0.0
    %980 = vmatpush1.xpose.msra.mxu0 0.0
    %981 = vmatprep.subr.mxu0 0.0
    %982 = vmatpush1.xpose.msra.mxu0 0.0
    %983 = vmatprep.subr.mxu0 0.0
    %984 = vmatpush1.xpose.msra.mxu0 0.0
    %985 = vmatprep.subr.mxu0 0.0
    %986 = vmatpush1.xpose.msra.mxu0 0.0
    %987 = vmatprep.subr.mxu0 0.0
    %988 = vmatpush1.xpose.msra.mxu0 0.0
    %989 = vmatprep.subr.mxu0 0.0
    %990 = vmatpush1.xpose.msra.mxu0 0.0
    %991 = vmatprep.mubr.f32.mxu0 0.0
    %992 = vmatmul.mubr.f32.gmra.mrb[0].mxu0 %v923
    %v993 = vpop.f32.mrb[0].mxu0
    %v994 = vadd.f32 0.0, %v993
    %v995 = vpop.f32.mrb[0].mxu0
    %996 = vdwg.mxu0
    %v997 = vmul.f32 %v916, 0.35355338
    %v998 = vmul.f32 %v994, 0.35355338
    %v999 = vadd.f32 %v997, %v61
    %v1000 = vadd.f32 %v998, %v65
    %v1001 = vsel %vm164, %v999, -inf
    %1002 = vmax.xlane.f32.xlu0 %v1001
    %v1003 = vpop.xlane.xlu0 %1002
    %v1004 = vsel %vm164, %v1000, -inf
    %1005 = vmax.xlane.f32.xlu0 %v1004
    %v1006 = vpop.xlane.xlu0 %1005
    %v1007 = vsub.f32 %v999, %v1003
    %v1008 = vsub.f32 %v1000, %v1006
    %v1009 = vmul.f32 %v1007, 1.442695
    %v1010 = vpow.pop %v1009
    %v1011 = vmul.f32 %v1008, 1.442695
    %v1012 = vpow.pop %v1011
    %v1013 = vsel %vm164, %v1010, 0.0
    %1014 = vadd.xlane.f32.xlu0 %v1013
    %v1015 = vpop.xlane.xlu0 %1014
    %v1016 = vsel %vm164, %v1012, 0.0
    %1017 = vadd.xlane.f32.xlu0 %v1016
    %v1018 = vpop.xlane.xlu0 %1017
    %v1019 = vrcp.pop %v1015
    %v1020 = vmul.f32 %v1010, %v1019
    %v1021 = vrcp.pop %v1018
    %v1022 = vmul.f32 %v1012, %v1021
    %1023 = vrot.lane.b32.xlu0 %v153, 48
    %v1024 = vpop.permute.xlu0 %1023
    %v1027 = vsel %vm164, %v1020, 0
    %1029 = vmatprep.subr.mxu0 0.0
    %1030 = vmatpush1.msra.mxu0 %v1024
    %1031 = vmatprep.subr.mxu0 0.0
    %1032 = vmatpush1.msra.mxu0 0.0
    %1033 = vmatprep.subr.mxu0 0.0
    %1034 = vmatpush1.msra.mxu0 0.0
    %1035 = vmatprep.subr.mxu0 0.0
    %1036 = vmatpush1.msra.mxu0 0.0
    %1037 = vmatprep.subr.mxu0 0.0
    %1038 = vmatpush1.msra.mxu0 0.0
    %1039 = vmatprep.subr.mxu0 0.0
    %1040 = vmatpush1.msra.mxu0 0.0
    %1041 = vmatprep.subr.mxu0 0.0
    %1042 = vmatpush1.msra.mxu0 0.0
    %1043 = vmatprep.subr.mxu0 0.0
    %1044 = vmatpush1.msra.mxu0 0.0
    %1045 = vmatprep.subr.mxu0 0.0
    %1046 = vmatpush1.msra.mxu0 0.0
    %1047 = vmatprep.subr.mxu0 0.0
    %1048 = vmatpush1.msra.mxu0 0.0
    %1049 = vmatprep.subr.mxu0 0.0
    %1050 = vmatpush1.msra.mxu0 0.0
    %1051 = vmatprep.subr.mxu0 0.0
    %1052 = vmatpush1.msra.mxu0 0.0
    %1053 = vmatprep.subr.mxu0 0.0
    %1054 = vmatpush1.msra.mxu0 0.0
    %1055 = vmatprep.subr.mxu0 0.0
    %1056 = vmatpush1.msra.mxu0 0.0
    %1057 = vmatprep.subr.mxu0 0.0
    %1058 = vmatpush1.msra.mxu0 0.0
    %1059 = vmatprep.subr.mxu0 0.0
    %1060 = vmatpush1.msra.mxu0 0.0
    %1061 = vmatprep.subr.mxu0 0.0
    %1062 = vmatpush1.msra.mxu0 0.0
    %1063 = vmatprep.subr.mxu0 0.0
    %1064 = vmatpush1.msra.mxu0 0.0
    %1065 = vmatprep.subr.mxu0 0.0
    %1066 = vmatpush1.msra.mxu0 0.0
    %1067 = vmatprep.subr.mxu0 0.0
    %1068 = vmatpush1.msra.mxu0 0.0
    %1069 = vmatprep.subr.mxu0 0.0
    %1070 = vmatpush1.msra.mxu0 0.0
    %1071 = vmatprep.subr.mxu0 0.0
    %1072 = vmatpush1.msra.mxu0 0.0
    %1073 = vmatprep.subr.mxu0 0.0
    %1074 = vmatpush1.msra.mxu0 0.0
    %1075 = vmatprep.subr.mxu0 0.0
    %1076 = vmatpush1.msra.mxu0 0.0
    %1077 = vmatprep.subr.mxu0 0.0
    %1078 = vmatpush1.msra.mxu0 0.0
    %1079 = vmatprep.subr.mxu0 0.0
    %1080 = vmatpush1.msra.mxu0 0.0
    %1081 = vmatprep.subr.mxu0 0.0
    %1082 = vmatpush1.msra.mxu0 0.0
    %1083 = vmatprep.subr.mxu0 0.0
    %1084 = vmatpush1.msra.mxu0 0.0
    %1085 = vmatprep.subr.mxu0 0.0
    %1086 = vmatpush1.msra.mxu0 0.0
    %1087 = vmatprep.subr.mxu0 0.0
    %1088 = vmatpush1.msra.mxu0 0.0
    %1089 = vmatprep.subr.mxu0 0.0
    %1090 = vmatpush1.msra.mxu0 0.0
    %1091 = vmatprep.subr.mxu0 0.0
    %1092 = vmatpush1.msra.mxu0 0.0
    %1093 = vmatprep.mubr.f32.mxu0 0.0
    %1094 = vmatmul.mubr.f32.gmra.mrb[0].mxu0 %v1027
    %v1095 = vpop.f32.mrb[0].mxu0
    %v1096 = vadd.f32 0.0, %v1095
    %v1097 = vpop.f32.mrb[0].mxu0
    %1098 = vdwg.mxu0
    %1099 = vrot.lane.b32.xlu0 %v158, 48
    %v1100 = vpop.permute.xlu0 %1099
    %v1103 = vsel %vm164, %v1022, 0
    %1105 = vmatprep.subr.mxu0 0.0
    %1106 = vmatpush1.msra.mxu0 %v1100
    %1107 = vmatprep.subr.mxu0 0.0
    %1108 = vmatpush1.msra.mxu0 0.0
    %1109 = vmatprep.subr.mxu0 0.0
    %1110 = vmatpush1.msra.mxu0 0.0
    %1111 = vmatprep.subr.mxu0 0.0
    %1112 = vmatpush1.msra.mxu0 0.0
    %1113 = vmatprep.subr.mxu0 0.0
    %1114 = vmatpush1.msra.mxu0 0.0
    %1115 = vmatprep.subr.mxu0 0.0
    %1116 = vmatpush1.msra.mxu0 0.0
    %1117 = vmatprep.subr.mxu0 0.0
    %1118 = vmatpush1.msra.mxu0 0.0
    %1119 = vmatprep.subr.mxu0 0.0
    %1120 = vmatpush1.msra.mxu0 0.0
    %1121 = vmatprep.subr.mxu0 0.0
    %1122 = vmatpush1.msra.mxu0 0.0
    %1123 = vmatprep.subr.mxu0 0.0
    %1124 = vmatpush1.msra.mxu0 0.0
    %1125 = vmatprep.subr.mxu0 0.0
    %1126 = vmatpush1.msra.mxu0 0.0
    %1127 = vmatprep.subr.mxu0 0.0
    %1128 = vmatpush1.msra.mxu0 0.0
    %1129 = vmatprep.subr.mxu0 0.0
    %1130 = vmatpush1.msra.mxu0 0.0
    %1131 = vmatprep.subr.mxu0 0.0
    %1132 = vmatpush1.msra.mxu0 0.0
    %1133 = vmatprep.subr.mxu0 0.0
    %1134 = vmatpush1.msra.mxu0 0.0
    %1135 = vmatprep.subr.mxu0 0.0
    %1136 = vmatpush1.msra.mxu0 0.0
    %1137 = vmatprep.subr.mxu0 0.0
    %1138 = vmatpush1.msra.mxu0 0.0
    %1139 = vmatprep.subr.mxu0 0.0
    %1140 = vmatpush1.msra.mxu0 0.0
    %1141 = vmatprep.subr.mxu0 0.0
    %1142 = vmatpush1.msra.mxu0 0.0
    %1143 = vmatprep.subr.mxu0 0.0
    %1144 = vmatpush1.msra.mxu0 0.0
    %1145 = vmatprep.subr.mxu0 0.0
    %1146 = vmatpush1.msra.mxu0 0.0
    %1147 = vmatprep.subr.mxu0 0.0
    %1148 = vmatpush1.msra.mxu0 0.0
    %1149 = vmatprep.subr.mxu0 0.0
    %1150 = vmatpush1.msra.mxu0 0.0
    %1151 = vmatprep.subr.mxu0 0.0
    %1152 = vmatpush1.msra.mxu0 0.0
    %1153 = vmatprep.subr.mxu0 0.0
    %1154 = vmatpush1.msra.mxu0 0.0
    %1155 = vmatprep.subr.mxu0 0.0
    %1156 = vmatpush1.msra.mxu0 0.0
    %1157 = vmatprep.subr.mxu0 0.0
    %1158 = vmatpush1.msra.mxu0 0.0
    %1159 = vmatprep.subr.mxu0 0.0
    %1160 = vmatpush1.msra.mxu0 0.0
    %1161 = vmatprep.subr.mxu0 0.0
    %1162 = vmatpush1.msra.mxu0 0.0
    %1163 = vmatprep.subr.mxu0 0.0
    %1164 = vmatpush1.msra.mxu0 0.0
    %1165 = vmatprep.subr.mxu0 0.0
    %1166 = vmatpush1.msra.mxu0 0.0
    %1167 = vmatprep.subr.mxu0 0.0
    %1168 = vmatpush1.msra.mxu0 0.0
    %1169 = vmatprep.mubr.f32.mxu0 0.0
    %1170 = vmatmul.mubr.f32.gmra.mrb[0].mxu0 %v1103
    %v1171 = vpop.f32.mrb[0].mxu0
    %v1172 = vadd.f32 0.0, %v1171
    %v1173 = vpop.f32.mrb[0].mxu0
    %1174 = vdwg.mxu0
    %1177 = vrot.lane.b32.xlu0 %v1096, 16
    %v1178 = vpop.permute.xlu0 %1177
    %1179 = vrot.lane.b32.xlu0 %v1172, 16
    %v1180 = vpop.permute.xlu0 %1179
    %vm1183 = vcmask 195712
    %1184 = vst.msk [vmem:[#allocation2] sm:$0xff] %vm1183, %v1178
    %1185 = vst.msk [vmem:[#allocation2 + $0x8] sm:$0xff] %vm1183, %v1180
    %1186 = vrot.lane.b32.xlu0 %v153, 104
    %v1187 = vpop.permute.xlu0 %1186
    %1188 = vrot.lane.b32.xlu0 %v153, 72
    %v1189 = vpop.permute.xlu0 %1188
    %v1190 = vsel %vm164, %v1187, 0
    %v1192 = vsel %vm164, %v1189, 0
    %1194 = vmatprep.subr.mxu0 0.0
    %1195 = vmatpush1.xpose.msra.mxu0 %v1192
    %1196 = vmatprep.subr.mxu0 0.0
    %1197 = vmatpush1.xpose.msra.mxu0 0.0
    %1198 = vmatprep.subr.mxu0 0.0
    %1199 = vmatpush1.xpose.msra.mxu0 0.0
    %1200 = vmatprep.subr.mxu0 0.0
    %1201 = vmatpush1.xpose.msra.mxu0 0.0
    %1202 = vmatprep.subr.mxu0 0.0
    %1203 = vmatpush1.xpose.msra.mxu0 0.0
    %1204 = vmatprep.subr.mxu0 0.0
    %1205 = vmatpush1.xpose.msra.mxu0 0.0
    %1206 = vmatprep.subr.mxu0 0.0
    %1207 = vmatpush1.xpose.msra.mxu0 0.0
    %1208 = vmatprep.subr.mxu0 0.0
    %1209 = vmatpush1.xpose.msra.mxu0 0.0
    %1210 = vmatprep.subr.mxu0 0.0
    %1211 = vmatpush1.xpose.msra.mxu0 0.0
    %1212 = vmatprep.subr.mxu0 0.0
    %1213 = vmatpush1.xpose.msra.mxu0 0.0
    %1214 = vmatprep.subr.mxu0 0.0
    %1215 = vmatpush1.xpose.msra.mxu0 0.0
    %1216 = vmatprep.subr.mxu0 0.0
    %1217 = vmatpush1.xpose.msra.mxu0 0.0
    %1218 = vmatprep.subr.mxu0 0.0
    %1219 = vmatpush1.xpose.msra.mxu0 0.0
    %1220 = vmatprep.subr.mxu0 0.0
    %1221 = vmatpush1.xpose.msra.mxu0 0.0
    %1222 = vmatprep.subr.mxu0 0.0
    %1223 = vmatpush1.xpose.msra.mxu0 0.0
    %1224 = vmatprep.subr.mxu0 0.0
    %1225 = vmatpush1.xpose.msra.mxu0 0.0
    %1226 = vmatprep.subr.mxu0 0.0
    %1227 = vmatpush1.xpose.msra.mxu0 0.0
    %1228 = vmatprep.subr.mxu0 0.0
    %1229 = vmatpush1.xpose.msra.mxu0 0.0
    %1230 = vmatprep.subr.mxu0 0.0
    %1231 = vmatpush1.xpose.msra.mxu0 0.0
    %1232 = vmatprep.subr.mxu0 0.0
    %1233 = vmatpush1.xpose.msra.mxu0 0.0
    %1234 = vmatprep.subr.mxu0 0.0
    %1235 = vmatpush1.xpose.msra.mxu0 0.0
    %1236 = vmatprep.subr.mxu0 0.0
    %1237 = vmatpush1.xpose.msra.mxu0 0.0
    %1238 = vmatprep.subr.mxu0 0.0
    %1239 = vmatpush1.xpose.msra.mxu0 0.0
    %1240 = vmatprep.subr.mxu0 0.0
    %1241 = vmatpush1.xpose.msra.mxu0 0.0
    %1242 = vmatprep.subr.mxu0 0.0
    %1243 = vmatpush1.xpose.msra.mxu0 0.0
    %1244 = vmatprep.subr.mxu0 0.0
    %1245 = vmatpush1.xpose.msra.mxu0 0.0
    %1246 = vmatprep.subr.mxu0 0.0
    %1247 = vmatpush1.xpose.msra.mxu0 0.0
    %1248 = vmatprep.subr.mxu0 0.0
    %1249 = vmatpush1.xpose.msra.mxu0 0.0
    %1250 = vmatprep.subr.mxu0 0.0
    %1251 = vmatpush1.xpose.msra.mxu0 0.0
    %1252 = vmatprep.subr.mxu0 0.0
    %1253 = vmatpush1.xpose.msra.mxu0 0.0
    %1254 = vmatprep.subr.mxu0 0.0
    %1255 = vmatpush1.xpose.msra.mxu0 0.0
    %1256 = vmatprep.subr.mxu0 0.0
    %1257 = vmatpush1.xpose.msra.mxu0 0.0
    %1258 = vmatprep.mubr.f32.mxu0 0.0
    %1259 = vmatmul.mubr.f32.gmra.mrb[0].mxu0 %v1190
    %v1260 = vpop.f32.mrb[0].mxu0
    %v1261 = vadd.f32 0.0, %v1260
    %v1262 = vpop.f32.mrb[0].mxu0
    %1263 = vdwg.mxu0
    %1264 = vrot.lane.b32.xlu0 %v158, 104
    %v1265 = vpop.permute.xlu0 %1264
    %1266 = vrot.lane.b32.xlu0 %v158, 72
    %v1267 = vpop.permute.xlu0 %1266
    %v1268 = vsel %vm164, %v1265, 0
    %v1270 = vsel %vm164, %v1267, 0
    %1272 = vmatprep.subr.mxu0 0.0
    %1273 = vmatpush1.xpose.msra.mxu0 %v1270
    %1274 = vmatprep.subr.mxu0 0.0
    %1275 = vmatpush1.xpose.msra.mxu0 0.0
    %1276 = vmatprep.subr.mxu0 0.0
    %1277 = vmatpush1.xpose.msra.mxu0 0.0
    %1278 = vmatprep.subr.mxu0 0.0
    %1279 = vmatpush1.xpose.msra.mxu0 0.0
    %1280 = vmatprep.subr.mxu0 0.0
    %1281 = vmatpush1.xpose.msra.mxu0 0.0
    %1282 = vmatprep.subr.mxu0 0.0
    %1283 = vmatpush1.xpose.msra.mxu0 0.0
    %1284 = vmatprep.subr.mxu0 0.0
    %1285 = vmatpush1.xpose.msra.mxu0 0.0
    %1286 = vmatprep.subr.mxu0 0.0
    %1287 = vmatpush1.xpose.msra.mxu0 0.0
    %1288 = vmatprep.subr.mxu0 0.0
    %1289 = vmatpush1.xpose.msra.mxu0 0.0
    %1290 = vmatprep.subr.mxu0 0.0
    %1291 = vmatpush1.xpose.msra.mxu0 0.0
    %1292 = vmatprep.subr.mxu0 0.0
    %1293 = vmatpush1.xpose.msra.mxu0 0.0
    %1294 = vmatprep.subr.mxu0 0.0
    %1295 = vmatpush1.xpose.msra.mxu0 0.0
    %1296 = vmatprep.subr.mxu0 0.0
    %1297 = vmatpush1.xpose.msra.mxu0 0.0
    %1298 = vmatprep.subr.mxu0 0.0
    %1299 = vmatpush1.xpose.msra.mxu0 0.0
    %1300 = vmatprep.subr.mxu0 0.0
    %1301 = vmatpush1.xpose.msra.mxu0 0.0
    %1302 = vmatprep.subr.mxu0 0.0
    %1303 = vmatpush1.xpose.msra.mxu0 0.0
    %1304 = vmatprep.subr.mxu0 0.0
    %1305 = vmatpush1.xpose.msra.mxu0 0.0
    %1306 = vmatprep.subr.mxu0 0.0
    %1307 = vmatpush1.xpose.msra.mxu0 0.0
    %1308 = vmatprep.subr.mxu0 0.0
    %1309 = vmatpush1.xpose.msra.mxu0 0.0
    %1310 = vmatprep.subr.mxu0 0.0
    %1311 = vmatpush1.xpose.msra.mxu0 0.0
    %1312 = vmatprep.subr.mxu0 0.0
    %1313 = vmatpush1.xpose.msra.mxu0 0.0
    %1314 = vmatprep.subr.mxu0 0.0
    %1315 = vmatpush1.xpose.msra.mxu0 0.0
    %1316 = vmatprep.subr.mxu0 0.0
    %1317 = vmatpush1.xpose.msra.mxu0 0.0
    %1318 = vmatprep.subr.mxu0 0.0
    %1319 = vmatpush1.xpose.msra.mxu0 0.0
    %1320 = vmatprep.subr.mxu0 0.0
    %1321 = vmatpush1.xpose.msra.mxu0 0.0
    %1322 = vmatprep.subr.mxu0 0.0
    %1323 = vmatpush1.xpose.msra.mxu0 0.0
    %1324 = vmatprep.subr.mxu0 0.0
    %1325 = vmatpush1.xpose.msra.mxu0 0.0
    %1326 = vmatprep.subr.mxu0 0.0
    %1327 = vmatpush1.xpose.msra.mxu0 0.0
    %1328 = vmatprep.subr.mxu0 0.0
    %1329 = vmatpush1.xpose.msra.mxu0 0.0
    %1330 = vmatprep.subr.mxu0 0.0
    %1331 = vmatpush1.xpose.msra.mxu0 0.0
    %1332 = vmatprep.subr.mxu0 0.0
    %1333 = vmatpush1.xpose.msra.mxu0 0.0
    %1334 = vmatprep.subr.mxu0 0.0
    %1335 = vmatpush1.xpose.msra.mxu0 0.0
    %1336 = vmatprep.mubr.f32.mxu0 0.0
    %1337 = vmatmul.mubr.f32.gmra.mrb[0].mxu0 %v1268
    %v1338 = vpop.f32.mrb[0].mxu0
    %v1339 = vadd.f32 0.0, %v1338
    %v1340 = vpop.f32.mrb[0].mxu0
    %1341 = vdwg.mxu0
    %v1342 = vmul.f32 %v1261, 0.35355338
    %v1343 = vmul.f32 %v1339, 0.35355338
    %v1344 = vadd.f32 %v1342, %v61
    %v1345 = vadd.f32 %v1343, %v65
    %v1346 = vsel %vm164, %v1344, -inf
    %1347 = vmax.xlane.f32.xlu0 %v1346
    %v1348 = vpop.xlane.xlu0 %1347
    %v1349 = vsel %vm164, %v1345, -inf
    %1350 = vmax.xlane.f32.xlu0 %v1349
    %v1351 = vpop.xlane.xlu0 %1350
    %v1352 = vsub.f32 %v1344, %v1348
    %v1353 = vsub.f32 %v1345, %v1351
    %v1354 = vmul.f32 %v1352, 1.442695
    %v1355 = vpow.pop %v1354
    %v1356 = vmul.f32 %v1353, 1.442695
    %v1357 = vpow.pop %v1356
    %v1358 = vsel %vm164, %v1355, 0.0
    %1359 = vadd.xlane.f32.xlu0 %v1358
    %v1360 = vpop.xlane.xlu0 %1359
    %v1361 = vsel %vm164, %v1357, 0.0
    %1362 = vadd.xlane.f32.xlu0 %v1361
    %v1363 = vpop.xlane.xlu0 %1362
    %v1364 = vrcp.pop %v1360
    %v1365 = vmul.f32 %v1355, %v1364
    %v1366 = vrcp.pop %v1363
    %v1367 = vmul.f32 %v1357, %v1366
    %1368 = vrot.lane.b32.xlu0 %v153, 40
    %v1369 = vpop.permute.xlu0 %1368
    %v1372 = vsel %vm164, %v1365, 0
    %1374 = vmatprep.subr.mxu0 0.0
    %1375 = vmatpush1.msra.mxu0 %v1369
    %1376 = vmatprep.subr.mxu0 0.0
    %1377 = vmatpush1.msra.mxu0 0.0
    %1378 = vmatprep.subr.mxu0 0.0
    %1379 = vmatpush1.msra.mxu0 0.0
    %1380 = vmatprep.subr.mxu0 0.0
    %1381 = vmatpush1.msra.mxu0 0.0
    %1382 = vmatprep.subr.mxu0 0.0
    %1383 = vmatpush1.msra.mxu0 0.0
    %1384 = vmatprep.subr.mxu0 0.0
    %1385 = vmatpush1.msra.mxu0 0.0
    %1386 = vmatprep.subr.mxu0 0.0
    %1387 = vmatpush1.msra.mxu0 0.0
    %1388 = vmatprep.subr.mxu0 0.0
    %1389 = vmatpush1.msra.mxu0 0.0
    %1390 = vmatprep.subr.mxu0 0.0
    %1391 = vmatpush1.msra.mxu0 0.0
    %1392 = vmatprep.subr.mxu0 0.0
    %1393 = vmatpush1.msra.mxu0 0.0
    %1394 = vmatprep.subr.mxu0 0.0
    %1395 = vmatpush1.msra.mxu0 0.0
    %1396 = vmatprep.subr.mxu0 0.0
    %1397 = vmatpush1.msra.mxu0 0.0
    %1398 = vmatprep.subr.mxu0 0.0
    %1399 = vmatpush1.msra.mxu0 0.0
    %1400 = vmatprep.subr.mxu0 0.0
    %1401 = vmatpush1.msra.mxu0 0.0
    %1402 = vmatprep.subr.mxu0 0.0
    %1403 = vmatpush1.msra.mxu0 0.0
    %1404 = vmatprep.subr.mxu0 0.0
    %1405 = vmatpush1.msra.mxu0 0.0
    %1406 = vmatprep.subr.mxu0 0.0
    %1407 = vmatpush1.msra.mxu0 0.0
    %1408 = vmatprep.subr.mxu0 0.0
    %1409 = vmatpush1.msra.mxu0 0.0
    %1410 = vmatprep.subr.mxu0 0.0
    %1411 = vmatpush1.msra.mxu0 0.0
    %1412 = vmatprep.subr.mxu0 0.0
    %1413 = vmatpush1.msra.mxu0 0.0
    %1414 = vmatprep.subr.mxu0 0.0
    %1415 = vmatpush1.msra.mxu0 0.0
    %1416 = vmatprep.subr.mxu0 0.0
    %1417 = vmatpush1.msra.mxu0 0.0
    %1418 = vmatprep.subr.mxu0 0.0
    %1419 = vmatpush1.msra.mxu0 0.0
    %1420 = vmatprep.subr.mxu0 0.0
    %1421 = vmatpush1.msra.mxu0 0.0
    %1422 = vmatprep.subr.mxu0 0.0
    %1423 = vmatpush1.msra.mxu0 0.0
    %1424 = vmatprep.subr.mxu0 0.0
    %1425 = vmatpush1.msra.mxu0 0.0
    %1426 = vmatprep.subr.mxu0 0.0
    %1427 = vmatpush1.msra.mxu0 0.0
    %1428 = vmatprep.subr.mxu0 0.0
    %1429 = vmatpush1.msra.mxu0 0.0
    %1430 = vmatprep.subr.mxu0 0.0
    %1431 = vmatpush1.msra.mxu0 0.0
    %1432 = vmatprep.subr.mxu0 0.0
    %1433 = vmatpush1.msra.mxu0 0.0
    %1434 = vmatprep.subr.mxu0 0.0
    %1435 = vmatpush1.msra.mxu0 0.0
    %1436 = vmatprep.subr.mxu0 0.0
    %1437 = vmatpush1.msra.mxu0 0.0
    %1438 = vmatprep.mubr.f32.mxu0 0.0
    %1439 = vmatmul.mubr.f32.gmra.mrb[0].mxu0 %v1372
    %v1440 = vpop.f32.mrb[0].mxu0
    %v1441 = vadd.f32 0.0, %v1440
    %v1442 = vpop.f32.mrb[0].mxu0
    %1443 = vdwg.mxu0
    %1444 = vrot.lane.b32.xlu0 %v158, 40
    %v1445 = vpop.permute.xlu0 %1444
    %v1448 = vsel %vm164, %v1367, 0
    %1450 = vmatprep.subr.mxu0 0.0
    %1451 = vmatpush1.msra.mxu0 %v1445
    %1452 = vmatprep.subr.mxu0 0.0
    %1453 = vmatpush1.msra.mxu0 0.0
    %1454 = vmatprep.subr.mxu0 0.0
    %1455 = vmatpush1.msra.mxu0 0.0
    %1456 = vmatprep.subr.mxu0 0.0
    %1457 = vmatpush1.msra.mxu0 0.0
    %1458 = vmatprep.subr.mxu0 0.0
    %1459 = vmatpush1.msra.mxu0 0.0
    %1460 = vmatprep.subr.mxu0 0.0
    %1461 = vmatpush1.msra.mxu0 0.0
    %1462 = vmatprep.subr.mxu0 0.0
    %1463 = vmatpush1.msra.mxu0 0.0
    %1464 = vmatprep.subr.mxu0 0.0
    %1465 = vmatpush1.msra.mxu0 0.0
    %1466 = vmatprep.subr.mxu0 0.0
    %1467 = vmatpush1.msra.mxu0 0.0
    %1468 = vmatprep.subr.mxu0 0.0
    %1469 = vmatpush1.msra.mxu0 0.0
    %1470 = vmatprep.subr.mxu0 0.0
    %1471 = vmatpush1.msra.mxu0 0.0
    %1472 = vmatprep.subr.mxu0 0.0
    %1473 = vmatpush1.msra.mxu0 0.0
    %1474 = vmatprep.subr.mxu0 0.0
    %1475 = vmatpush1.msra.mxu0 0.0
    %1476 = vmatprep.subr.mxu0 0.0
    %1477 = vmatpush1.msra.mxu0 0.0
    %1478 = vmatprep.subr.mxu0 0.0
    %1479 = vmatpush1.msra.mxu0 0.0
    %1480 = vmatprep.subr.mxu0 0.0
    %1481 = vmatpush1.msra.mxu0 0.0
    %1482 = vmatprep.subr.mxu0 0.0
    %1483 = vmatpush1.msra.mxu0 0.0
    %1484 = vmatprep.subr.mxu0 0.0
    %1485 = vmatpush1.msra.mxu0 0.0
    %1486 = vmatprep.subr.mxu0 0.0
    %1487 = vmatpush1.msra.mxu0 0.0
    %1488 = vmatprep.subr.mxu0 0.0
    %1489 = vmatpush1.msra.mxu0 0.0
    %1490 = vmatprep.subr.mxu0 0.0
    %1491 = vmatpush1.msra.mxu0 0.0
    %1492 = vmatprep.subr.mxu0 0.0
    %1493 = vmatpush1.msra.mxu0 0.0
    %1494 = vmatprep.subr.mxu0 0.0
    %1495 = vmatpush1.msra.mxu0 0.0
    %1496 = vmatprep.subr.mxu0 0.0
    %1497 = vmatpush1.msra.mxu0 0.0
    %1498 = vmatprep.subr.mxu0 0.0
    %1499 = vmatpush1.msra.mxu0 0.0
    %1500 = vmatprep.subr.mxu0 0.0
    %1501 = vmatpush1.msra.mxu0 0.0
    %1502 = vmatprep.subr.mxu0 0.0
    %1503 = vmatpush1.msra.mxu0 0.0
    %1504 = vmatprep.subr.mxu0 0.0
    %1505 = vmatpush1.msra.mxu0 0.0
    %1506 = vmatprep.subr.mxu0 0.0
    %1507 = vmatpush1.msra.mxu0 0.0
    %1508 = vmatprep.subr.mxu0 0.0
    %1509 = vmatpush1.msra.mxu0 0.0
    %1510 = vmatprep.subr.mxu0 0.0
    %1511 = vmatpush1.msra.mxu0 0.0
    %1512 = vmatprep.subr.mxu0 0.0
    %1513 = vmatpush1.msra.mxu0 0.0
    %1514 = vmatprep.mubr.f32.mxu0 0.0
    %1515 = vmatmul.mubr.f32.gmra.mrb[0].mxu0 %v1448
    %v1516 = vpop.f32.mrb[0].mxu0
    %v1517 = vadd.f32 0.0, %v1516
    %v1518 = vpop.f32.mrb[0].mxu0
    %1519 = vdwg.mxu0
    %1522 = vrot.lane.b32.xlu0 %v1441, 24
    %v1523 = vpop.permute.xlu0 %1522
    %1524 = vrot.lane.b32.xlu0 %v1517, 24
    %v1525 = vpop.permute.xlu0 %1524
    %vm1528 = vcmask 261312
    %1529 = vst.msk [vmem:[#allocation2] sm:$0xff] %vm1528, %v1523
    %1530 = vst.msk [vmem:[#allocation2 + $0x8] sm:$0xff] %vm1528, %v1525
    %v1531 = vld [vmem:[%s9] sm:$0x3f]
    %v1532 = vld [vmem:[#allocation2] sm:$0xff]
    %v1533 = vld [vmem:[#allocation2 + $0x8] sm:$0xff]
    %v1534 = vld [vmem:[%s5] sm:$0xff]
    %v1535 = vld [vmem:[%s5 + $0x8] sm:$0xff]
    %v1536 = vld [vmem:[%s5 + $0x10] sm:$0xff]
    %v1537 = vld [vmem:[%s5 + $0x18] sm:$0xff]
    %v1538 = vlaneseq
    %v1539 = vshrl.u32 %v1538, 7
    %v1540 = vsub.s32 0, %v1539
    %v1541 = vrot.slane %v1531, %v1540
    %v1543 = vsel %vm79, %v1532, 0
    %v1546 = vsel %vm79, %v1533, 0
    %1548 = vmatprep.subr.mxu0 0.0
    %1549 = vmatpush1.msra.mxu0 %v1534
    %1550 = vmatprep.subr.mxu0 0.0
    %1551 = vmatpush1.msra.mxu0 %v1535
    %1552 = vmatprep.subr.mxu0 0.0
    %1553 = vmatpush1.msra.mxu0 %v1536
    %1554 = vmatprep.subr.mxu0 0.0
    %1555 = vmatpush1.msra.mxu0 %v1537
    %1556 = vmatprep.subr.mxu0 0.0
    %1557 = vmatpush1.msra.mxu0 0.0
    %1558 = vmatprep.subr.mxu0 0.0
    %1559 = vmatpush1.msra.mxu0 0.0
    %1560 = vmatprep.subr.mxu0 0.0
    %1561 = vmatpush1.msra.mxu0 0.0
    %1562 = vmatprep.subr.mxu0 0.0
    %1563 = vmatpush1.msra.mxu0 0.0
    %1564 = vmatprep.subr.mxu0 0.0
    %1565 = vmatpush1.msra.mxu0 0.0
    %1566 = vmatprep.subr.mxu0 0.0
    %1567 = vmatpush1.msra.mxu0 0.0
    %1568 = vmatprep.subr.mxu0 0.0
    %1569 = vmatpush1.msra.mxu0 0.0
    %1570 = vmatprep.subr.mxu0 0.0
    %1571 = vmatpush1.msra.mxu0 0.0
    %1572 = vmatprep.subr.mxu0 0.0
    %1573 = vmatpush1.msra.mxu0 0.0
    %1574 = vmatprep.subr.mxu0 0.0
    %1575 = vmatpush1.msra.mxu0 0.0
    %1576 = vmatprep.subr.mxu0 0.0
    %1577 = vmatpush1.msra.mxu0 0.0
    %1578 = vmatprep.subr.mxu0 0.0
    %1579 = vmatpush1.msra.mxu0 0.0
    %1580 = vmatprep.subr.mxu0 0.0
    %1581 = vmatpush1.msra.mxu0 0.0
    %1582 = vmatprep.subr.mxu0 0.0
    %1583 = vmatpush1.msra.mxu0 0.0
    %1584 = vmatprep.subr.mxu0 0.0
    %1585 = vmatpush1.msra.mxu0 0.0
    %1586 = vmatprep.subr.mxu0 0.0
    %1587 = vmatpush1.msra.mxu0 0.0
    %1588 = vmatprep.subr.mxu0 0.0
    %1589 = vmatpush1.msra.mxu0 0.0
    %1590 = vmatprep.subr.mxu0 0.0
    %1591 = vmatpush1.msra.mxu0 0.0
    %1592 = vmatprep.subr.mxu0 0.0
    %1593 = vmatpush1.msra.mxu0 0.0
    %1594 = vmatprep.subr.mxu0 0.0
    %1595 = vmatpush1.msra.mxu0 0.0
    %1596 = vmatprep.subr.mxu0 0.0
    %1597 = vmatpush1.msra.mxu0 0.0
    %1598 = vmatprep.subr.mxu0 0.0
    %1599 = vmatpush1.msra.mxu0 0.0
    %1600 = vmatprep.subr.mxu0 0.0
    %1601 = vmatpush1.msra.mxu0 0.0
    %1602 = vmatprep.subr.mxu0 0.0
    %1603 = vmatpush1.msra.mxu0 0.0
    %1604 = vmatprep.subr.mxu0 0.0
    %1605 = vmatpush1.msra.mxu0 0.0
    %1606 = vmatprep.subr.mxu0 0.0
    %1607 = vmatpush1.msra.mxu0 0.0
    %1608 = vmatprep.subr.mxu0 0.0
    %1609 = vmatpush1.msra.mxu0 0.0
    %1610 = vmatprep.subr.mxu0 0.0
    %1611 = vmatpush1.msra.mxu0 0.0
    %1612 = vmatprep.mubr.f32.mxu0 0.0
    %1613 = vmatmul.mubr.f32.gmra.mrb[0].mxu0 %v1543
    %v1614 = vpop.f32.mrb[0].mxu0
    %v1615 = vadd.f32 %v1541, %v1614
    %v1616 = vpop.f32.mrb[0].mxu0
    %1617 = vmatprep.mubr.f32.mxu0 0.0
    %1618 = vmatmul.mubr.f32.gmra.mrb[0].mxu0 %v1546
    %v1619 = vpop.f32.mrb[0].mxu0
    %v1620 = vadd.f32 %v1541, %v1619
    %v1621 = vpop.f32.mrb[0].mxu0
    %1622 = vdwg.mxu0
    %v1623 = vadd.f32 %v50, %v1615
    %v1624 = vadd.f32 %v51, %v1620
    %v1625 = vsel %vm79, %v1623, 0.0
    %1626 = vadd.xlane.f32.xlu0 %v1625
    %v1627 = vpop.xlane.xlu0 %1626
    %v1628 = vsel %vm79, %v1624, 0.0
    %1629 = vadd.xlane.f32.xlu0 %v1628
    %v1630 = vpop.xlane.xlu0 %1629
    %v1631 = vrcp.pop 32.0
    %v1632 = vmul.f32 %v1627, %v1631
    %v1633 = vmul.f32 %v1630, %v1631
    %v1634 = vsub.f32 %v1623, %v1632
    %v1635 = vsub.f32 %v1624, %v1633
    %v1636 = vmul.f32 %v1634, %v1634
    %v1637 = vmul.f32 %v1635, %v1635
    %v1638 = vsel %vm79, %v1636, 0.0
    %1639 = vadd.xlane.f32.xlu0 %v1638
    %v1640 = vpop.xlane.xlu0 %1639
    %v1641 = vsel %vm79, %v1637, 0.0
    %1642 = vadd.xlane.f32.xlu0 %v1641
    %v1643 = vpop.xlane.xlu0 %1642
    %v1644 = vmul.f32 %v1640, %v1631
    %v1645 = vmul.f32 %v1643, %v1631
    %v1646 = vadd.f32 %v1644, 1e-05
    %v1647 = vadd.f32 %v1645, 1e-05
    %v1648 = vrsqrt.pop %v1646
    %v1649 = vrsqrt.pop %v1647
    %v1650 = vmul.f32 %v1634, %v1648
    %v1651 = vmul.f32 %v1635, %v1649
    %v1652 = vlaneseq
    %v1653 = vshrl.u32 %v1652, 7
    %v1654 = vsub.s32 2, %v1653
    %v1655 = vrot.slane %v1531, %v1654
    %v1656 = vmul.f32 %v1650, %v1655
    %v1657 = vmul.f32 %v1651, %v1655
    %v1658 = vlaneseq
    %v1659 = vshrl.u32 %v1658, 7
    %v1660 = vsub.s32 3, %v1659
    %v1661 = vrot.slane %v1531, %v1660
    %v1662 = vadd.f32 %v1656, %v1661
    %v1663 = vadd.f32 %v1657, %v1661
    %v1664 = vld [vmem:[%s6] sm:$0xff]
    %v1665 = vld [vmem:[%s6 + $0x8] sm:$0xff]
    %v1666 = vld [vmem:[%s6 + $0x10] sm:$0xff]
    %v1667 = vld [vmem:[%s6 + $0x18] sm:$0xff]
    %v1668 = vld [vmem:[%s7] sm:$0x1]
    %v1670 = vlaneseq
    %v1671 = vshrl.u32 %v1670, 7
    %v1672 = vsub.s32 0, %v1671
    %v1673 = vrot.slane %v1668, %v1672
    %v1676 = vsel %vm79, %v1662, 0
    %v1679 = vsel %vm79, %v1663, 0
    %1681 = vmatprep.subr.mxu0 0.0
    %1682 = vmatpush1.msra.mxu0 %v1664
    %1683 = vmatprep.subr.mxu0 0.0
    %1684 = vmatpush1.msra.mxu0 %v1665
    %1685 = vmatprep.subr.mxu0 0.0
    %1686 = vmatpush1.msra.mxu0 %v1666
    %1687 = vmatprep.subr.mxu0 0.0
    %1688 = vmatpush1.msra.mxu0 %v1667
    %1689 = vmatprep.subr.mxu0 0.0
    %1690 = vmatpush1.msra.mxu0 0.0
    %1691 = vmatprep.subr.mxu0 0.0
    %1692 = vmatpush1.msra.mxu0 0.0
    %1693 = vmatprep.subr.mxu0 0.0
    %1694 = vmatpush1.msra.mxu0 0.0
    %1695 = vmatprep.subr.mxu0 0.0
    %1696 = vmatpush1.msra.mxu0 0.0
    %1697 = vmatprep.subr.mxu0 0.0
    %1698 = vmatpush1.msra.mxu0 0.0
    %1699 = vmatprep.subr.mxu0 0.0
    %1700 = vmatpush1.msra.mxu0 0.0
    %1701 = vmatprep.subr.mxu0 0.0
    %1702 = vmatpush1.msra.mxu0 0.0
    %1703 = vmatprep.subr.mxu0 0.0
    %1704 = vmatpush1.msra.mxu0 0.0
    %1705 = vmatprep.subr.mxu0 0.0
    %1706 = vmatpush1.msra.mxu0 0.0
    %1707 = vmatprep.subr.mxu0 0.0
    %1708 = vmatpush1.msra.mxu0 0.0
    %1709 = vmatprep.subr.mxu0 0.0
    %1710 = vmatpush1.msra.mxu0 0.0
    %1711 = vmatprep.subr.mxu0 0.0
    %1712 = vmatpush1.msra.mxu0 0.0
    %1713 = vmatprep.subr.mxu0 0.0
    %1714 = vmatpush1.msra.mxu0 0.0
    %1715 = vmatprep.subr.mxu0 0.0
    %1716 = vmatpush1.msra.mxu0 0.0
    %1717 = vmatprep.subr.mxu0 0.0
    %1718 = vmatpush1.msra.mxu0 0.0
    %1719 = vmatprep.subr.mxu0 0.0
    %1720 = vmatpush1.msra.mxu0 0.0
    %1721 = vmatprep.subr.mxu0 0.0
    %1722 = vmatpush1.msra.mxu0 0.0
    %1723 = vmatprep.subr.mxu0 0.0
    %1724 = vmatpush1.msra.mxu0 0.0
    %1725 = vmatprep.subr.mxu0 0.0
    %1726 = vmatpush1.msra.mxu0 0.0
    %1727 = vmatprep.subr.mxu0 0.0
    %1728 = vmatpush1.msra.mxu0 0.0
    %1729 = vmatprep.subr.mxu0 0.0
    %1730 = vmatpush1.msra.mxu0 0.0
    %1731 = vmatprep.subr.mxu0 0.0
    %1732 = vmatpush1.msra.mxu0 0.0
    %1733 = vmatprep.subr.mxu0 0.0
    %1734 = vmatpush1.msra.mxu0 0.0
    %1735 = vmatprep.subr.mxu0 0.0
    %1736 = vmatpush1.msra.mxu0 0.0
    %1737 = vmatprep.subr.mxu0 0.0
    %1738 = vmatpush1.msra.mxu0 0.0
    %1739 = vmatprep.subr.mxu0 0.0
    %1740 = vmatpush1.msra.mxu0 0.0
    %1741 = vmatprep.subr.mxu0 0.0
    %1742 = vmatpush1.msra.mxu0 0.0
    %1743 = vmatprep.subr.mxu0 0.0
    %1744 = vmatpush1.msra.mxu0 0.0
    %1745 = vmatprep.mubr.f32.mxu0 0.0
    %1746 = vmatmul.mubr.f32.gmra.mrb[0].mxu0 %v1676
    %v1747 = vpop.f32.mrb[0].mxu0
    %v1748 = vadd.f32 %v1673, %v1747
    %v1749 = vpop.f32.mrb[0].mxu0
    %1750 = vmatprep.mubr.f32.mxu0 0.0
    %1751 = vmatmul.mubr.f32.gmra.mrb[0].mxu0 %v1679
    %v1752 = vpop.f32.mrb[0].mxu0
    %v1753 = vadd.f32 %v1673, %v1752
    %v1754 = vpop.f32.mrb[0].mxu0
    %1755 = vdwg.mxu0
    %v1756 = vmax.f32 %v1748, 0.0
    %v1757 = vmax.f32 %v1753, 0.0
    %v1758 = vld [vmem:[%s8] sm:$0xff]
    %v1759 = vld [vmem:[%s8 + $0x8] sm:$0xff]
    %v1760 = vld [vmem:[%s8 + $0x10] sm:$0xff]
    %v1761 = vld [vmem:[%s8 + $0x18] sm:$0xff]
    %v1762 = vld [vmem:[%s8 + $0x20] sm:$0xff]
    %v1763 = vld [vmem:[%s8 + $0x28] sm:$0xff]
    %v1764 = vld [vmem:[%s8 + $0x30] sm:$0xff]
    %v1765 = vld [vmem:[%s8 + $0x38] sm:$0xff]
    %v1766 = vlaneseq
    %v1767 = vshrl.u32 %v1766, 7
    %v1768 = vsub.s32 1, %v1767
    %v1769 = vrot.slane %v1531, %v1768
    %vm1770 = vcmask 523264
    %v1772 = vsel %vm1770, %v1756, 0
    %v1775 = vsel %vm1770, %v1757, 0
    %1777 = vmatprep.subr.mxu0 0.0
    %1778 = vmatpush1.msra.mxu0 %v1758
    %1779 = vmatprep.subr.mxu0 0.0
    %1780 = vmatpush1.msra.mxu0 %v1759
    %1781 = vmatprep.subr.mxu0 0.0
    %1782 = vmatpush1.msra.mxu0 %v1760
    %1783 = vmatprep.subr.mxu0 0.0
    %1784 = vmatpush1.msra.mxu0 %v1761
    %1785 = vmatprep.subr.mxu0 0.0
    %1786 = vmatpush1.msra.mxu0 %v1762
    %1787 = vmatprep.subr.mxu0 0.0
    %1788 = vmatpush1.msra.mxu0 %v1763
    %1789 = vmatprep.subr.mxu0 0.0
    %1790 = vmatpush1.msra.mxu0 %v1764
    %1791 = vmatprep.subr.mxu0 0.0
    %1792 = vmatpush1.msra.mxu0 %v1765
    %1793 = vmatprep.subr.mxu0 0.0
    %1794 = vmatpush1.msra.mxu0 0.0
    %1795 = vmatprep.subr.mxu0 0.0
    %1796 = vmatpush1.msra.mxu0 0.0
    %1797 = vmatprep.subr.mxu0 0.0
    %1798 = vmatpush1.msra.mxu0 0.0
    %1799 = vmatprep.subr.mxu0 0.0
    %1800 = vmatpush1.msra.mxu0 0.0
    %1801 = vmatprep.subr.mxu0 0.0
    %1802 = vmatpush1.msra.mxu0 0.0
    %1803 = vmatprep.subr.mxu0 0.0
    %1804 = vmatpush1.msra.mxu0 0.0
    %1805 = vmatprep.subr.mxu0 0.0
    %1806 = vmatpush1.msra.mxu0 0.0
    %1807 = vmatprep.subr.mxu0 0.0
    %1808 = vmatpush1.msra.mxu0 0.0
    %1809 = vmatprep.subr.mxu0 0.0
    %1810 = vmatpush1.msra.mxu0 0.0
    %1811 = vmatprep.subr.mxu0 0.0
    %1812 = vmatpush1.msra.mxu0 0.0
    %1813 = vmatprep.subr.mxu0 0.0
    %1814 = vmatpush1.msra.mxu0 0.0
    %1815 = vmatprep.subr.mxu0 0.0
    %1816 = vmatpush1.msra.mxu0 0.0
    %1817 = vmatprep.subr.mxu0 0.0
    %1818 = vmatpush1.msra.mxu0 0.0
    %1819 = vmatprep.subr.mxu0 0.0
    %1820 = vmatpush1.msra.mxu0 0.0
    %1821 = vmatprep.subr.mxu0 0.0
    %1822 = vmatpush1.msra.mxu0 0.0
    %1823 = vmatprep.subr.mxu0 0.0
    %1824 = vmatpush1.msra.mxu0 0.0
    %1825 = vmatprep.subr.mxu0 0.0
    %1826 = vmatpush1.msra.mxu0 0.0
    %1827 = vmatprep.subr.mxu0 0.0
    %1828 = vmatpush1.msra.mxu0 0.0
    %1829 = vmatprep.subr.mxu0 0.0
    %1830 = vmatpush1.msra.mxu0 0.0
    %1831 = vmatprep.subr.mxu0 0.0
    %1832 = vmatpush1.msra.mxu0 0.0
    %1833 = vmatprep.subr.mxu0 0.0
    %1834 = vmatpush1.msra.mxu0 0.0
    %1835 = vmatprep.subr.mxu0 0.0
    %1836 = vmatpush1.msra.mxu0 0.0
    %1837 = vmatprep.subr.mxu0 0.0
    %1838 = vmatpush1.msra.mxu0 0.0
    %1839 = vmatprep.subr.mxu0 0.0
    %1840 = vmatpush1.msra.mxu0 0.0
    %1841 = vmatprep.mubr.f32.mxu0 0.0
    %1842 = vmatmul.mubr.f32.gmra.mrb[0].mxu0 %v1772
    %v1843 = vpop.f32.mrb[0].mxu0
    %v1844 = vadd.f32 %v1769, %v1843
    %v1845 = vpop.f32.mrb[0].mxu0
    %1846 = vmatprep.mubr.f32.mxu0 0.0
    %1847 = vmatmul.mubr.f32.gmra.mrb[0].mxu0 %v1775
    %v1848 = vpop.f32.mrb[0].mxu0
    %v1849 = vadd.f32 %v1769, %v1848
    %v1850 = vpop.f32.mrb[0].mxu0
    %1851 = vdwg.mxu0
    %v1852 = vadd.f32 %v1662, %v1844
    %v1853 = vadd.f32 %v1663, %v1849
    %v1854 = vsel %vm79, %v1852, 0.0
    %1855 = vadd.xlane.f32.xlu0 %v1854
    %v1856 = vpop.xlane.xlu0 %1855
    %v1857 = vsel %vm79, %v1853, 0.0
    %1858 = vadd.xlane.f32.xlu0 %v1857
    %v1859 = vpop.xlane.xlu0 %1858
    %v1860 = vmul.f32 %v1856, %v1631
    %v1861 = vmul.f32 %v1859, %v1631
    %v1862 = vsub.f32 %v1852, %v1860
    %v1863 = vsub.f32 %v1853, %v1861
    %v1864 = vmul.f32 %v1862, %v1862
    %v1865 = vmul.f32 %v1863, %v1863
    %v1866 = vsel %vm79, %v1864, 0.0
    %1867 = vadd.xlane.f32.xlu0 %v1866
    %v1868 = vpop.xlane.xlu0 %1867
    %v1869 = vsel %vm79, %v1865, 0.0
    %1870 = vadd.xlane.f32.xlu0 %v1869
    %v1871 = vpop.xlane.xlu0 %1870
    %v1872 = vmul.f32 %v1868, %v1631
    %v1873 = vmul.f32 %v1871, %v1631
    %v1874 = vadd.f32 %v1872, 1e-05
    %v1875 = vadd.f32 %v1873, 1e-05
    %v1876 = vrsqrt.pop %v1874
    %v1877 = vrsqrt.pop %v1875
    %v1878 = vmul.f32 %v1862, %v1876
    %v1879 = vmul.f32 %v1863, %v1877
    %v1880 = vlaneseq
    %v1881 = vshrl.u32 %v1880, 7
    %v1882 = vsub.s32 4, %v1881
    %v1883 = vrot.slane %v1531, %v1882
    %v1884 = vmul.f32 %v1878, %v1883
    %v1885 = vmul.f32 %v1879, %v1883
    %v1886 = vlaneseq
    %v1887 = vshrl.u32 %v1886, 7
    %v1888 = vsub.s32 5, %v1887
    %v1889 = vrot.slane %v1531, %v1888
    %v1890 = vadd.f32 %v1884, %v1889
    %v1891 = vadd.f32 %v1885, %v1889
    %v1892 = vld [vmem:[%s2] sm:$0xff]
    %v1893 = vld [vmem:[%s2 + $0x8] sm:$0xff]
    %v1894 = vadd.f32 %v1890, %v1892
    %v1895 = vadd.f32 %v1891, %v1893
    %1896 = vst.msk [vmem:[#allocation6] sm:$0xff] %vm79, %v1894
    %1897 = vst.msk [vmem:[#allocation6 + $0x8] sm:$0xff] %vm79, %v1895
    %s1898 = scalar_lea.vmem %s3, 32
    %v1899 = vld [vmem:[%s1898] sm:$0xff]
    %v1900 = vld [vmem:[%s1898 + $0x8] sm:$0xff]
    %v1901 = vld [vmem:[%s1898 + $0x10] sm:$0xff]
    %v1902 = vld [vmem:[%s1898 + $0x18] sm:$0xff]
    %s1903 = scalar_lea.vmem %s4, 1
    %v1904 = vld [vmem:[%s1903] sm:$0x1]
    %v1906 = vlaneseq
    %v1907 = vshrl.u32 %v1906, 7
    %v1908 = vsub.s32 0, %v1907
    %v1909 = vrot.slane %v1904, %v1908
    %v1912 = vsel %vm79, %v1894, 0
    %v1915 = vsel %vm79, %v1895, 0
    %1917 = vmatprep.subr.mxu0 0.0
    %1918 = vmatpush1.msra.mxu0 %v1899
    %1919 = vmatprep.subr.mxu0 0.0
    %1920 = vmatpush1.msra.mxu0 %v1900
    %1921 = vmatprep.subr.mxu0 0.0
    %1922 = vmatpush1.msra.mxu0 %v1901
    %1923 = vmatprep.subr.mxu0 0.0
    %1924 = vmatpush1.msra.mxu0 %v1902
    %1925 = vmatprep.subr.mxu0 0.0
    %1926 = vmatpush1.msra.mxu0 0.0
    %1927 = vmatprep.subr.mxu0 0.0
    %1928 = vmatpush1.msra.mxu0 0.0
    %1929 = vmatprep.subr.mxu0 0.0
    %1930 = vmatpush1.msra.mxu0 0.0
    %1931 = vmatprep.subr.mxu0 0.0
    %1932 = vmatpush1.msra.mxu0 0.0
    %1933 = vmatprep.subr.mxu0 0.0
    %1934 = vmatpush1.msra.mxu0 0.0
    %1935 = vmatprep.subr.mxu0 0.0
    %1936 = vmatpush1.msra.mxu0 0.0
    %1937 = vmatprep.subr.mxu0 0.0
    %1938 = vmatpush1.msra.mxu0 0.0
    %1939 = vmatprep.subr.mxu0 0.0
    %1940 = vmatpush1.msra.mxu0 0.0
    %1941 = vmatprep.subr.mxu0 0.0
    %1942 = vmatpush1.msra.mxu0 0.0
    %1943 = vmatprep.subr.mxu0 0.0
    %1944 = vmatpush1.msra.mxu0 0.0
    %1945 = vmatprep.subr.mxu0 0.0
    %1946 = vmatpush1.msra.mxu0 0.0
    %1947 = vmatprep.subr.mxu0 0.0
    %1948 = vmatpush1.msra.mxu0 0.0
    %1949 = vmatprep.subr.mxu0 0.0
    %1950 = vmatpush1.msra.mxu0 0.0
    %1951 = vmatprep.subr.mxu0 0.0
    %1952 = vmatpush1.msra.mxu0 0.0
    %1953 = vmatprep.subr.mxu0 0.0
    %1954 = vmatpush1.msra.mxu0 0.0
    %1955 = vmatprep.subr.mxu0 0.0
    %1956 = vmatpush1.msra.mxu0 0.0
    %1957 = vmatprep.subr.mxu0 0.0
    %1958 = vmatpush1.msra.mxu0 0.0
    %1959 = vmatprep.subr.mxu0 0.0
    %1960 = vmatpush1.msra.mxu0 0.0
    %1961 = vmatprep.subr.mxu0 0.0
    %1962 = vmatpush1.msra.mxu0 0.0
    %1963 = vmatprep.subr.mxu0 0.0
    %1964 = vmatpush1.msra.mxu0 0.0
    %1965 = vmatprep.subr.mxu0 0.0
    %1966 = vmatpush1.msra.mxu0 0.0
    %1967 = vmatprep.subr.mxu0 0.0
    %1968 = vmatpush1.msra.mxu0 0.0
    %1969 = vmatprep.subr.mxu0 0.0
    %1970 = vmatpush1.msra.mxu0 0.0
    %1971 = vmatprep.subr.mxu0 0.0
    %1972 = vmatpush1.msra.mxu0 0.0
    %1973 = vmatprep.subr.mxu0 0.0
    %1974 = vmatpush1.msra.mxu0 0.0
    %1975 = vmatprep.subr.mxu0 0.0
    %1976 = vmatpush1.msra.mxu0 0.0
    %1977 = vmatprep.subr.mxu0 0.0
    %1978 = vmatpush1.msra.mxu0 0.0
    %1979 = vmatprep.subr.mxu0 0.0
    %1980 = vmatpush1.msra.mxu0 0.0
    %1981 = vmatprep.mubr.f32.mxu0 0.0
    %1982 = vmatmul.mubr.f32.gmra.mrb[0].mxu0 %v1912
    %v1983 = vpop.f32.mrb[0].mxu0
    %v1984 = vadd.f32 %v1909, %v1983
    %v1985 = vpop.f32.mrb[0].mxu0
    %1986 = vmatprep.mubr.f32.mxu0 0.0
    %1987 = vmatmul.mubr.f32.gmra.mrb[0].mxu0 %v1915
    %v1988 = vpop.f32.mrb[0].mxu0
    %v1989 = vadd.f32 %v1909, %v1988
    %v1990 = vpop.f32.mrb[0].mxu0
    %1991 = vdwg.mxu0
    %1993 = vrot.lane.b32.xlu0 %v1984, 96
    %v1994 = vpop.permute.xlu0 %1993
    %v1995 = vsel %vm164, %v1984, 0
    %v1997 = vsel %vm164, %v1994, 0
    %1999 = vmatprep.subr.mxu0 0.0
    %2000 = vmatpush1.xpose.msra.mxu0 %v1997
    %2001 = vmatprep.subr.mxu0 0.0
    %2002 = vmatpush1.xpose.msra.mxu0 0.0
    %2003 = vmatprep.subr.mxu0 0.0
    %2004 = vmatpush1.xpose.msra.mxu0 0.0
    %2005 = vmatprep.subr.mxu0 0.0
    %2006 = vmatpush1.xpose.msra.mxu0 0.0
    %2007 = vmatprep.subr.mxu0 0.0
    %2008 = vmatpush1.xpose.msra.mxu0 0.0
    %2009 = vmatprep.subr.mxu0 0.0
    %2010 = vmatpush1.xpose.msra.mxu0 0.0
    %2011 = vmatprep.subr.mxu0 0.0
    %2012 = vmatpush1.xpose.msra.mxu0 0.0
    %2013 = vmatprep.subr.mxu0 0.0
    %2014 = vmatpush1.xpose.msra.mxu0 0.0
    %2015 = vmatprep.subr.mxu0 0.0
    %2016 = vmatpush1.xpose.msra.mxu0 0.0
    %2017 = vmatprep.subr.mxu0 0.0
    %2018 = vmatpush1.xpose.msra.mxu0 0.0
    %2019 = vmatprep.subr.mxu0 0.0
    %2020 = vmatpush1.xpose.msra.mxu0 0.0
    %2021 = vmatprep.subr.mxu0 0.0
    %2022 = vmatpush1.xpose.msra.mxu0 0.0
    %2023 = vmatprep.subr.mxu0 0.0
    %2024 = vmatpush1.xpose.msra.mxu0 0.0
    %2025 = vmatprep.subr.mxu0 0.0
    %2026 = vmatpush1.xpose.msra.mxu0 0.0
    %2027 = vmatprep.subr.mxu0 0.0
    %2028 = vmatpush1.xpose.msra.mxu0 0.0
    %2029 = vmatprep.subr.mxu0 0.0
    %2030 = vmatpush1.xpose.msra.mxu0 0.0
    %2031 = vmatprep.subr.mxu0 0.0
    %2032 = vmatpush1.xpose.msra.mxu0 0.0
    %2033 = vmatprep.subr.mxu0 0.0
    %2034 = vmatpush1.xpose.msra.mxu0 0.0
    %2035 = vmatprep.subr.mxu0 0.0
    %2036 = vmatpush1.xpose.msra.mxu0 0.0
    %2037 = vmatprep.subr.mxu0 0.0
    %2038 = vmatpush1.xpose.msra.mxu0 0.0
    %2039 = vmatprep.subr.mxu0 0.0
    %2040 = vmatpush1.xpose.msra.mxu0 0.0
    %2041 = vmatprep.subr.mxu0 0.0
    %2042 = vmatpush1.xpose.msra.mxu0 0.0
    %2043 = vmatprep.subr.mxu0 0.0
    %2044 = vmatpush1.xpose.msra.mxu0 0.0
    %2045 = vmatprep.subr.mxu0 0.0
    %2046 = vmatpush1.xpose.msra.mxu0 0.0
    %2047 = vmatprep.subr.mxu0 0.0
    %2048 = vmatpush1.xpose.msra.mxu0 0.0
    %2049 = vmatprep.subr.mxu0 0.0
    %2050 = vmatpush1.xpose.msra.mxu0 0.0
    %2051 = vmatprep.subr.mxu0 0.0
    %2052 = vmatpush1.xpose.msra.mxu0 0.0
    %2053 = vmatprep.subr.mxu0 0.0
    %2054 = vmatpush1.xpose.msra.mxu0 0.0
    %2055 = vmatprep.subr.mxu0 0.0
    %2056 = vmatpush1.xpose.msra.mxu0 0.0
    %2057 = vmatprep.subr.mxu0 0.0
    %2058 = vmatpush1.xpose.msra.mxu0 0.0
    %2059 = vmatprep.subr.mxu0 0.0
    %2060 = vmatpush1.xpose.msra.mxu0 0.0
    %2061 = vmatprep.subr.mxu0 0.0
    %2062 = vmatpush1.xpose.msra.mxu0 0.0
    %2063 = vmatprep.mubr.f32.mxu0 0.0
    %2064 = vmatmul.mubr.f32.gmra.mrb[0].mxu0 %v1995
    %v2065 = vpop.f32.mrb[0].mxu0
    %v2066 = vadd.f32 0.0, %v2065
    %v2067 = vpop.f32.mrb[0].mxu0
    %2068 = vdwg.mxu0
    %2070 = vrot.lane.b32.xlu0 %v1989, 96
    %v2071 = vpop.permute.xlu0 %2070
    %v2072 = vsel %vm164, %v1989, 0
    %v2074 = vsel %vm164, %v2071, 0
    %2076 = vmatprep.subr.mxu0 0.0
    %2077 = vmatpush1.xpose.msra.mxu0 %v2074
    %2078 = vmatprep.subr.mxu0 0.0
    %2079 = vmatpush1.xpose.msra.mxu0 0.0
    %2080 = vmatprep.subr.mxu0 0.0
    %2081 = vmatpush1.xpose.msra.mxu0 0.0
    %2082 = vmatprep.subr.mxu0 0.0
    %2083 = vmatpush1.xpose.msra.mxu0 0.0
    %2084 = vmatprep.subr.mxu0 0.0
    %2085 = vmatpush1.xpose.msra.mxu0 0.0
    %2086 = vmatprep.subr.mxu0 0.0
    %2087 = vmatpush1.xpose.msra.mxu0 0.0
    %2088 = vmatprep.subr.mxu0 0.0
    %2089 = vmatpush1.xpose.msra.mxu0 0.0
    %2090 = vmatprep.subr.mxu0 0.0
    %2091 = vmatpush1.xpose.msra.mxu0 0.0
    %2092 = vmatprep.subr.mxu0 0.0
    %2093 = vmatpush1.xpose.msra.mxu0 0.0
    %2094 = vmatprep.subr.mxu0 0.0
    %2095 = vmatpush1.xpose.msra.mxu0 0.0
    %2096 = vmatprep.subr.mxu0 0.0
    %2097 = vmatpush1.xpose.msra.mxu0 0.0
    %2098 = vmatprep.subr.mxu0 0.0
    %2099 = vmatpush1.xpose.msra.mxu0 0.0
    %2100 = vmatprep.subr.mxu0 0.0
    %2101 = vmatpush1.xpose.msra.mxu0 0.0
    %2102 = vmatprep.subr.mxu0 0.0
    %2103 = vmatpush1.xpose.msra.mxu0 0.0
    %2104 = vmatprep.subr.mxu0 0.0
    %2105 = vmatpush1.xpose.msra.mxu0 0.0
    %2106 = vmatprep.subr.mxu0 0.0
    %2107 = vmatpush1.xpose.msra.mxu0 0.0
    %2108 = vmatprep.subr.mxu0 0.0
    %2109 = vmatpush1.xpose.msra.mxu0 0.0
    %2110 = vmatprep.subr.mxu0 0.0
    %2111 = vmatpush1.xpose.msra.mxu0 0.0
    %2112 = vmatprep.subr.mxu0 0.0
    %2113 = vmatpush1.xpose.msra.mxu0 0.0
    %2114 = vmatprep.subr.mxu0 0.0
    %2115 = vmatpush1.xpose.msra.mxu0 0.0
    %2116 = vmatprep.subr.mxu0 0.0
    %2117 = vmatpush1.xpose.msra.mxu0 0.0
    %2118 = vmatprep.subr.mxu0 0.0
    %2119 = vmatpush1.xpose.msra.mxu0 0.0
    %2120 = vmatprep.subr.mxu0 0.0
    %2121 = vmatpush1.xpose.msra.mxu0 0.0
    %2122 = vmatprep.subr.mxu0 0.0
    %2123 = vmatpush1.xpose.msra.mxu0 0.0
    %2124 = vmatprep.subr.mxu0 0.0
    %2125 = vmatpush1.xpose.msra.mxu0 0.0
    %2126 = vmatprep.subr.mxu0 0.0
    %2127 = vmatpush1.xpose.msra.mxu0 0.0
    %2128 = vmatprep.subr.mxu0 0.0
    %2129 = vmatpush1.xpose.msra.mxu0 0.0
    %2130 = vmatprep.subr.mxu0 0.0
    %2131 = vmatpush1.xpose.msra.mxu0 0.0
    %2132 = vmatprep.subr.mxu0 0.0
    %2133 = vmatpush1.xpose.msra.mxu0 0.0
    %2134 = vmatprep.subr.mxu0 0.0
    %2135 = vmatpush1.xpose.msra.mxu0 0.0
    %2136 = vmatprep.subr.mxu0 0.0
    %2137 = vmatpush1.xpose.msra.mxu0 0.0
    %2138 = vmatprep.subr.mxu0 0.0
    %2139 = vmatpush1.xpose.msra.mxu0 0.0
    %2140 = vmatprep.mubr.f32.mxu0 0.0
    %2141 = vmatmul.mubr.f32.gmra.mrb[0].mxu0 %v2072
    %v2142 = vpop.f32.mrb[0].mxu0
    %v2143 = vadd.f32 0.0, %v2142
    %v2144 = vpop.f32.mrb[0].mxu0
    %2145 = vdwg.mxu0
    %v2146 = vmul.f32 %v2066, 0.35355338
    %v2147 = vmul.f32 %v2143, 0.35355338
    %v2148 = vadd.f32 %v2146, %v61
    %v2149 = vadd.f32 %v2147, %v65
    %v2150 = vsel %vm164, %v2148, -inf
    %2151 = vmax.xlane.f32.xlu0 %v2150
    %v2152 = vpop.xlane.xlu0 %2151
    %v2153 = vsel %vm164, %v2149, -inf
    %2154 = vmax.xlane.f32.xlu0 %v2153
    %v2155 = vpop.xlane.xlu0 %2154
    %v2156 = vsub.f32 %v2148, %v2152
    %v2157 = vsub.f32 %v2149, %v2155
    %v2158 = vmul.f32 %v2156, 1.442695
    %v2159 = vpow.pop %v2158
    %v2160 = vmul.f32 %v2157, 1.442695
    %v2161 = vpow.pop %v2160
    %v2162 = vsel %vm164, %v2159, 0.0
    %2163 = vadd.xlane.f32.xlu0 %v2162
    %v2164 = vpop.xlane.xlu0 %2163
    %v2165 = vsel %vm164, %v2161, 0.0
    %2166 = vadd.xlane.f32.xlu0 %v2165
    %v2167 = vpop.xlane.xlu0 %2166
    %v2168 = vrcp.pop %v2164
    %v2169 = vmul.f32 %v2159, %v2168
    %v2170 = vrcp.pop %v2167
    %v2171 = vmul.f32 %v2161, %v2170
    %2172 = vrot.lane.b32.xlu0 %v1984, 64
    %v2173 = vpop.permute.xlu0 %2172
    %v2176 = vsel %vm164, %v2169, 0
    %2178 = vmatprep.subr.mxu0 0.0
    %2179 = vmatpush1.msra.mxu0 %v2173
    %2180 = vmatprep.subr.mxu0 0.0
    %2181 = vmatpush1.msra.mxu0 0.0
    %2182 = vmatprep.subr.mxu0 0.0
    %2183 = vmatpush1.msra.mxu0 0.0
    %2184 = vmatprep.subr.mxu0 0.0
    %2185 = vmatpush1.msra.mxu0 0.0
    %2186 = vmatprep.subr.mxu0 0.0
    %2187 = vmatpush1.msra.mxu0 0.0
    %2188 = vmatprep.subr.mxu0 0.0
    %2189 = vmatpush1.msra.mxu0 0.0
    %2190 = vmatprep.subr.mxu0 0.0
    %2191 = vmatpush1.msra.mxu0 0.0
    %2192 = vmatprep.subr.mxu0 0.0
    %2193 = vmatpush1.msra.mxu0 0.0
    %2194 = vmatprep.subr.mxu0 0.0
    %2195 = vmatpush1.msra.mxu0 0.0
    %2196 = vmatprep.subr.mxu0 0.0
    %2197 = vmatpush1.msra.mxu0 0.0
    %2198 = vmatprep.subr.mxu0 0.0
    %2199 = vmatpush1.msra.mxu0 0.0
    %2200 = vmatprep.subr.mxu0 0.0
    %2201 = vmatpush1.msra.mxu0 0.0
    %2202 = vmatprep.subr.mxu0 0.0
    %2203 = vmatpush1.msra.mxu0 0.0
    %2204 = vmatprep.subr.mxu0 0.0
    %2205 = vmatpush1.msra.mxu0 0.0
    %2206 = vmatprep.subr.mxu0 0.0
    %2207 = vmatpush1.msra.mxu0 0.0
    %2208 = vmatprep.subr.mxu0 0.0
    %2209 = vmatpush1.msra.mxu0 0.0
    %2210 = vmatprep.subr.mxu0 0.0
    %2211 = vmatpush1.msra.mxu0 0.0
    %2212 = vmatprep.subr.mxu0 0.0
    %2213 = vmatpush1.msra.mxu0 0.0
    %2214 = vmatprep.subr.mxu0 0.0
    %2215 = vmatpush1.msra.mxu0 0.0
    %2216 = vmatprep.subr.mxu0 0.0
    %2217 = vmatpush1.msra.mxu0 0.0
    %2218 = vmatprep.subr.mxu0 0.0
    %2219 = vmatpush1.msra.mxu0 0.0
    %2220 = vmatprep.subr.mxu0 0.0
    %2221 = vmatpush1.msra.mxu0 0.0
    %2222 = vmatprep.subr.mxu0 0.0
    %2223 = vmatpush1.msra.mxu0 0.0
    %2224 = vmatprep.subr.mxu0 0.0
    %2225 = vmatpush1.msra.mxu0 0.0
    %2226 = vmatprep.subr.mxu0 0.0
    %2227 = vmatpush1.msra.mxu0 0.0
    %2228 = vmatprep.subr.mxu0 0.0
    %2229 = vmatpush1.msra.mxu0 0.0
    %2230 = vmatprep.subr.mxu0 0.0
    %2231 = vmatpush1.msra.mxu0 0.0
    %2232 = vmatprep.subr.mxu0 0.0
    %2233 = vmatpush1.msra.mxu0 0.0
    %2234 = vmatprep.subr.mxu0 0.0
    %2235 = vmatpush1.msra.mxu0 0.0
    %2236 = vmatprep.subr.mxu0 0.0
    %2237 = vmatpush1.msra.mxu0 0.0
    %2238 = vmatprep.subr.mxu0 0.0
    %2239 = vmatpush1.msra.mxu0 0.0
    %2240 = vmatprep.subr.mxu0 0.0
    %2241 = vmatpush1.msra.mxu0 0.0
    %2242 = vmatprep.mubr.f32.mxu0 0.0
    %2243 = vmatmul.mubr.f32.gmra.mrb[0].mxu0 %v2176
    %v2244 = vpop.f32.mrb[0].mxu0
    %v2245 = vadd.f32 0.0, %v2244
    %v2246 = vpop.f32.mrb[0].mxu0
    %2247 = vdwg.mxu0
    %2248 = vrot.lane.b32.xlu0 %v1989, 64
    %v2249 = vpop.permute.xlu0 %2248
    %v2252 = vsel %vm164, %v2171, 0
    %2254 = vmatprep.subr.mxu0 0.0
    %2255 = vmatpush1.msra.mxu0 %v2249
    %2256 = vmatprep.subr.mxu0 0.0
    %2257 = vmatpush1.msra.mxu0 0.0
    %2258 = vmatprep.subr.mxu0 0.0
    %2259 = vmatpush1.msra.mxu0 0.0
    %2260 = vmatprep.subr.mxu0 0.0
    %2261 = vmatpush1.msra.mxu0 0.0
    %2262 = vmatprep.subr.mxu0 0.0
    %2263 = vmatpush1.msra.mxu0 0.0
    %2264 = vmatprep.subr.mxu0 0.0
    %2265 = vmatpush1.msra.mxu0 0.0
    %2266 = vmatprep.subr.mxu0 0.0
    %2267 = vmatpush1.msra.mxu0 0.0
    %2268 = vmatprep.subr.mxu0 0.0
    %2269 = vmatpush1.msra.mxu0 0.0
    %2270 = vmatprep.subr.mxu0 0.0
    %2271 = vmatpush1.msra.mxu0 0.0
    %2272 = vmatprep.subr.mxu0 0.0
    %2273 = vmatpush1.msra.mxu0 0.0
    %2274 = vmatprep.subr.mxu0 0.0
    %2275 = vmatpush1.msra.mxu0 0.0
    %2276 = vmatprep.subr.mxu0 0.0
    %2277 = vmatpush1.msra.mxu0 0.0
    %2278 = vmatprep.subr.mxu0 0.0
    %2279 = vmatpush1.msra.mxu0 0.0
    %2280 = vmatprep.subr.mxu0 0.0
    %2281 = vmatpush1.msra.mxu0 0.0
    %2282 = vmatprep.subr.mxu0 0.0
    %2283 = vmatpush1.msra.mxu0 0.0
    %2284 = vmatprep.subr.mxu0 0.0
    %2285 = vmatpush1.msra.mxu0 0.0
    %2286 = vmatprep.subr.mxu0 0.0
    %2287 = vmatpush1.msra.mxu0 0.0
    %2288 = vmatprep.subr.mxu0 0.0
    %2289 = vmatpush1.msra.mxu0 0.0
    %2290 = vmatprep.subr.mxu0 0.0
    %2291 = vmatpush1.msra.mxu0 0.0
    %2292 = vmatprep.subr.mxu0 0.0
    %2293 = vmatpush1.msra.mxu0 0.0
    %2294 = vmatprep.subr.mxu0 0.0
    %2295 = vmatpush1.msra.mxu0 0.0
    %2296 = vmatprep.subr.mxu0 0.0
    %2297 = vmatpush1.msra.mxu0 0.0
    %2298 = vmatprep.subr.mxu0 0.0
    %2299 = vmatpush1.msra.mxu0 0.0
    %2300 = vmatprep.subr.mxu0 0.0
    %2301 = vmatpush1.msra.mxu0 0.0
    %2302 = vmatprep.subr.mxu0 0.0
    %2303 = vmatpush1.msra.mxu0 0.0
    %2304 = vmatprep.subr.mxu0 0.0
    %2305 = vmatpush1.msra.mxu0 0.0
    %2306 = vmatprep.subr.mxu0 0.0
    %2307 = vmatpush1.msra.mxu0 0.0
    %2308 = vmatprep.subr.mxu0 0.0
    %2309 = vmatpush1.msra.mxu0 0.0
    %2310 = vmatprep.subr.mxu0 0.0
    %2311 = vmatpush1.msra.mxu0 0.0
    %2312 = vmatprep.subr.mxu0 0.0
    %2313 = vmatpush1.msra.mxu0 0.0
    %2314 = vmatprep.subr.mxu0 0.0
    %2315 = vmatpush1.msra.mxu0 0.0
    %2316 = vmatprep.subr.mxu0 0.0
    %2317 = vmatpush1.msra.mxu0 0.0
    %2318 = vmatprep.mubr.f32.mxu0 0.0
    %2319 = vmatmul.mubr.f32.gmra.mrb[0].mxu0 %v2252
    %v2320 = vpop.f32.mrb[0].mxu0
    %v2321 = vadd.f32 0.0, %v2320
    %v2322 = vpop.f32.mrb[0].mxu0
    %2323 = vdwg.mxu0
    %2324 = vst.msk [vmem:[#allocation2] sm:$0xff] %vm164, %v2245
    %2325 = vst.msk [vmem:[#allocation2 + $0x8] sm:$0xff] %vm164, %v2321
    %2326 = vrot.lane.b32.xlu0 %v1984, 120
    %v2327 = vpop.permute.xlu0 %2326
    %2328 = vrot.lane.b32.xlu0 %v1984, 88
    %v2329 = vpop.permute.xlu0 %2328
    %v2330 = vsel %vm164, %v2327, 0
    %v2332 = vsel %vm164, %v2329, 0
    %2334 = vmatprep.subr.mxu0 0.0
    %2335 = vmatpush1.xpose.msra.mxu0 %v2332
    %2336 = vmatprep.subr.mxu0 0.0
    %2337 = vmatpush1.xpose.msra.mxu0 0.0
    %2338 = vmatprep.subr.mxu0 0.0
    %2339 = vmatpush1.xpose.msra.mxu0 0.0
    %2340 = vmatprep.subr.mxu0 0.0
    %2341 = vmatpush1.xpose.msra.mxu0 0.0
    %2342 = vmatprep.subr.mxu0 0.0
    %2343 = vmatpush1.xpose.msra.mxu0 0.0
    %2344 = vmatprep.subr.mxu0 0.0
    %2345 = vmatpush1.xpose.msra.mxu0 0.0
    %2346 = vmatprep.subr.mxu0 0.0
    %2347 = vmatpush1.xpose.msra.mxu0 0.0
    %2348 = vmatprep.subr.mxu0 0.0
    %2349 = vmatpush1.xpose.msra.mxu0 0.0
    %2350 = vmatprep.subr.mxu0 0.0
    %2351 = vmatpush1.xpose.msra.mxu0 0.0
    %2352 = vmatprep.subr.mxu0 0.0
    %2353 = vmatpush1.xpose.msra.mxu0 0.0
    %2354 = vmatprep.subr.mxu0 0.0
    %2355 = vmatpush1.xpose.msra.mxu0 0.0
    %2356 = vmatprep.subr.mxu0 0.0
    %2357 = vmatpush1.xpose.msra.mxu0 0.0
    %2358 = vmatprep.subr.mxu0 0.0
    %2359 = vmatpush1.xpose.msra.mxu0 0.0
    %2360 = vmatprep.subr.mxu0 0.0
    %2361 = vmatpush1.xpose.msra.mxu0 0.0
    %2362 = vmatprep.subr.mxu0 0.0
    %2363 = vmatpush1.xpose.msra.mxu0 0.0
    %2364 = vmatprep.subr.mxu0 0.0
    %2365 = vmatpush1.xpose.msra.mxu0 0.0
    %2366 = vmatprep.subr.mxu0 0.0
    %2367 = vmatpush1.xpose.msra.mxu0 0.0
    %2368 = vmatprep.subr.mxu0 0.0
    %2369 = vmatpush1.xpose.msra.mxu0 0.0
    %2370 = vmatprep.subr.mxu0 0.0
    %2371 = vmatpush1.xpose.msra.mxu0 0.0
    %2372 = vmatprep.subr.mxu0 0.0
    %2373 = vmatpush1.xpose.msra.mxu0 0.0
    %2374 = vmatprep.subr.mxu0 0.0
    %2375 = vmatpush1.xpose.msra.mxu0 0.0
    %2376 = vmatprep.subr.mxu0 0.0
    %2377 = vmatpush1.xpose.msra.mxu0 0.0
    %2378 = vmatprep.subr.mxu0 0.0
    %2379 = vmatpush1.xpose.msra.mxu0 0.0
    %2380 = vmatprep.subr.mxu0 0.0
    %2381 = vmatpush1.xpose.msra.mxu0 0.0
    %2382 = vmatprep.subr.mxu0 0.0
    %2383 = vmatpush1.xpose.msra.mxu0 0.0
    %2384 = vmatprep.subr.mxu0 0.0
    %2385 = vmatpush1.xpose.msra.mxu0 0.0
    %2386 = vmatprep.subr.mxu0 0.0
    %2387 = vmatpush1.xpose.msra.mxu0 0.0
    %2388 = vmatprep.subr.mxu0 0.0
    %2389 = vmatpush1.xpose.msra.mxu0 0.0
    %2390 = vmatprep.subr.mxu0 0.0
    %2391 = vmatpush1.xpose.msra.mxu0 0.0
    %2392 = vmatprep.subr.mxu0 0.0
    %2393 = vmatpush1.xpose.msra.mxu0 0.0
    %2394 = vmatprep.subr.mxu0 0.0
    %2395 = vmatpush1.xpose.msra.mxu0 0.0
    %2396 = vmatprep.subr.mxu0 0.0
    %2397 = vmatpush1.xpose.msra.mxu0 0.0
    %2398 = vmatprep.mubr.f32.mxu0 0.0
    %2399 = vmatmul.mubr.f32.gmra.mrb[0].mxu0 %v2330
    %v2400 = vpop.f32.mrb[0].mxu0
    %v2401 = vadd.f32 0.0, %v2400
    %v2402 = vpop.f32.mrb[0].mxu0
    %2403 = vdwg.mxu0
    %2404 = vrot.lane.b32.xlu0 %v1989, 120
    %v2405 = vpop.permute.xlu0 %2404
    %2406 = vrot.lane.b32.xlu0 %v1989, 88
    %v2407 = vpop.permute.xlu0 %2406
    %v2408 = vsel %vm164, %v2405, 0
    %v2410 = vsel %vm164, %v2407, 0
    %2412 = vmatprep.subr.mxu0 0.0
    %2413 = vmatpush1.xpose.msra.mxu0 %v2410
    %2414 = vmatprep.subr.mxu0 0.0
    %2415 = vmatpush1.xpose.msra.mxu0 0.0
    %2416 = vmatprep.subr.mxu0 0.0
    %2417 = vmatpush1.xpose.msra.mxu0 0.0
    %2418 = vmatprep.subr.mxu0 0.0
    %2419 = vmatpush1.xpose.msra.mxu0 0.0
    %2420 = vmatprep.subr.mxu0 0.0
    %2421 = vmatpush1.xpose.msra.mxu0 0.0
    %2422 = vmatprep.subr.mxu0 0.0
    %2423 = vmatpush1.xpose.msra.mxu0 0.0
    %2424 = vmatprep.subr.mxu0 0.0
    %2425 = vmatpush1.xpose.msra.mxu0 0.0
    %2426 = vmatprep.subr.mxu0 0.0
    %2427 = vmatpush1.xpose.msra.mxu0 0.0
    %2428 = vmatprep.subr.mxu0 0.0
    %2429 = vmatpush1.xpose.msra.mxu0 0.0
    %2430 = vmatprep.subr.mxu0 0.0
    %2431 = vmatpush1.xpose.msra.mxu0 0.0
    %2432 = vmatprep.subr.mxu0 0.0
    %2433 = vmatpush1.xpose.msra.mxu0 0.0
    %2434 = vmatprep.subr.mxu0 0.0
    %2435 = vmatpush1.xpose.msra.mxu0 0.0
    %2436 = vmatprep.subr.mxu0 0.0
    %2437 = vmatpush1.xpose.msra.mxu0 0.0
    %2438 = vmatprep.subr.mxu0 0.0
    %2439 = vmatpush1.xpose.msra.mxu0 0.0
    %2440 = vmatprep.subr.mxu0 0.0
    %2441 = vmatpush1.xpose.msra.mxu0 0.0
    %2442 = vmatprep.subr.mxu0 0.0
    %2443 = vmatpush1.xpose.msra.mxu0 0.0
    %2444 = vmatprep.subr.mxu0 0.0
    %2445 = vmatpush1.xpose.msra.mxu0 0.0
    %2446 = vmatprep.subr.mxu0 0.0
    %2447 = vmatpush1.xpose.msra.mxu0 0.0
    %2448 = vmatprep.subr.mxu0 0.0
    %2449 = vmatpush1.xpose.msra.mxu0 0.0
    %2450 = vmatprep.subr.mxu0 0.0
    %2451 = vmatpush1.xpose.msra.mxu0 0.0
    %2452 = vmatprep.subr.mxu0 0.0
    %2453 = vmatpush1.xpose.msra.mxu0 0.0
    %2454 = vmatprep.subr.mxu0 0.0
    %2455 = vmatpush1.xpose.msra.mxu0 0.0
    %2456 = vmatprep.subr.mxu0 0.0
    %2457 = vmatpush1.xpose.msra.mxu0 0.0
    %2458 = vmatprep.subr.mxu0 0.0
    %2459 = vmatpush1.xpose.msra.mxu0 0.0
    %2460 = vmatprep.subr.mxu0 0.0
    %2461 = vmatpush1.xpose.msra.mxu0 0.0
    %2462 = vmatprep.subr.mxu0 0.0
    %2463 = vmatpush1.xpose.msra.mxu0 0.0
    %2464 = vmatprep.subr.mxu0 0.0
    %2465 = vmatpush1.xpose.msra.mxu0 0.0
    %2466 = vmatprep.subr.mxu0 0.0
    %2467 = vmatpush1.xpose.msra.mxu0 0.0
    %2468 = vmatprep.subr.mxu0 0.0
    %2469 = vmatpush1.xpose.msra.mxu0 0.0
    %2470 = vmatprep.subr.mxu0 0.0
    %2471 = vmatpush1.xpose.msra.mxu0 0.0
    %2472 = vmatprep.subr.mxu0 0.0
    %2473 = vmatpush1.xpose.msra.mxu0 0.0
    %2474 = vmatprep.subr.mxu0 0.0
    %2475 = vmatpush1.xpose.msra.mxu0 0.0
    %2476 = vmatprep.mubr.f32.mxu0 0.0
    %2477 = vmatmul.mubr.f32.gmra.mrb[0].mxu0 %v2408
    %v2478 = vpop.f32.mrb[0].mxu0
    %v2479 = vadd.f32 0.0, %v2478
    %v2480 = vpop.f32.mrb[0].mxu0
    %2481 = vdwg.mxu0
    %v2482 = vmul.f32 %v2401, 0.35355338
    %v2483 = vmul.f32 %v2479, 0.35355338
    %v2484 = vadd.f32 %v2482, %v61
    %v2485 = vadd.f32 %v2483, %v65
    %v2486 = vsel %vm164, %v2484, -inf
    %2487 = vmax.xlane.f32.xlu0 %v2486
    %v2488 = vpop.xlane.xlu0 %2487
    %v2489 = vsel %vm164, %v2485, -inf
    %2490 = vmax.xlane.f32.xlu0 %v2489
    %v2491 = vpop.xlane.xlu0 %2490
    %v2492 = vsub.f32 %v2484, %v2488
    %v2493 = vsub.f32 %v2485, %v2491
    %v2494 = vmul.f32 %v2492, 1.442695
    %v2495 = vpow.pop %v2494
    %v2496 = vmul.f32 %v2493, 1.442695
    %v2497 = vpow.pop %v2496
    %v2498 = vsel %vm164, %v2495, 0.0
    %2499 = vadd.xlane.f32.xlu0 %v2498
    %v2500 = vpop.xlane.xlu0 %2499
    %v2501 = vsel %vm164, %v2497, 0.0
    %2502 = vadd.xlane.f32.xlu0 %v2501
    %v2503 = vpop.xlane.xlu0 %2502
    %v2504 = vrcp.pop %v2500
    %v2505 = vmul.f32 %v2495, %v2504
    %v2506 = vrcp.pop %v2503
    %v2507 = vmul.f32 %v2497, %v2506
    %2508 = vrot.lane.b32.xlu0 %v1984, 56
    %v2509 = vpop.permute.xlu0 %2508
    %v2512 = vsel %vm164, %v2505, 0
    %2514 = vmatprep.subr.mxu0 0.0
    %2515 = vmatpush1.msra.mxu0 %v2509
    %2516 = vmatprep.subr.mxu0 0.0
    %2517 = vmatpush1.msra.mxu0 0.0
    %2518 = vmatprep.subr.mxu0 0.0
    %2519 = vmatpush1.msra.mxu0 0.0
    %2520 = vmatprep.subr.mxu0 0.0
    %2521 = vmatpush1.msra.mxu0 0.0
    %2522 = vmatprep.subr.mxu0 0.0
    %2523 = vmatpush1.msra.mxu0 0.0
    %2524 = vmatprep.subr.mxu0 0.0
    %2525 = vmatpush1.msra.mxu0 0.0
    %2526 = vmatprep.subr.mxu0 0.0
    %2527 = vmatpush1.msra.mxu0 0.0
    %2528 = vmatprep.subr.mxu0 0.0
    %2529 = vmatpush1.msra.mxu0 0.0
    %2530 = vmatprep.subr.mxu0 0.0
    %2531 = vmatpush1.msra.mxu0 0.0
    %2532 = vmatprep.subr.mxu0 0.0
    %2533 = vmatpush1.msra.mxu0 0.0
    %2534 = vmatprep.subr.mxu0 0.0
    %2535 = vmatpush1.msra.mxu0 0.0
    %2536 = vmatprep.subr.mxu0 0.0
    %2537 = vmatpush1.msra.mxu0 0.0
    %2538 = vmatprep.subr.mxu0 0.0
    %2539 = vmatpush1.msra.mxu0 0.0
    %2540 = vmatprep.subr.mxu0 0.0
    %2541 = vmatpush1.msra.mxu0 0.0
    %2542 = vmatprep.subr.mxu0 0.0
    %2543 = vmatpush1.msra.mxu0 0.0
    %2544 = vmatprep.subr.mxu0 0.0
    %2545 = vmatpush1.msra.mxu0 0.0
    %2546 = vmatprep.subr.mxu0 0.0
    %2547 = vmatpush1.msra.mxu0 0.0
    %2548 = vmatprep.subr.mxu0 0.0
    %2549 = vmatpush1.msra.mxu0 0.0
    %2550 = vmatprep.subr.mxu0 0.0
    %2551 = vmatpush1.msra.mxu0 0.0
    %2552 = vmatprep.subr.mxu0 0.0
    %2553 = vmatpush1.msra.mxu0 0.0
    %2554 = vmatprep.subr.mxu0 0.0
    %2555 = vmatpush1.msra.mxu0 0.0
    %2556 = vmatprep.subr.mxu0 0.0
    %2557 = vmatpush1.msra.mxu0 0.0
    %2558 = vmatprep.subr.mxu0 0.0
    %2559 = vmatpush1.msra.mxu0 0.0
    %2560 = vmatprep.subr.mxu0 0.0
    %2561 = vmatpush1.msra.mxu0 0.0
    %2562 = vmatprep.subr.mxu0 0.0
    %2563 = vmatpush1.msra.mxu0 0.0
    %2564 = vmatprep.subr.mxu0 0.0
    %2565 = vmatpush1.msra.mxu0 0.0
    %2566 = vmatprep.subr.mxu0 0.0
    %2567 = vmatpush1.msra.mxu0 0.0
    %2568 = vmatprep.subr.mxu0 0.0
    %2569 = vmatpush1.msra.mxu0 0.0
    %2570 = vmatprep.subr.mxu0 0.0
    %2571 = vmatpush1.msra.mxu0 0.0
    %2572 = vmatprep.subr.mxu0 0.0
    %2573 = vmatpush1.msra.mxu0 0.0
    %2574 = vmatprep.subr.mxu0 0.0
    %2575 = vmatpush1.msra.mxu0 0.0
    %2576 = vmatprep.subr.mxu0 0.0
    %2577 = vmatpush1.msra.mxu0 0.0
    %2578 = vmatprep.mubr.f32.mxu0 0.0
    %2579 = vmatmul.mubr.f32.gmra.mrb[0].mxu0 %v2512
    %v2580 = vpop.f32.mrb[0].mxu0
    %v2581 = vadd.f32 0.0, %v2580
    %v2582 = vpop.f32.mrb[0].mxu0
    %2583 = vdwg.mxu0
    %2584 = vrot.lane.b32.xlu0 %v1989, 56
    %v2585 = vpop.permute.xlu0 %2584
    %v2588 = vsel %vm164, %v2507, 0
    %2590 = vmatprep.subr.mxu0 0.0
    %2591 = vmatpush1.msra.mxu0 %v2585
    %2592 = vmatprep.subr.mxu0 0.0
    %2593 = vmatpush1.msra.mxu0 0.0
    %2594 = vmatprep.subr.mxu0 0.0
    %2595 = vmatpush1.msra.mxu0 0.0
    %2596 = vmatprep.subr.mxu0 0.0
    %2597 = vmatpush1.msra.mxu0 0.0
    %2598 = vmatprep.subr.mxu0 0.0
    %2599 = vmatpush1.msra.mxu0 0.0
    %2600 = vmatprep.subr.mxu0 0.0
    %2601 = vmatpush1.msra.mxu0 0.0
    %2602 = vmatprep.subr.mxu0 0.0
    %2603 = vmatpush1.msra.mxu0 0.0
    %2604 = vmatprep.subr.mxu0 0.0
    %2605 = vmatpush1.msra.mxu0 0.0
    %2606 = vmatprep.subr.mxu0 0.0
    %2607 = vmatpush1.msra.mxu0 0.0
    %2608 = vmatprep.subr.mxu0 0.0
    %2609 = vmatpush1.msra.mxu0 0.0
    %2610 = vmatprep.subr.mxu0 0.0
    %2611 = vmatpush1.msra.mxu0 0.0
    %2612 = vmatprep.subr.mxu0 0.0
    %2613 = vmatpush1.msra.mxu0 0.0
    %2614 = vmatprep.subr.mxu0 0.0
    %2615 = vmatpush1.msra.mxu0 0.0
    %2616 = vmatprep.subr.mxu0 0.0
    %2617 = vmatpush1.msra.mxu0 0.0
    %2618 = vmatprep.subr.mxu0 0.0
    %2619 = vmatpush1.msra.mxu0 0.0
    %2620 = vmatprep.subr.mxu0 0.0
    %2621 = vmatpush1.msra.mxu0 0.0
    %2622 = vmatprep.subr.mxu0 0.0
    %2623 = vmatpush1.msra.mxu0 0.0
    %2624 = vmatprep.subr.mxu0 0.0
    %2625 = vmatpush1.msra.mxu0 0.0
    %2626 = vmatprep.subr.mxu0 0.0
    %2627 = vmatpush1.msra.mxu0 0.0
    %2628 = vmatprep.subr.mxu0 0.0
    %2629 = vmatpush1.msra.mxu0 0.0
    %2630 = vmatprep.subr.mxu0 0.0
    %2631 = vmatpush1.msra.mxu0 0.0
    %2632 = vmatprep.subr.mxu0 0.0
    %2633 = vmatpush1.msra.mxu0 0.0
    %2634 = vmatprep.subr.mxu0 0.0
    %2635 = vmatpush1.msra.mxu0 0.0
    %2636 = vmatprep.subr.mxu0 0.0
    %2637 = vmatpush1.msra.mxu0 0.0
    %2638 = vmatprep.subr.mxu0 0.0
    %2639 = vmatpush1.msra.mxu0 0.0
    %2640 = vmatprep.subr.mxu0 0.0
    %2641 = vmatpush1.msra.mxu0 0.0
    %2642 = vmatprep.subr.mxu0 0.0
    %2643 = vmatpush1.msra.mxu0 0.0
    %2644 = vmatprep.subr.mxu0 0.0
    %2645 = vmatpush1.msra.mxu0 0.0
    %2646 = vmatprep.subr.mxu0 0.0
    %2647 = vmatpush1.msra.mxu0 0.0
    %2648 = vmatprep.subr.mxu0 0.0
    %2649 = vmatpush1.msra.mxu0 0.0
    %2650 = vmatprep.subr.mxu0 0.0
    %2651 = vmatpush1.msra.mxu0 0.0
    %2652 = vmatprep.subr.mxu0 0.0
    %2653 = vmatpush1.msra.mxu0 0.0
    %2654 = vmatprep.mubr.f32.mxu0 0.0
    %2655 = vmatmul.mubr.f32.gmra.mrb[0].mxu0 %v2588
    %v2656 = vpop.f32.mrb[0].mxu0
    %v2657 = vadd.f32 0.0, %v2656
    %v2658 = vpop.f32.mrb[0].mxu0
    %2659 = vdwg.mxu0
    %2662 = vrot.lane.b32.xlu0 %v2581, 8
    %v2663 = vpop.permute.xlu0 %2662
    %2664 = vrot.lane.b32.xlu0 %v2657, 8
    %v2665 = vpop.permute.xlu0 %2664
    %2668 = vst.msk [vmem:[#allocation2] sm:$0xff] %vm838, %v2663
    %2669 = vst.msk [vmem:[#allocation2 + $0x8] sm:$0xff] %vm838, %v2665
    %2670 = vrot.lane.b32.xlu0 %v1984, 112
    %v2671 = vpop.permute.xlu0 %2670
    %2672 = vrot.lane.b32.xlu0 %v1984, 80
    %v2673 = vpop.permute.xlu0 %2672
    %v2674 = vsel %vm164, %v2671, 0
    %v2676 = vsel %vm164, %v2673, 0
    %2678 = vmatprep.subr.mxu0 0.0
    %2679 = vmatpush1.xpose.msra.mxu0 %v2676
    %2680 = vmatprep.subr.mxu0 0.0
    %2681 = vmatpush1.xpose.msra.mxu0 0.0
    %2682 = vmatprep.subr.mxu0 0.0
    %2683 = vmatpush1.xpose.msra.mxu0 0.0
    %2684 = vmatprep.subr.mxu0 0.0
    %2685 = vmatpush1.xpose.msra.mxu0 0.0
    %2686 = vmatprep.subr.mxu0 0.0
    %2687 = vmatpush1.xpose.msra.mxu0 0.0
    %2688 = vmatprep.subr.mxu0 0.0
    %2689 = vmatpush1.xpose.msra.mxu0 0.0
    %2690 = vmatprep.subr.mxu0 0.0
    %2691 = vmatpush1.xpose.msra.mxu0 0.0
    %2692 = vmatprep.subr.mxu0 0.0
    %2693 = vmatpush1.xpose.msra.mxu0 0.0
    %2694 = vmatprep.subr.mxu0 0.0
    %2695 = vmatpush1.xpose.msra.mxu0 0.0
    %2696 = vmatprep.subr.mxu0 0.0
    %2697 = vmatpush1.xpose.msra.mxu0 0.0
    %2698 = vmatprep.subr.mxu0 0.0
    %2699 = vmatpush1.xpose.msra.mxu0 0.0
    %2700 = vmatprep.subr.mxu0 0.0
    %2701 = vmatpush1.xpose.msra.mxu0 0.0
    %2702 = vmatprep.subr.mxu0 0.0
    %2703 = vmatpush1.xpose.msra.mxu0 0.0
    %2704 = vmatprep.subr.mxu0 0.0
    %2705 = vmatpush1.xpose.msra.mxu0 0.0
    %2706 = vmatprep.subr.mxu0 0.0
    %2707 = vmatpush1.xpose.msra.mxu0 0.0
    %2708 = vmatprep.subr.mxu0 0.0
    %2709 = vmatpush1.xpose.msra.mxu0 0.0
    %2710 = vmatprep.subr.mxu0 0.0
    %2711 = vmatpush1.xpose.msra.mxu0 0.0
    %2712 = vmatprep.subr.mxu0 0.0
    %2713 = vmatpush1.xpose.msra.mxu0 0.0
    %2714 = vmatprep.subr.mxu0 0.0
    %2715 = vmatpush1.xpose.msra.mxu0 0.0
    %2716 = vmatprep.subr.mxu0 0.0
    %2717 = vmatpush1.xpose.msra.mxu0 0.0
    %2718 = vmatprep.subr.mxu0 0.0
    %2719 = vmatpush1.xpose.msra.mxu0 0.0
    %2720 = vmatprep.subr.mxu0 0.0
    %2721 = vmatpush1.xpose.msra.mxu0 0.0
    %2722 = vmatprep.subr.mxu0 0.0
    %2723 = vmatpush1.xpose.msra.mxu0 0.0
    %2724 = vmatprep.subr.mxu0 0.0
    %2725 = vmatpush1.xpose.msra.mxu0 0.0
    %2726 = vmatprep.subr.mxu0 0.0
    %2727 = vmatpush1.xpose.msra.mxu0 0.0
    %2728 = vmatprep.subr.mxu0 0.0
    %2729 = vmatpush1.xpose.msra.mxu0 0.0
    %2730 = vmatprep.subr.mxu0 0.0
    %2731 = vmatpush1.xpose.msra.mxu0 0.0
    %2732 = vmatprep.subr.mxu0 0.0
    %2733 = vmatpush1.xpose.msra.mxu0 0.0
    %2734 = vmatprep.subr.mxu0 0.0
    %2735 = vmatpush1.xpose.msra.mxu0 0.0
    %2736 = vmatprep.subr.mxu0 0.0
    %2737 = vmatpush1.xpose.msra.mxu0 0.0
    %2738 = vmatprep.subr.mxu0 0.0
    %2739 = vmatpush1.xpose.msra.mxu0 0.0
    %2740 = vmatprep.subr.mxu0 0.0
    %2741 = vmatpush1.xpose.msra.mxu0 0.0
    %2742 = vmatprep.mubr.f32.mxu0 0.0
    %2743 = vmatmul.mubr.f32.gmra.mrb[0].mxu0 %v2674
    %v2744 = vpop.f32.mrb[0].mxu0
    %v2745 = vadd.f32 0.0, %v2744
    %v2746 = vpop.f32.mrb[0].mxu0
    %2747 = vdwg.mxu0
    %2748 = vrot.lane.b32.xlu0 %v1989, 112
    %v2749 = vpop.permute.xlu0 %2748
    %2750 = vrot.lane.b32.xlu0 %v1989, 80
    %v2751 = vpop.permute.xlu0 %2750
    %v2752 = vsel %vm164, %v2749, 0
    %v2754 = vsel %vm164, %v2751, 0
    %2756 = vmatprep.subr.mxu0 0.0
    %2757 = vmatpush1.xpose.msra.mxu0 %v2754
    %2758 = vmatprep.subr.mxu0 0.0
    %2759 = vmatpush1.xpose.msra.mxu0 0.0
    %2760 = vmatprep.subr.mxu0 0.0
    %2761 = vmatpush1.xpose.msra.mxu0 0.0
    %2762 = vmatprep.subr.mxu0 0.0
    %2763 = vmatpush1.xpose.msra.mxu0 0.0
    %2764 = vmatprep.subr.mxu0 0.0
    %2765 = vmatpush1.xpose.msra.mxu0 0.0
    %2766 = vmatprep.subr.mxu0 0.0
    %2767 = vmatpush1.xpose.msra.mxu0 0.0
    %2768 = vmatprep.subr.mxu0 0.0
    %2769 = vmatpush1.xpose.msra.mxu0 0.0
    %2770 = vmatprep.subr.mxu0 0.0
    %2771 = vmatpush1.xpose.msra.mxu0 0.0
    %2772 = vmatprep.subr.mxu0 0.0
    %2773 = vmatpush1.xpose.msra.mxu0 0.0
    %2774 = vmatprep.subr.mxu0 0.0
    %2775 = vmatpush1.xpose.msra.mxu0 0.0
    %2776 = vmatprep.subr.mxu0 0.0
    %2777 = vmatpush1.xpose.msra.mxu0 0.0
    %2778 = vmatprep.subr.mxu0 0.0
    %2779 = vmatpush1.xpose.msra.mxu0 0.0
    %2780 = vmatprep.subr.mxu0 0.0
    %2781 = vmatpush1.xpose.msra.mxu0 0.0
    %2782 = vmatprep.subr.mxu0 0.0
    %2783 = vmatpush1.xpose.msra.mxu0 0.0
    %2784 = vmatprep.subr.mxu0 0.0
    %2785 = vmatpush1.xpose.msra.mxu0 0.0
    %2786 = vmatprep.subr.mxu0 0.0
    %2787 = vmatpush1.xpose.msra.mxu0 0.0
    %2788 = vmatprep.subr.mxu0 0.0
    %2789 = vmatpush1.xpose.msra.mxu0 0.0
    %2790 = vmatprep.subr.mxu0 0.0
    %2791 = vmatpush1.xpose.msra.mxu0 0.0
    %2792 = vmatprep.subr.mxu0 0.0
    %2793 = vmatpush1.xpose.msra.mxu0 0.0
    %2794 = vmatprep.subr.mxu0 0.0
    %2795 = vmatpush1.xpose.msra.mxu0 0.0
    %2796 = vmatprep.subr.mxu0 0.0
    %2797 = vmatpush1.xpose.msra.mxu0 0.0
    %2798 = vmatprep.subr.mxu0 0.0
    %2799 = vmatpush1.xpose.msra.mxu0 0.0
    %2800 = vmatprep.subr.mxu0 0.0
    %2801 = vmatpush1.xpose.msra.mxu0 0.0
    %2802 = vmatprep.subr.mxu0 0.0
    %2803 = vmatpush1.xpose.msra.mxu0 0.0
    %2804 = vmatprep.subr.mxu0 0.0
    %2805 = vmatpush1.xpose.msra.mxu0 0.0
    %2806 = vmatprep.subr.mxu0 0.0
    %2807 = vmatpush1.xpose.msra.mxu0 0.0
    %2808 = vmatprep.subr.mxu0 0.0
    %2809 = vmatpush1.xpose.msra.mxu0 0.0
    %2810 = vmatprep.subr.mxu0 0.0
    %2811 = vmatpush1.xpose.msra.mxu0 0.0
    %2812 = vmatprep.subr.mxu0 0.0
    %2813 = vmatpush1.xpose.msra.mxu0 0.0
    %2814 = vmatprep.subr.mxu0 0.0
    %2815 = vmatpush1.xpose.msra.mxu0 0.0
    %2816 = vmatprep.subr.mxu0 0.0
    %2817 = vmatpush1.xpose.msra.mxu0 0.0
    %2818 = vmatprep.subr.mxu0 0.0
    %2819 = vmatpush1.xpose.msra.mxu0 0.0
    %2820 = vmatprep.mubr.f32.mxu0 0.0
    %2821 = vmatmul.mubr.f32.gmra.mrb[0].mxu0 %v2752
    %v2822 = vpop.f32.mrb[0].mxu0
    %v2823 = vadd.f32 0.0, %v2822
    %v2824 = vpop.f32.mrb[0].mxu0
    %2825 = vdwg.mxu0
    %v2826 = vmul.f32 %v2745, 0.35355338
    %v2827 = vmul.f32 %v2823, 0.35355338
    %v2828 = vadd.f32 %v2826, %v61
    %v2829 = vadd.f32 %v2827, %v65
    %v2830 = vsel %vm164, %v2828, -inf
    %2831 = vmax.xlane.f32.xlu0 %v2830
    %v2832 = vpop.xlane.xlu0 %2831
    %v2833 = vsel %vm164, %v2829, -inf
    %2834 = vmax.xlane.f32.xlu0 %v2833
    %v2835 = vpop.xlane.xlu0 %2834
    %v2836 = vsub.f32 %v2828, %v2832
    %v2837 = vsub.f32 %v2829, %v2835
    %v2838 = vmul.f32 %v2836, 1.442695
    %v2839 = vpow.pop %v2838
    %v2840 = vmul.f32 %v2837, 1.442695
    %v2841 = vpow.pop %v2840
    %v2842 = vsel %vm164, %v2839, 0.0
    %2843 = vadd.xlane.f32.xlu0 %v2842
    %v2844 = vpop.xlane.xlu0 %2843
    %v2845 = vsel %vm164, %v2841, 0.0
    %2846 = vadd.xlane.f32.xlu0 %v2845
    %v2847 = vpop.xlane.xlu0 %2846
    %v2848 = vrcp.pop %v2844
    %v2849 = vmul.f32 %v2839, %v2848
    %v2850 = vrcp.pop %v2847
    %v2851 = vmul.f32 %v2841, %v2850
    %2852 = vrot.lane.b32.xlu0 %v1984, 48
    %v2853 = vpop.permute.xlu0 %2852
    %v2856 = vsel %vm164, %v2849, 0
    %2858 = vmatprep.subr.mxu0 0.0
    %2859 = vmatpush1.msra.mxu0 %v2853
    %2860 = vmatprep.subr.mxu0 0.0
    %2861 = vmatpush1.msra.mxu0 0.0
    %2862 = vmatprep.subr.mxu0 0.0
    %2863 = vmatpush1.msra.mxu0 0.0
    %2864 = vmatprep.subr.mxu0 0.0
    %2865 = vmatpush1.msra.mxu0 0.0
    %2866 = vmatprep.subr.mxu0 0.0
    %2867 = vmatpush1.msra.mxu0 0.0
    %2868 = vmatprep.subr.mxu0 0.0
    %2869 = vmatpush1.msra.mxu0 0.0
    %2870 = vmatprep.subr.mxu0 0.0
    %2871 = vmatpush1.msra.mxu0 0.0
    %2872 = vmatprep.subr.mxu0 0.0
    %2873 = vmatpush1.msra.mxu0 0.0
    %2874 = vmatprep.subr.mxu0 0.0
    %2875 = vmatpush1.msra.mxu0 0.0
    %2876 = vmatprep.subr.mxu0 0.0
    %2877 = vmatpush1.msra.mxu0 0.0
    %2878 = vmatprep.subr.mxu0 0.0
    %2879 = vmatpush1.msra.mxu0 0.0
    %2880 = vmatprep.subr.mxu0 0.0
    %2881 = vmatpush1.msra.mxu0 0.0
    %2882 = vmatprep.subr.mxu0 0.0
    %2883 = vmatpush1.msra.mxu0 0.0
    %2884 = vmatprep.subr.mxu0 0.0
    %2885 = vmatpush1.msra.mxu0 0.0
    %2886 = vmatprep.subr.mxu0 0.0
    %2887 = vmatpush1.msra.mxu0 0.0
    %2888 = vmatprep.subr.mxu0 0.0
    %2889 = vmatpush1.msra.mxu0 0.0
    %2890 = vmatprep.subr.mxu0 0.0
    %2891 = vmatpush1.msra.mxu0 0.0
    %2892 = vmatprep.subr.mxu0 0.0
    %2893 = vmatpush1.msra.mxu0 0.0
    %2894 = vmatprep.subr.mxu0 0.0
    %2895 = vmatpush1.msra.mxu0 0.0
    %2896 = vmatprep.subr.mxu0 0.0
    %2897 = vmatpush1.msra.mxu0 0.0
    %2898 = vmatprep.subr.mxu0 0.0
    %2899 = vmatpush1.msra.mxu0 0.0
    %2900 = vmatprep.subr.mxu0 0.0
    %2901 = vmatpush1.msra.mxu0 0.0
    %2902 = vmatprep.subr.mxu0 0.0
    %2903 = vmatpush1.msra.mxu0 0.0
    %2904 = vmatprep.subr.mxu0 0.0
    %2905 = vmatpush1.msra.mxu0 0.0
    %2906 = vmatprep.subr.mxu0 0.0
    %2907 = vmatpush1.msra.mxu0 0.0
    %2908 = vmatprep.subr.mxu0 0.0
    %2909 = vmatpush1.msra.mxu0 0.0
    %2910 = vmatprep.subr.mxu0 0.0
    %2911 = vmatpush1.msra.mxu0 0.0
    %2912 = vmatprep.subr.mxu0 0.0
    %2913 = vmatpush1.msra.mxu0 0.0
    %2914 = vmatprep.subr.mxu0 0.0
    %2915 = vmatpush1.msra.mxu0 0.0
    %2916 = vmatprep.subr.mxu0 0.0
    %2917 = vmatpush1.msra.mxu0 0.0
    %2918 = vmatprep.subr.mxu0 0.0
    %2919 = vmatpush1.msra.mxu0 0.0
    %2920 = vmatprep.subr.mxu0 0.0
    %2921 = vmatpush1.msra.mxu0 0.0
    %2922 = vmatprep.mubr.f32.mxu0 0.0
    %2923 = vmatmul.mubr.f32.gmra.mrb[0].mxu0 %v2856
    %v2924 = vpop.f32.mrb[0].mxu0
    %v2925 = vadd.f32 0.0, %v2924
    %v2926 = vpop.f32.mrb[0].mxu0
    %2927 = vdwg.mxu0
    %2928 = vrot.lane.b32.xlu0 %v1989, 48
    %v2929 = vpop.permute.xlu0 %2928
    %v2932 = vsel %vm164, %v2851, 0
    %2934 = vmatprep.subr.mxu0 0.0
    %2935 = vmatpush1.msra.mxu0 %v2929
    %2936 = vmatprep.subr.mxu0 0.0
    %2937 = vmatpush1.msra.mxu0 0.0
    %2938 = vmatprep.subr.mxu0 0.0
    %2939 = vmatpush1.msra.mxu0 0.0
    %2940 = vmatprep.subr.mxu0 0.0
    %2941 = vmatpush1.msra.mxu0 0.0
    %2942 = vmatprep.subr.mxu0 0.0
    %2943 = vmatpush1.msra.mxu0 0.0
    %2944 = vmatprep.subr.mxu0 0.0
    %2945 = vmatpush1.msra.mxu0 0.0
    %2946 = vmatprep.subr.mxu0 0.0
    %2947 = vmatpush1.msra.mxu0 0.0
    %2948 = vmatprep.subr.mxu0 0.0
    %2949 = vmatpush1.msra.mxu0 0.0
    %2950 = vmatprep.subr.mxu0 0.0
    %2951 = vmatpush1.msra.mxu0 0.0
    %2952 = vmatprep.subr.mxu0 0.0
    %2953 = vmatpush1.msra.mxu0 0.0
    %2954 = vmatprep.subr.mxu0 0.0
    %2955 = vmatpush1.msra.mxu0 0.0
    %2956 = vmatprep.subr.mxu0 0.0
    %2957 = vmatpush1.msra.mxu0 0.0
    %2958 = vmatprep.subr.mxu0 0.0
    %2959 = vmatpush1.msra.mxu0 0.0
    %2960 = vmatprep.subr.mxu0 0.0
    %2961 = vmatpush1.msra.mxu0 0.0
    %2962 = vmatprep.subr.mxu0 0.0
    %2963 = vmatpush1.msra.mxu0 0.0
    %2964 = vmatprep.subr.mxu0 0.0
    %2965 = vmatpush1.msra.mxu0 0.0
    %2966 = vmatprep.subr.mxu0 0.0
    %2967 = vmatpush1.msra.mxu0 0.0
    %2968 = vmatprep.subr.mxu0 0.0
    %2969 = vmatpush1.msra.mxu0 0.0
    %2970 = vmatprep.subr.mxu0 0.0
    %2971 = vmatpush1.msra.mxu0 0.0
    %2972 = vmatprep.subr.mxu0 0.0
    %2973 = vmatpush1.msra.mxu0 0.0
    %2974 = vmatprep.subr.mxu0 0.0
    %2975 = vmatpush1.msra.mxu0 0.0
    %2976 = vmatprep.subr.mxu0 0.0
    %2977 = vmatpush1.msra.mxu0 0.0
    %2978 = vmatprep.subr.mxu0 0.0
    %2979 = vmatpush1.msra.mxu0 0.0
    %2980 = vmatprep.subr.mxu0 0.0
    %2981 = vmatpush1.msra.mxu0 0.0
    %2982 = vmatprep.subr.mxu0 0.0
    %2983 = vmatpush1.msra.mxu0 0.0
    %2984 = vmatprep.subr.mxu0 0.0
    %2985 = vmatpush1.msra.mxu0 0.0
    %2986 = vmatprep.subr.mxu0 0.0
    %2987 = vmatpush1.msra.mxu0 0.0
    %2988 = vmatprep.subr.mxu0 0.0
    %2989 = vmatpush1.msra.mxu0 0.0
    %2990 = vmatprep.subr.mxu0 0.0
    %2991 = vmatpush1.msra.mxu0 0.0
    %2992 = vmatprep.subr.mxu0 0.0
    %2993 = vmatpush1.msra.mxu0 0.0
    %2994 = vmatprep.subr.mxu0 0.0
    %2995 = vmatpush1.msra.mxu0 0.0
    %2996 = vmatprep.subr.mxu0 0.0
    %2997 = vmatpush1.msra.mxu0 0.0
    %2998 = vmatprep.mubr.f32.mxu0 0.0
    %2999 = vmatmul.mubr.f32.gmra.mrb[0].mxu0 %v2932
    %v3000 = vpop.f32.mrb[0].mxu0
    %v3001 = vadd.f32 0.0, %v3000
    %v3002 = vpop.f32.mrb[0].mxu0
    %3003 = vdwg.mxu0
    %3006 = vrot.lane.b32.xlu0 %v2925, 16
    %v3007 = vpop.permute.xlu0 %3006
    %3008 = vrot.lane.b32.xlu0 %v3001, 16
    %v3009 = vpop.permute.xlu0 %3008
    %3012 = vst.msk [vmem:[#allocation2] sm:$0xff] %vm1183, %v3007
    %3013 = vst.msk [vmem:[#allocation2 + $0x8] sm:$0xff] %vm1183, %v3009
    %3014 = vrot.lane.b32.xlu0 %v1984, 104
    %v3015 = vpop.permute.xlu0 %3014
    %3016 = vrot.lane.b32.xlu0 %v1984, 72
    %v3017 = vpop.permute.xlu0 %3016
    %v3018 = vsel %vm164, %v3015, 0
    %v3020 = vsel %vm164, %v3017, 0
    %3022 = vmatprep.subr.mxu0 0.0
    %3023 = vmatpush1.xpose.msra.mxu0 %v3020
    %3024 = vmatprep.subr.mxu0 0.0
    %3025 = vmatpush1.xpose.msra.mxu0 0.0
    %3026 = vmatprep.subr.mxu0 0.0
    %3027 = vmatpush1.xpose.msra.mxu0 0.0
    %3028 = vmatprep.subr.mxu0 0.0
    %3029 = vmatpush1.xpose.msra.mxu0 0.0
    %3030 = vmatprep.subr.mxu0 0.0
    %3031 = vmatpush1.xpose.msra.mxu0 0.0
    %3032 = vmatprep.subr.mxu0 0.0
    %3033 = vmatpush1.xpose.msra.mxu0 0.0
    %3034 = vmatprep.subr.mxu0 0.0
    %3035 = vmatpush1.xpose.msra.mxu0 0.0
    %3036 = vmatprep.subr.mxu0 0.0
    %3037 = vmatpush1.xpose.msra.mxu0 0.0
    %3038 = vmatprep.subr.mxu0 0.0
    %3039 = vmatpush1.xpose.msra.mxu0 0.0
    %3040 = vmatprep.subr.mxu0 0.0
    %3041 = vmatpush1.xpose.msra.mxu0 0.0
    %3042 = vmatprep.subr.mxu0 0.0
    %3043 = vmatpush1.xpose.msra.mxu0 0.0
    %3044 = vmatprep.subr.mxu0 0.0
    %3045 = vmatpush1.xpose.msra.mxu0 0.0
    %3046 = vmatprep.subr.mxu0 0.0
    %3047 = vmatpush1.xpose.msra.mxu0 0.0
    %3048 = vmatprep.subr.mxu0 0.0
    %3049 = vmatpush1.xpose.msra.mxu0 0.0
    %3050 = vmatprep.subr.mxu0 0.0
    %3051 = vmatpush1.xpose.msra.mxu0 0.0
    %3052 = vmatprep.subr.mxu0 0.0
    %3053 = vmatpush1.xpose.msra.mxu0 0.0
    %3054 = vmatprep.subr.mxu0 0.0
    %3055 = vmatpush1.xpose.msra.mxu0 0.0
    %3056 = vmatprep.subr.mxu0 0.0
    %3057 = vmatpush1.xpose.msra.mxu0 0.0
    %3058 = vmatprep.subr.mxu0 0.0
    %3059 = vmatpush1.xpose.msra.mxu0 0.0
    %3060 = vmatprep.subr.mxu0 0.0
    %3061 = vmatpush1.xpose.msra.mxu0 0.0
    %3062 = vmatprep.subr.mxu0 0.0
    %3063 = vmatpush1.xpose.msra.mxu0 0.0
    %3064 = vmatprep.subr.mxu0 0.0
    %3065 = vmatpush1.xpose.msra.mxu0 0.0
    %3066 = vmatprep.subr.mxu0 0.0
    %3067 = vmatpush1.xpose.msra.mxu0 0.0
    %3068 = vmatprep.subr.mxu0 0.0
    %3069 = vmatpush1.xpose.msra.mxu0 0.0
    %3070 = vmatprep.subr.mxu0 0.0
    %3071 = vmatpush1.xpose.msra.mxu0 0.0
    %3072 = vmatprep.subr.mxu0 0.0
    %3073 = vmatpush1.xpose.msra.mxu0 0.0
    %3074 = vmatprep.subr.mxu0 0.0
    %3075 = vmatpush1.xpose.msra.mxu0 0.0
    %3076 = vmatprep.subr.mxu0 0.0
    %3077 = vmatpush1.xpose.msra.mxu0 0.0
    %3078 = vmatprep.subr.mxu0 0.0
    %3079 = vmatpush1.xpose.msra.mxu0 0.0
    %3080 = vmatprep.subr.mxu0 0.0
    %3081 = vmatpush1.xpose.msra.mxu0 0.0
    %3082 = vmatprep.subr.mxu0 0.0
    %3083 = vmatpush1.xpose.msra.mxu0 0.0
    %3084 = vmatprep.subr.mxu0 0.0
    %3085 = vmatpush1.xpose.msra.mxu0 0.0
    %3086 = vmatprep.mubr.f32.mxu0 0.0
    %3087 = vmatmul.mubr.f32.gmra.mrb[0].mxu0 %v3018
    %v3088 = vpop.f32.mrb[0].mxu0
    %v3089 = vadd.f32 0.0, %v3088
    %v3090 = vpop.f32.mrb[0].mxu0
    %3091 = vdwg.mxu0
    %3092 = vrot.lane.b32.xlu0 %v1989, 104
    %v3093 = vpop.permute.xlu0 %3092
    %3094 = vrot.lane.b32.xlu0 %v1989, 72
    %v3095 = vpop.permute.xlu0 %3094
    %v3096 = vsel %vm164, %v3093, 0
    %v3098 = vsel %vm164, %v3095, 0
    %3100 = vmatprep.subr.mxu0 0.0
    %3101 = vmatpush1.xpose.msra.mxu0 %v3098
    %3102 = vmatprep.subr.mxu0 0.0
    %3103 = vmatpush1.xpose.msra.mxu0 0.0
    %3104 = vmatprep.subr.mxu0 0.0
    %3105 = vmatpush1.xpose.msra.mxu0 0.0
    %3106 = vmatprep.subr.mxu0 0.0
    %3107 = vmatpush1.xpose.msra.mxu0 0.0
    %3108 = vmatprep.subr.mxu0 0.0
    %3109 = vmatpush1.xpose.msra.mxu0 0.0
    %3110 = vmatprep.subr.mxu0 0.0
    %3111 = vmatpush1.xpose.msra.mxu0 0.0
    %3112 = vmatprep.subr.mxu0 0.0
    %3113 = vmatpush1.xpose.msra.mxu0 0.0
    %3114 = vmatprep.subr.mxu0 0.0
    %3115 = vmatpush1.xpose.msra.mxu0 0.0
    %3116 = vmatprep.subr.mxu0 0.0
    %3117 = vmatpush1.xpose.msra.mxu0 0.0
    %3118 = vmatprep.subr.mxu0 0.0
    %3119 = vmatpush1.xpose.msra.mxu0 0.0
    %3120 = vmatprep.subr.mxu0 0.0
    %3121 = vmatpush1.xpose.msra.mxu0 0.0
    %3122 = vmatprep.subr.mxu0 0.0
    %3123 = vmatpush1.xpose.msra.mxu0 0.0
    %3124 = vmatprep.subr.mxu0 0.0
    %3125 = vmatpush1.xpose.msra.mxu0 0.0
    %3126 = vmatprep.subr.mxu0 0.0
    %3127 = vmatpush1.xpose.msra.mxu0 0.0
    %3128 = vmatprep.subr.mxu0 0.0
    %3129 = vmatpush1.xpose.msra.mxu0 0.0
    %3130 = vmatprep.subr.mxu0 0.0
    %3131 = vmatpush1.xpose.msra.mxu0 0.0
    %3132 = vmatprep.subr.mxu0 0.0
    %3133 = vmatpush1.xpose.msra.mxu0 0.0
    %3134 = vmatprep.subr.mxu0 0.0
    %3135 = vmatpush1.xpose.msra.mxu0 0.0
    %3136 = vmatprep.subr.mxu0 0.0
    %3137 = vmatpush1.xpose.msra.mxu0 0.0
    %3138 = vmatprep.subr.mxu0 0.0
    %3139 = vmatpush1.xpose.msra.mxu0 0.0
    %3140 = vmatprep.subr.mxu0 0.0
    %3141 = vmatpush1.xpose.msra.mxu0 0.0
    %3142 = vmatprep.subr.mxu0 0.0
    %3143 = vmatpush1.xpose.msra.mxu0 0.0
    %3144 = vmatprep.subr.mxu0 0.0
    %3145 = vmatpush1.xpose.msra.mxu0 0.0
    %3146 = vmatprep.subr.mxu0 0.0
    %3147 = vmatpush1.xpose.msra.mxu0 0.0
    %3148 = vmatprep.subr.mxu0 0.0
    %3149 = vmatpush1.xpose.msra.mxu0 0.0
    %3150 = vmatprep.subr.mxu0 0.0
    %3151 = vmatpush1.xpose.msra.mxu0 0.0
    %3152 = vmatprep.subr.mxu0 0.0
    %3153 = vmatpush1.xpose.msra.mxu0 0.0
    %3154 = vmatprep.subr.mxu0 0.0
    %3155 = vmatpush1.xpose.msra.mxu0 0.0
    %3156 = vmatprep.subr.mxu0 0.0
    %3157 = vmatpush1.xpose.msra.mxu0 0.0
    %3158 = vmatprep.subr.mxu0 0.0
    %3159 = vmatpush1.xpose.msra.mxu0 0.0
    %3160 = vmatprep.subr.mxu0 0.0
    %3161 = vmatpush1.xpose.msra.mxu0 0.0
    %3162 = vmatprep.subr.mxu0 0.0
    %3163 = vmatpush1.xpose.msra.mxu0 0.0
    %3164 = vmatprep.mubr.f32.mxu0 0.0
    %3165 = vmatmul.mubr.f32.gmra.mrb[0].mxu0 %v3096
    %v3166 = vpop.f32.mrb[0].mxu0
    %v3167 = vadd.f32 0.0, %v3166
    %v3168 = vpop.f32.mrb[0].mxu0
    %3169 = vdwg.mxu0
    %v3170 = vmul.f32 %v3089, 0.35355338
    %v3171 = vmul.f32 %v3167, 0.35355338
    %v3172 = vadd.f32 %v3170, %v61
    %v3173 = vadd.f32 %v3171, %v65
    %v3174 = vsel %vm164, %v3172, -inf
    %3175 = vmax.xlane.f32.xlu0 %v3174
    %v3176 = vpop.xlane.xlu0 %3175
    %v3177 = vsel %vm164, %v3173, -inf
    %3178 = vmax.xlane.f32.xlu0 %v3177
    %v3179 = vpop.xlane.xlu0 %3178
    %v3180 = vsub.f32 %v3172, %v3176
    %v3181 = vsub.f32 %v3173, %v3179
    %v3182 = vmul.f32 %v3180, 1.442695
    %v3183 = vpow.pop %v3182
    %v3184 = vmul.f32 %v3181, 1.442695
    %v3185 = vpow.pop %v3184
    %v3186 = vsel %vm164, %v3183, 0.0
    %3187 = vadd.xlane.f32.xlu0 %v3186
    %v3188 = vpop.xlane.xlu0 %3187
    %v3189 = vsel %vm164, %v3185, 0.0
    %3190 = vadd.xlane.f32.xlu0 %v3189
    %v3191 = vpop.xlane.xlu0 %3190
    %v3192 = vrcp.pop %v3188
    %v3193 = vmul.f32 %v3183, %v3192
    %v3194 = vrcp.pop %v3191
    %v3195 = vmul.f32 %v3185, %v3194
    %3196 = vrot.lane.b32.xlu0 %v1984, 40
    %v3197 = vpop.permute.xlu0 %3196
    %v3200 = vsel %vm164, %v3193, 0
    %3202 = vmatprep.subr.mxu0 0.0
    %3203 = vmatpush1.msra.mxu0 %v3197
    %3204 = vmatprep.subr.mxu0 0.0
    %3205 = vmatpush1.msra.mxu0 0.0
    %3206 = vmatprep.subr.mxu0 0.0
    %3207 = vmatpush1.msra.mxu0 0.0
    %3208 = vmatprep.subr.mxu0 0.0
    %3209 = vmatpush1.msra.mxu0 0.0
    %3210 = vmatprep.subr.mxu0 0.0
    %3211 = vmatpush1.msra.mxu0 0.0
    %3212 = vmatprep.subr.mxu0 0.0
    %3213 = vmatpush1.msra.mxu0 0.0
    %3214 = vmatprep.subr.mxu0 0.0
    %3215 = vmatpush1.msra.mxu0 0.0
    %3216 = vmatprep.subr.mxu0 0.0
    %3217 = vmatpush1.msra.mxu0 0.0
    %3218 = vmatprep.subr.mxu0 0.0
    %3219 = vmatpush1.msra.mxu0 0.0
    %3220 = vmatprep.subr.mxu0 0.0
    %3221 = vmatpush1.msra.mxu0 0.0
    %3222 = vmatprep.subr.mxu0 0.0
    %3223 = vmatpush1.msra.mxu0 0.0
    %3224 = vmatprep.subr.mxu0 0.0
    %3225 = vmatpush1.msra.mxu0 0.0
    %3226 = vmatprep.subr.mxu0 0.0
    %3227 = vmatpush1.msra.mxu0 0.0
    %3228 = vmatprep.subr.mxu0 0.0
    %3229 = vmatpush1.msra.mxu0 0.0
    %3230 = vmatprep.subr.mxu0 0.0
    %3231 = vmatpush1.msra.mxu0 0.0
    %3232 = vmatprep.subr.mxu0 0.0
    %3233 = vmatpush1.msra.mxu0 0.0
    %3234 = vmatprep.subr.mxu0 0.0
    %3235 = vmatpush1.msra.mxu0 0.0
    %3236 = vmatprep.subr.mxu0 0.0
    %3237 = vmatpush1.msra.mxu0 0.0
    %3238 = vmatprep.subr.mxu0 0.0
    %3239 = vmatpush1.msra.mxu0 0.0
    %3240 = vmatprep.subr.mxu0 0.0
    %3241 = vmatpush1.msra.mxu0 0.0
    %3242 = vmatprep.subr.mxu0 0.0
    %3243 = vmatpush1.msra.mxu0 0.0
    %3244 = vmatprep.subr.mxu0 0.0
    %3245 = vmatpush1.msra.mxu0 0.0
    %3246 = vmatprep.subr.mxu0 0.0
    %3247 = vmatpush1.msra.mxu0 0.0
    %3248 = vmatprep.subr.mxu0 0.0
    %3249 = vmatpush1.msra.mxu0 0.0
    %3250 = vmatprep.subr.mxu0 0.0
    %3251 = vmatpush1.msra.mxu0 0.0
    %3252 = vmatprep.subr.mxu0 0.0
    %3253 = vmatpush1.msra.mxu0 0.0
    %3254 = vmatprep.subr.mxu0 0.0
    %3255 = vmatpush1.msra.mxu0 0.0
    %3256 = vmatprep.subr.mxu0 0.0
    %3257 = vmatpush1.msra.mxu0 0.0
    %3258 = vmatprep.subr.mxu0 0.0
    %3259 = vmatpush1.msra.mxu0 0.0
    %3260 = vmatprep.subr.mxu0 0.0
    %3261 = vmatpush1.msra.mxu0 0.0
    %3262 = vmatprep.subr.mxu0 0.0
    %3263 = vmatpush1.msra.mxu0 0.0
    %3264 = vmatprep.subr.mxu0 0.0
    %3265 = vmatpush1.msra.mxu0 0.0
    %3266 = vmatprep.mubr.f32.mxu0 0.0
    %3267 = vmatmul.mubr.f32.gmra.mrb[0].mxu0 %v3200
    %v3268 = vpop.f32.mrb[0].mxu0
    %v3269 = vadd.f32 0.0, %v3268
    %v3270 = vpop.f32.mrb[0].mxu0
    %3271 = vdwg.mxu0
    %3272 = vrot.lane.b32.xlu0 %v1989, 40
    %v3273 = vpop.permute.xlu0 %3272
    %v3276 = vsel %vm164, %v3195, 0
    %3278 = vmatprep.subr.mxu0 0.0
    %3279 = vmatpush1.msra.mxu0 %v3273
    %3280 = vmatprep.subr.mxu0 0.0
    %3281 = vmatpush1.msra.mxu0 0.0
    %3282 = vmatprep.subr.mxu0 0.0
    %3283 = vmatpush1.msra.mxu0 0.0
    %3284 = vmatprep.subr.mxu0 0.0
    %3285 = vmatpush1.msra.mxu0 0.0
    %3286 = vmatprep.subr.mxu0 0.0
    %3287 = vmatpush1.msra.mxu0 0.0
    %3288 = vmatprep.subr.mxu0 0.0
    %3289 = vmatpush1.msra.mxu0 0.0
    %3290 = vmatprep.subr.mxu0 0.0
    %3291 = vmatpush1.msra.mxu0 0.0
    %3292 = vmatprep.subr.mxu0 0.0
    %3293 = vmatpush1.msra.mxu0 0.0
    %3294 = vmatprep.subr.mxu0 0.0
    %3295 = vmatpush1.msra.mxu0 0.0
    %3296 = vmatprep.subr.mxu0 0.0
    %3297 = vmatpush1.msra.mxu0 0.0
    %3298 = vmatprep.subr.mxu0 0.0
    %3299 = vmatpush1.msra.mxu0 0.0
    %3300 = vmatprep.subr.mxu0 0.0
    %3301 = vmatpush1.msra.mxu0 0.0
    %3302 = vmatprep.subr.mxu0 0.0
    %3303 = vmatpush1.msra.mxu0 0.0
    %3304 = vmatprep.subr.mxu0 0.0
    %3305 = vmatpush1.msra.mxu0 0.0
    %3306 = vmatprep.subr.mxu0 0.0
    %3307 = vmatpush1.msra.mxu0 0.0
    %3308 = vmatprep.subr.mxu0 0.0
    %3309 = vmatpush1.msra.mxu0 0.0
    %3310 = vmatprep.subr.mxu0 0.0
    %3311 = vmatpush1.msra.mxu0 0.0
    %3312 = vmatprep.subr.mxu0 0.0
    %3313 = vmatpush1.msra.mxu0 0.0
    %3314 = vmatprep.subr.mxu0 0.0
    %3315 = vmatpush1.msra.mxu0 0.0
    %3316 = vmatprep.subr.mxu0 0.0
    %3317 = vmatpush1.msra.mxu0 0.0
    %3318 = vmatprep.subr.mxu0 0.0
    %3319 = vmatpush1.msra.mxu0 0.0
    %3320 = vmatprep.subr.mxu0 0.0
    %3321 = vmatpush1.msra.mxu0 0.0
    %3322 = vmatprep.subr.mxu0 0.0
    %3323 = vmatpush1.msra.mxu0 0.0
    %3324 = vmatprep.subr.mxu0 0.0
    %3325 = vmatpush1.msra.mxu0 0.0
    %3326 = vmatprep.subr.mxu0 0.0
    %3327 = vmatpush1.msra.mxu0 0.0
    %3328 = vmatprep.subr.mxu0 0.0
    %3329 = vmatpush1.msra.mxu0 0.0
    %3330 = vmatprep.subr.mxu0 0.0
    %3331 = vmatpush1.msra.mxu0 0.0
    %3332 = vmatprep.subr.mxu0 0.0
    %3333 = vmatpush1.msra.mxu0 0.0
    %3334 = vmatprep.subr.mxu0 0.0
    %3335 = vmatpush1.msra.mxu0 0.0
    %3336 = vmatprep.subr.mxu0 0.0
    %3337 = vmatpush1.msra.mxu0 0.0
    %3338 = vmatprep.subr.mxu0 0.0
    %3339 = vmatpush1.msra.mxu0 0.0
    %3340 = vmatprep.subr.mxu0 0.0
    %3341 = vmatpush1.msra.mxu0 0.0
    %3342 = vmatprep.mubr.f32.mxu0 0.0
    %3343 = vmatmul.mubr.f32.gmra.mrb[0].mxu0 %v3276
    %v3344 = vpop.f32.mrb[0].mxu0
    %v3345 = vadd.f32 0.0, %v3344
    %v3346 = vpop.f32.mrb[0].mxu0
    %3347 = vdwg.mxu0
    %3350 = vrot.lane.b32.xlu0 %v3269, 24
    %v3351 = vpop.permute.xlu0 %3350
    %3352 = vrot.lane.b32.xlu0 %v3345, 24
    %v3353 = vpop.permute.xlu0 %3352
    %3356 = vst.msk [vmem:[#allocation2] sm:$0xff] %vm1528, %v3351
    %3357 = vst.msk [vmem:[#allocation2 + $0x8] sm:$0xff] %vm1528, %v3353
    %s3358 = scalar_lea.vmem %s9, 8
    %v3359 = vld [vmem:[%s3358] sm:$0x3f]
    %v3360 = vld [vmem:[#allocation2] sm:$0xff]
    %v3361 = vld [vmem:[#allocation2 + $0x8] sm:$0xff]
    %s3362 = scalar_lea.vmem %s5, 32
    %v3363 = vld [vmem:[%s3362] sm:$0xff]
    %v3364 = vld [vmem:[%s3362 + $0x8] sm:$0xff]
    %v3365 = vld [vmem:[%s3362 + $0x10] sm:$0xff]
    %v3366 = vld [vmem:[%s3362 + $0x18] sm:$0xff]
    %v3367 = vlaneseq
    %v3368 = vshrl.u32 %v3367, 7
    %v3369 = vsub.s32 0, %v3368
    %v3370 = vrot.slane %v3359, %v3369
    %v3372 = vsel %vm79, %v3360, 0
    %v3375 = vsel %vm79, %v3361, 0
    %3377 = vmatprep.subr.mxu0 0.0
    %3378 = vmatpush1.msra.mxu0 %v3363
    %3379 = vmatprep.subr.mxu0 0.0
    %3380 = vmatpush1.msra.mxu0 %v3364
    %3381 = vmatprep.subr.mxu0 0.0
    %3382 = vmatpush1.msra.mxu0 %v3365
    %3383 = vmatprep.subr.mxu0 0.0
    %3384 = vmatpush1.msra.mxu0 %v3366
    %3385 = vmatprep.subr.mxu0 0.0
    %3386 = vmatpush1.msra.mxu0 0.0
    %3387 = vmatprep.subr.mxu0 0.0
    %3388 = vmatpush1.msra.mxu0 0.0
    %3389 = vmatprep.subr.mxu0 0.0
    %3390 = vmatpush1.msra.mxu0 0.0
    %3391 = vmatprep.subr.mxu0 0.0
    %3392 = vmatpush1.msra.mxu0 0.0
    %3393 = vmatprep.subr.mxu0 0.0
    %3394 = vmatpush1.msra.mxu0 0.0
    %3395 = vmatprep.subr.mxu0 0.0
    %3396 = vmatpush1.msra.mxu0 0.0
    %3397 = vmatprep.subr.mxu0 0.0
    %3398 = vmatpush1.msra.mxu0 0.0
    %3399 = vmatprep.subr.mxu0 0.0
    %3400 = vmatpush1.msra.mxu0 0.0
    %3401 = vmatprep.subr.mxu0 0.0
    %3402 = vmatpush1.msra.mxu0 0.0
    %3403 = vmatprep.subr.mxu0 0.0
    %3404 = vmatpush1.msra.mxu0 0.0
    %3405 = vmatprep.subr.mxu0 0.0
    %3406 = vmatpush1.msra.mxu0 0.0
    %3407 = vmatprep.subr.mxu0 0.0
    %3408 = vmatpush1.msra.mxu0 0.0
    %3409 = vmatprep.subr.mxu0 0.0
    %3410 = vmatpush1.msra.mxu0 0.0
    %3411 = vmatprep.subr.mxu0 0.0
    %3412 = vmatpush1.msra.mxu0 0.0
    %3413 = vmatprep.subr.mxu0 0.0
    %3414 = vmatpush1.msra.mxu0 0.0
    %3415 = vmatprep.subr.mxu0 0.0
    %3416 = vmatpush1.msra.mxu0 0.0
    %3417 = vmatprep.subr.mxu0 0.0
    %3418 = vmatpush1.msra.mxu0 0.0
    %3419 = vmatprep.subr.mxu0 0.0
    %3420 = vmatpush1.msra.mxu0 0.0
    %3421 = vmatprep.subr.mxu0 0.0
    %3422 = vmatpush1.msra.mxu0 0.0
    %3423 = vmatprep.subr.mxu0 0.0
    %3424 = vmatpush1.msra.mxu0 0.0
    %3425 = vmatprep.subr.mxu0 0.0
    %3426 = vmatpush1.msra.mxu0 0.0
    %3427 = vmatprep.subr.mxu0 0.0
    %3428 = vmatpush1.msra.mxu0 0.0
    %3429 = vmatprep.subr.mxu0 0.0
    %3430 = vmatpush1.msra.mxu0 0.0
    %3431 = vmatprep.subr.mxu0 0.0
    %3432 = vmatpush1.msra.mxu0 0.0
    %3433 = vmatprep.subr.mxu0 0.0
    %3434 = vmatpush1.msra.mxu0 0.0
    %3435 = vmatprep.subr.mxu0 0.0
    %3436 = vmatpush1.msra.mxu0 0.0
    %3437 = vmatprep.subr.mxu0 0.0
    %3438 = vmatpush1.msra.mxu0 0.0
    %3439 = vmatprep.subr.mxu0 0.0
    %3440 = vmatpush1.msra.mxu0 0.0
    %3441 = vmatprep.mubr.f32.mxu0 0.0
    %3442 = vmatmul.mubr.f32.gmra.mrb[0].mxu0 %v3372
    %v3443 = vpop.f32.mrb[0].mxu0
    %v3444 = vadd.f32 %v3370, %v3443
    %v3445 = vpop.f32.mrb[0].mxu0
    %3446 = vmatprep.mubr.f32.mxu0 0.0
    %3447 = vmatmul.mubr.f32.gmra.mrb[0].mxu0 %v3375
    %v3448 = vpop.f32.mrb[0].mxu0
    %v3449 = vadd.f32 %v3370, %v3448
    %v3450 = vpop.f32.mrb[0].mxu0
    %3451 = vdwg.mxu0
    %v3452 = vadd.f32 %v1894, %v3444
    %v3453 = vadd.f32 %v1895, %v3449
    %v3454 = vsel %vm79, %v3452, 0.0
    %3455 = vadd.xlane.f32.xlu0 %v3454
    %v3456 = vpop.xlane.xlu0 %3455
    %v3457 = vsel %vm79, %v3453, 0.0
    %3458 = vadd.xlane.f32.xlu0 %v3457
    %v3459 = vpop.xlane.xlu0 %3458
    %v3460 = vmul.f32 %v3456, %v1631
    %v3461 = vmul.f32 %v3459, %v1631
    %v3462 = vsub.f32 %v3452, %v3460
    %v3463 = vsub.f32 %v3453, %v3461
    %v3464 = vmul.f32 %v3462, %v3462
    %v3465 = vmul.f32 %v3463, %v3463
    %v3466 = vsel %vm79, %v3464, 0.0
    %3467 = vadd.xlane.f32.xlu0 %v3466
    %v3468 = vpop.xlane.xlu0 %3467
    %v3469 = vsel %vm79, %v3465, 0.0
    %3470 = vadd.xlane.f32.xlu0 %v3469
    %v3471 = vpop.xlane.xlu0 %3470
    %v3472 = vmul.f32 %v3468, %v1631
    %v3473 = vmul.f32 %v3471, %v1631
    %v3474 = vadd.f32 %v3472, 1e-05
    %v3475 = vadd.f32 %v3473, 1e-05
    %v3476 = vrsqrt.pop %v3474
    %v3477 = vrsqrt.pop %v3475
    %v3478 = vmul.f32 %v3462, %v3476
    %v3479 = vmul.f32 %v3463, %v3477
    %v3480 = vlaneseq
    %v3481 = vshrl.u32 %v3480, 7
    %v3482 = vsub.s32 2, %v3481
    %v3483 = vrot.slane %v3359, %v3482
    %v3484 = vmul.f32 %v3478, %v3483
    %v3485 = vmul.f32 %v3479, %v3483
    %v3486 = vlaneseq
    %v3487 = vshrl.u32 %v3486, 7
    %v3488 = vsub.s32 3, %v3487
    %v3489 = vrot.slane %v3359, %v3488
    %v3490 = vadd.f32 %v3484, %v3489
    %v3491 = vadd.f32 %v3485, %v3489
    %s3492 = scalar_lea.vmem %s6, 32
    %v3493 = vld [vmem:[%s3492] sm:$0xff]
    %v3494 = vld [vmem:[%s3492 + $0x8] sm:$0xff]
    %v3495 = vld [vmem:[%s3492 + $0x10] sm:$0xff]
    %v3496 = vld [vmem:[%s3492 + $0x18] sm:$0xff]
    %s3497 = scalar_lea.vmem %s7, 1
    %v3498 = vld [vmem:[%s3497] sm:$0x1]
    %v3500 = vlaneseq
    %v3501 = vshrl.u32 %v3500, 7
    %v3502 = vsub.s32 0, %v3501
    %v3503 = vrot.slane %v3498, %v3502
    %v3506 = vsel %vm79, %v3490, 0
    %v3509 = vsel %vm79, %v3491, 0
    %3511 = vmatprep.subr.mxu0 0.0
    %3512 = vmatpush1.msra.mxu0 %v3493
    %3513 = vmatprep.subr.mxu0 0.0
    %3514 = vmatpush1.msra.mxu0 %v3494
    %3515 = vmatprep.subr.mxu0 0.0
    %3516 = vmatpush1.msra.mxu0 %v3495
    %3517 = vmatprep.subr.mxu0 0.0
    %3518 = vmatpush1.msra.mxu0 %v3496
    %3519 = vmatprep.subr.mxu0 0.0
    %3520 = vmatpush1.msra.mxu0 0.0
    %3521 = vmatprep.subr.mxu0 0.0
    %3522 = vmatpush1.msra.mxu0 0.0
    %3523 = vmatprep.subr.mxu0 0.0
    %3524 = vmatpush1.msra.mxu0 0.0
    %3525 = vmatprep.subr.mxu0 0.0
    %3526 = vmatpush1.msra.mxu0 0.0
    %3527 = vmatprep.subr.mxu0 0.0
    %3528 = vmatpush1.msra.mxu0 0.0
    %3529 = vmatprep.subr.mxu0 0.0
    %3530 = vmatpush1.msra.mxu0 0.0
    %3531 = vmatprep.subr.mxu0 0.0
    %3532 = vmatpush1.msra.mxu0 0.0
    %3533 = vmatprep.subr.mxu0 0.0
    %3534 = vmatpush1.msra.mxu0 0.0
    %3535 = vmatprep.subr.mxu0 0.0
    %3536 = vmatpush1.msra.mxu0 0.0
    %3537 = vmatprep.subr.mxu0 0.0
    %3538 = vmatpush1.msra.mxu0 0.0
    %3539 = vmatprep.subr.mxu0 0.0
    %3540 = vmatpush1.msra.mxu0 0.0
    %3541 = vmatprep.subr.mxu0 0.0
    %3542 = vmatpush1.msra.mxu0 0.0
    %3543 = vmatprep.subr.mxu0 0.0
    %3544 = vmatpush1.msra.mxu0 0.0
    %3545 = vmatprep.subr.mxu0 0.0
    %3546 = vmatpush1.msra.mxu0 0.0
    %3547 = vmatprep.subr.mxu0 0.0
    %3548 = vmatpush1.msra.mxu0 0.0
    %3549 = vmatprep.subr.mxu0 0.0
    %3550 = vmatpush1.msra.mxu0 0.0
    %3551 = vmatprep.subr.mxu0 0.0
    %3552 = vmatpush1.msra.mxu0 0.0
    %3553 = vmatprep.subr.mxu0 0.0
    %3554 = vmatpush1.msra.mxu0 0.0
    %3555 = vmatprep.subr.mxu0 0.0
    %3556 = vmatpush1.msra.mxu0 0.0
    %3557 = vmatprep.subr.mxu0 0.0
    %3558 = vmatpush1.msra.mxu0 0.0
    %3559 = vmatprep.subr.mxu0 0.0
    %3560 = vmatpush1.msra.mxu0 0.0
    %3561 = vmatprep.subr.mxu0 0.0
    %3562 = vmatpush1.msra.mxu0 0.0
    %3563 = vmatprep.subr.mxu0 0.0
    %3564 = vmatpush1.msra.mxu0 0.0
    %3565 = vmatprep.subr.mxu0 0.0
    %3566 = vmatpush1.msra.mxu0 0.0
    %3567 = vmatprep.subr.mxu0 0.0
    %3568 = vmatpush1.msra.mxu0 0.0
    %3569 = vmatprep.subr.mxu0 0.0
    %3570 = vmatpush1.msra.mxu0 0.0
    %3571 = vmatprep.subr.mxu0 0.0
    %3572 = vmatpush1.msra.mxu0 0.0
    %3573 = vmatprep.subr.mxu0 0.0
    %3574 = vmatpush1.msra.mxu0 0.0
    %3575 = vmatprep.mubr.f32.mxu0 0.0
    %3576 = vmatmul.mubr.f32.gmra.mrb[0].mxu0 %v3506
    %v3577 = vpop.f32.mrb[0].mxu0
    %v3578 = vadd.f32 %v3503, %v3577
    %v3579 = vpop.f32.mrb[0].mxu0
    %3580 = vmatprep.mubr.f32.mxu0 0.0
    %3581 = vmatmul.mubr.f32.gmra.mrb[0].mxu0 %v3509
    %v3582 = vpop.f32.mrb[0].mxu0
    %v3583 = vadd.f32 %v3503, %v3582
    %v3584 = vpop.f32.mrb[0].mxu0
    %3585 = vdwg.mxu0
    %v3586 = vmax.f32 %v3578, 0.0
    %v3587 = vmax.f32 %v3583, 0.0
    %s3588 = scalar_lea.vmem %s8, 64
    %v3589 = vld [vmem:[%s3588] sm:$0xff]
    %v3590 = vld [vmem:[%s3588 + $0x8] sm:$0xff]
    %v3591 = vld [vmem:[%s3588 + $0x10] sm:$0xff]
    %v3592 = vld [vmem:[%s3588 + $0x18] sm:$0xff]
    %v3593 = vld [vmem:[%s3588 + $0x20] sm:$0xff]
    %v3594 = vld [vmem:[%s3588 + $0x28] sm:$0xff]
    %v3595 = vld [vmem:[%s3588 + $0x30] sm:$0xff]
    %v3596 = vld [vmem:[%s3588 + $0x38] sm:$0xff]
    %v3597 = vlaneseq
    %v3598 = vshrl.u32 %v3597, 7
    %v3599 = vsub.s32 1, %v3598
    %v3600 = vrot.slane %v3359, %v3599
    %v3602 = vsel %vm1770, %v3586, 0
    %v3605 = vsel %vm1770, %v3587, 0
    %3607 = vmatprep.subr.mxu0 0.0
    %3608 = vmatpush1.msra.mxu0 %v3589
    %3609 = vmatprep.subr.mxu0 0.0
    %3610 = vmatpush1.msra.mxu0 %v3590
    %3611 = vmatprep.subr.mxu0 0.0
    %3612 = vmatpush1.msra.mxu0 %v3591
    %3613 = vmatprep.subr.mxu0 0.0
    %3614 = vmatpush1.msra.mxu0 %v3592
    %3615 = vmatprep.subr.mxu0 0.0
    %3616 = vmatpush1.msra.mxu0 %v3593
    %3617 = vmatprep.subr.mxu0 0.0
    %3618 = vmatpush1.msra.mxu0 %v3594
    %3619 = vmatprep.subr.mxu0 0.0
    %3620 = vmatpush1.msra.mxu0 %v3595
    %3621 = vmatprep.subr.mxu0 0.0
    %3622 = vmatpush1.msra.mxu0 %v3596
    %3623 = vmatprep.subr.mxu0 0.0
    %3624 = vmatpush1.msra.mxu0 0.0
    %3625 = vmatprep.subr.mxu0 0.0
    %3626 = vmatpush1.msra.mxu0 0.0
    %3627 = vmatprep.subr.mxu0 0.0
    %3628 = vmatpush1.msra.mxu0 0.0
    %3629 = vmatprep.subr.mxu0 0.0
    %3630 = vmatpush1.msra.mxu0 0.0
    %3631 = vmatprep.subr.mxu0 0.0
    %3632 = vmatpush1.msra.mxu0 0.0
    %3633 = vmatprep.subr.mxu0 0.0
    %3634 = vmatpush1.msra.mxu0 0.0
    %3635 = vmatprep.subr.mxu0 0.0
    %3636 = vmatpush1.msra.mxu0 0.0
    %3637 = vmatprep.subr.mxu0 0.0
    %3638 = vmatpush1.msra.mxu0 0.0
    %3639 = vmatprep.subr.mxu0 0.0
    %3640 = vmatpush1.msra.mxu0 0.0
    %3641 = vmatprep.subr.mxu0 0.0
    %3642 = vmatpush1.msra.mxu0 0.0
    %3643 = vmatprep.subr.mxu0 0.0
    %3644 = vmatpush1.msra.mxu0 0.0
    %3645 = vmatprep.subr.mxu0 0.0
    %3646 = vmatpush1.msra.mxu0 0.0
    %3647 = vmatprep.subr.mxu0 0.0
    %3648 = vmatpush1.msra.mxu0 0.0
    %3649 = vmatprep.subr.mxu0 0.0
    %3650 = vmatpush1.msra.mxu0 0.0
    %3651 = vmatprep.subr.mxu0 0.0
    %3652 = vmatpush1.msra.mxu0 0.0
    %3653 = vmatprep.subr.mxu0 0.0
    %3654 = vmatpush1.msra.mxu0 0.0
    %3655 = vmatprep.subr.mxu0 0.0
    %3656 = vmatpush1.msra.mxu0 0.0
    %3657 = vmatprep.subr.mxu0 0.0
    %3658 = vmatpush1.msra.mxu0 0.0
    %3659 = vmatprep.subr.mxu0 0.0
    %3660 = vmatpush1.msra.mxu0 0.0
    %3661 = vmatprep.subr.mxu0 0.0
    %3662 = vmatpush1.msra.mxu0 0.0
    %3663 = vmatprep.subr.mxu0 0.0
    %3664 = vmatpush1.msra.mxu0 0.0
    %3665 = vmatprep.subr.mxu0 0.0
    %3666 = vmatpush1.msra.mxu0 0.0
    %3667 = vmatprep.subr.mxu0 0.0
    %3668 = vmatpush1.msra.mxu0 0.0
    %3669 = vmatprep.subr.mxu0 0.0
    %3670 = vmatpush1.msra.mxu0 0.0
    %3671 = vmatprep.mubr.f32.mxu0 0.0
    %3672 = vmatmul.mubr.f32.gmra.mrb[0].mxu0 %v3602
    %v3673 = vpop.f32.mrb[0].mxu0
    %v3674 = vadd.f32 %v3600, %v3673
    %v3675 = vpop.f32.mrb[0].mxu0
    %3676 = vmatprep.mubr.f32.mxu0 0.0
    %3677 = vmatmul.mubr.f32.gmra.mrb[0].mxu0 %v3605
    %v3678 = vpop.f32.mrb[0].mxu0
    %v3679 = vadd.f32 %v3600, %v3678
    %v3680 = vpop.f32.mrb[0].mxu0
    %3681 = vdwg.mxu0
    %v3682 = vadd.f32 %v3490, %v3674
    %v3683 = vadd.f32 %v3491, %v3679
    %v3684 = vsel %vm79, %v3682, 0.0
    %3685 = vadd.xlane.f32.xlu0 %v3684
    %v3686 = vpop.xlane.xlu0 %3685
    %v3687 = vsel %vm79, %v3683, 0.0
    %3688 = vadd.xlane.f32.xlu0 %v3687
    %v3689 = vpop.xlane.xlu0 %3688
    %v3690 = vmul.f32 %v3686, %v1631
    %v3691 = vmul.f32 %v3689, %v1631
    %v3692 = vsub.f32 %v3682, %v3690
    %v3693 = vsub.f32 %v3683, %v3691
    %v3694 = vmul.f32 %v3692, %v3692
    %v3695 = vmul.f32 %v3693, %v3693
    %v3696 = vsel %vm79, %v3694, 0.0
    %3697 = vadd.xlane.f32.xlu0 %v3696
    %v3698 = vpop.xlane.xlu0 %3697
    %v3699 = vsel %vm79, %v3695, 0.0
    %3700 = vadd.xlane.f32.xlu0 %v3699
    %v3701 = vpop.xlane.xlu0 %3700
    %v3702 = vmul.f32 %v3698, %v1631
    %v3703 = vmul.f32 %v3701, %v1631
    %v3704 = vadd.f32 %v3702, 1e-05
    %v3705 = vadd.f32 %v3703, 1e-05
    %v3706 = vrsqrt.pop %v3704
    %v3707 = vrsqrt.pop %v3705
    %v3708 = vmul.f32 %v3692, %v3706
    %v3709 = vmul.f32 %v3693, %v3707
    %v3710 = vlaneseq
    %v3711 = vshrl.u32 %v3710, 7
    %v3712 = vsub.s32 4, %v3711
    %v3713 = vrot.slane %v3359, %v3712
    %v3714 = vmul.f32 %v3708, %v3713
    %v3715 = vmul.f32 %v3709, %v3713
    %v3716 = vlaneseq
    %v3717 = vshrl.u32 %v3716, 7
    %v3718 = vsub.s32 5, %v3717
    %v3719 = vrot.slane %v3359, %v3718
    %v3720 = vadd.f32 %v3714, %v3719
    %v3721 = vadd.f32 %v3715, %v3719
    %s3722 = scalar_lea.vmem %s2, 16
    %v3723 = vld [vmem:[%s3722] sm:$0xff]
    %v3724 = vld [vmem:[%s3722 + $0x8] sm:$0xff]
    %v3725 = vadd.f32 %v3720, %v3723
    %v3726 = vadd.f32 %v3721, %v3724
    %s3727 = scalar_lea.vmem [#allocation6], 16
    %3728 = vst.msk [vmem:[%s3727] sm:$0xff] %vm79, %v3725
    %3729 = vst.msk [vmem:[%s3727 + $0x8] sm:$0xff] %vm79, %v3726
    // Predicated region
    $region46: #{tpu_custom_call.1} parent=1 // pred_check
      _
    $region47: #{tpu_custom_call.1} parent=1 // pred_check_branch
      %3731 = sbr.rel (0) target = $region49
    $region48: #{tpu_custom_call.1} parent=1 // pred_region
      %s3733 = ssub.s32 512, 512
      %3734 = vsyncadd [#allocation5], %s3733
      %s3735 = sshll.u32 [#allocation6], 4
      %s3736 = int_to_ptr.vmem [resolvable:$true] %s3735
      %3741 = dma.vmem_to_hbm [thread:$0]  %s3736, 512, %s10, [#allocation5], 128, 128, 8
    $region49: #{tpu_custom_call.1} parent=1 // pred_fallthru
      _
    // Predicated region
    $region50: #{tpu_custom_call.1} parent=1 // pred_check
      _
    $region51: #{tpu_custom_call.1} parent=1 // pred_check_branch
      %3743 = sbr.rel (0) target = $region53
    $region52: #{tpu_custom_call.1} parent=1 // pred_region
      %3744 = dma.done [#allocation5], 512
    $region53: #{tpu_custom_call.1} parent=1 // pred_fallthru
      _
    %3745 = vsyncpa [#allocation4], 1
    %3746 = vsyncpa [#allocation5], 1

</llo_original>
